<compile_context>
chip_gen: v5e
topology: v5e:2x2
jax: 0.10.0
libtpu: 0.0.40
codegen_flags: <defaults>
</compile_context>

<pallas_src>
import functools

import jax
import jax.numpy as jnp
from jax.experimental import pallas as pl
from jax.experimental.pallas import tpu as pltpu


def _round_up(x, m):
    return (x + m - 1) // m * m


# ----------------------------------------------------------------------------
# Fused (fwd + rev) single-layer kernel, grid over sequence chunks.
#   xf_ref  : (C, Bp, D)    chunk i of x                   (forward stream)
#   xr_ref  : (C, Bp, D)    chunk N-1-i of x               (reverse stream)
#   wih*_ref: (D, 4Hp)      transposed, gate-padded W_ih   (mxu dtype)
#   whh_ref : (2Hp, 8Hp)    block-diag [[Whh_f,0],[0,Whh_r]] (mxu dtype)
#   b*_ref  : (1, 4Hp)      b_ih + b_hh (f32, gate-padded)
#   outf_ref: (C, Bp, Hp)   forward hidden states for chunk i
#   outr_ref: (C, Bp, Hp)   reverse hidden states for chunk N-1-i (fwd order)
#   scratch : cross-chunk h/c state + hoisted gate pre-activations.
# ----------------------------------------------------------------------------
def _bdlstm_layer_kernel(xf_ref, xr_ref, wihf_ref, wihr_ref, whh_ref,
                         bf_ref, br_ref,
                         outf_ref, outr_ref,
                         h_sc, cf_sc, cr_sc, gxf_sc, gxr_sc,
                         *, mxu_dtype, unroll, hp, n_chunks, chunk,
                         t_real, has_pad):
    C, Bp, D = xf_ref.shape
    Hp = hp
    i_chunk = pl.program_id(0)

    # Zero recurrent state on the first chunk only (state carried across grid).
    @pl.when(i_chunk == 0)
    def _():
        h_sc[...] = jnp.zeros_like(h_sc)
        cf_sc[...] = jnp.zeros_like(cf_sc)
        cr_sc[...] = jnp.zeros_like(cr_sc)

    # ---- Hoisted input projection (bias folded in): one big MXU matmul per
    # direction per chunk; the sequential loop below only keeps the
    # unavoidable recurrent matmul on its critical path.
    xf = xf_ref[...].reshape(C * Bp, D).astype(mxu_dtype)
    xr = xr_ref[...].reshape(C * Bp, D).astype(mxu_dtype)
    gxf_sc[...] = (jnp.dot(xf, wihf_ref[...],
                           preferred_element_type=jnp.float32)
                   + bf_ref[...]).reshape(C, Bp, 4 * Hp)
    gxr_sc[...] = (jnp.dot(xr, wihr_ref[...],
                           preferred_element_type=jnp.float32)
                   + br_ref[...]).reshape(C, Bp, 4 * Hp)

    def one_step(t, carry):
        h_cat, c_f, c_r = carry                      # vreg-resident carries

        # One fused recurrent matmul for both directions (block-diagonal Whh).
        rec = jnp.dot(h_cat.astype(mxu_dtype), whh_ref[...],
                      preferred_element_type=jnp.float32)   # (Bp, 8Hp)

        tr = C - 1 - t                               # reverse-local index
        g_f = gxf_sc[t] + rec[:, :4 * Hp]
        g_r = gxr_sc[tr] + rec[:, 4 * Hp:]

        # Forward cell (global time i*C + t).
        i_f = jax.nn.sigmoid(g_f[:, 0:Hp])
        f_f = jax.nn.sigmoid(g_f[:, Hp:2 * Hp])
        gg_f = jnp.tanh(g_f[:, 2 * Hp:3 * Hp])
        o_f = jax.nn.sigmoid(g_f[:, 3 * Hp:4 * Hp])
        c_f_new = f_f * c_f + i_f * gg_f
        h_f_new = o_f * jnp.tanh(c_f_new)

        # Reverse cell (global time (N-1-i)*C + tr, descending).
        i_r = jax.nn.sigmoid(g_r[:, 0:Hp])
        f_r = jax.nn.sigmoid(g_r[:, Hp:2 * Hp])
        gg_r = jnp.tanh(g_r[:, 2 * Hp:3 * Hp])
        o_r = jax.nn.sigmoid(g_r[:, 3 * Hp:4 * Hp])
        c_r_new = f_r * c_r + i_r * gg_r
        h_r_new = o_r * jnp.tanh(c_r_new)

        if has_pad:
            # Padded timesteps (global time >= t_real) must be a no-op for the
            # reverse direction (they precede all real steps in its ordering).
            valid_r = ((n_chunks - 1 - i_chunk) * chunk + tr) < t_real
            c_r_new = jnp.where(valid_r, c_r_new, c_r)
            h_r_new = jnp.where(valid_r, h_r_new, h_cat[:, Hp:])

        outf_ref[t] = h_f_new.astype(outf_ref.dtype)
        outr_ref[tr] = h_r_new.astype(outr_ref.dtype)

        h_cat_new = jnp.concatenate([h_f_new, h_r_new], axis=-1)
        return h_cat_new, c_f_new, c_r_new

    def body(k, carry):
        t0 = k * unroll
        for u in range(unroll):                      # modest static unroll
            carry = one_step(t0 + u, carry)
        return carry

    carry0 = (h_sc[...], cf_sc[...], cr_sc[...])
    h_fin, cf_fin, cr_fin = jax.lax.fori_loop(0, C // unroll, body, carry0)

    # Flush chunk-final state once (instead of per-step scratch round-trips).
    h_sc[...] = h_fin
    cf_sc[...] = cf_fin
    cr_sc[...] = cr_fin


# ----------------------------------------------------------------------------
# VMEM budget / chunk selection helpers.
# ----------------------------------------------------------------------------
def _vmem_limit_bytes():
    cap = 64 * 1024 * 1024
    try:
        info = pltpu.get_tpu_info()
        cap = int(getattr(info, "vmem_capacity_bytes", cap))
    except Exception:
        pass
    # Leave headroom for compiler-internal scratch / pipeline buffers.
    limit = max(cap - 16 * 1024 * 1024, 32 * 1024 * 1024)
    return min(limit, 112 * 1024 * 1024)


def _select_chunk(T, Bp, Din, Hp, act_bytes, w_bytes, budget, max_chunk=256):
    fixed = (2 * Din * 4 * Hp * w_bytes            # W_ih fwd+rev (Buffered(1))
             + (2 * Hp) * (8 * Hp) * w_bytes       # block-diag W_hh
             + 2 * 4 * Hp * 4                      # biases
             + (2 * Hp + 2 * Hp) * Bp * 4)         # h/c carry scratch
    per_c = (2 * 2 * Bp * Din * act_bytes          # x fwd+rev, double-buffered
             + 2 * 2 * Bp * Hp * act_bytes         # out fwd+rev, double-buffered
             + 2 * Bp * 4 * Hp * 4)                # hoisted-gate scratch (f32)
    avail = max(budget - fixed, per_c)
    c = max(1, min(max_chunk, T, avail // per_c))
    if c >= 4:
        c -= c % 4                                 # keep the unroll clean
    return int(c)


def _resident_spec(shape):
    """Constant-index block that should be single-buffered (weights/bias)."""
    idx = lambda i: (0,) * len(shape)
    try:
        return pl.BlockSpec(shape, idx, pipeline_mode=pl.Buffered(1))
    except TypeError:  # older jax without pipeline_mode
        return pl.BlockSpec(shape, idx)


# ----------------------------------------------------------------------------
# Per-layer wrapper: grid over sequence chunks.
# x_tbd: (T, Bp, Din) act_dtype  ->  (T, Bp, 2Hp) act_dtype
# ----------------------------------------------------------------------------
def _run_bdlstm_layer(x_tbd, prepped, *, Hp, seq_chunk, mxu_dtype, act_dtype,
                      vmem_limit):
    T, Bp, Din = x_tbd.shape
    wihf, wihr, whh_cat, b_f, b_r = prepped
    act_bytes = jnp.dtype(act_dtype).itemsize
    w_bytes = jnp.dtype(mxu_dtype).itemsize

    if seq_chunk is None:
        C = _select_chunk(T, Bp, Din, Hp, act_bytes, w_bytes,
                          budget=int(vmem_limit * 0.7))
    else:
        C = max(1, min(int(seq_chunk), T))
    N = -(-T // C)
    T_pad = N * C
    has_pad = T_pad != T
    if has_pad:
        x_tbd = jnp.pad(x_tbd, ((0, T_pad - T), (0, 0), (0, 0)))
    unroll = 4 if C % 4 == 0 else (2 if C % 2 == 0 else 1)

    kernel = functools.partial(
        _bdlstm_layer_kernel, mxu_dtype=mxu_dtype, unroll=unroll, hp=Hp,
        n_chunks=N, chunk=C, t_real=T, has_pad=has_pad)

    flops = (2 * 2 * T_pad * Bp * Din * 4 * Hp          # hoisted projections
             + 2 * T_pad * Bp * (2 * Hp) * (8 * Hp))    # fused recurrent matmul
    transcendentals = 10 * T_pad * Bp * Hp
    bytes_accessed = (2 * T_pad * Bp * Din * act_bytes
                      + 2 * T_pad * Bp * Hp * act_bytes
                      + 2 * Din * 4 * Hp * w_bytes
                      + (2 * Hp) * (8 * Hp) * w_bytes)

    grid_spec = pltpu.PrefetchScalarGridSpec(
        num_scalar_prefetch=0,
        grid=(N,),
        in_specs=[
            # x chunk i (forward stream) / mirrored chunk N-1-i (reverse).
            pl.BlockSpec((C, Bp, Din), lambda i: (i, 0, 0)),
            pl.BlockSpec((C, Bp, Din), lambda i: (N - 1 - i, 0, 0)),
            # Weights / biases stay VMEM-resident, single-buffered.
            _resident_spec((Din, 4 * Hp)),
            _resident_spec((Din, 4 * Hp)),
            _resident_spec((2 * Hp, 8 * Hp)),
            _resident_spec((1, 4 * Hp)),
            _resident_spec((1, 4 * Hp)),
        ],
        out_specs=[
            pl.BlockSpec((C, Bp, Hp), lambda i: (i, 0, 0)),
            pl.BlockSpec((C, Bp, Hp), lambda i: (N - 1 - i, 0, 0)),
        ],
        scratch_shapes=[
            pltpu.VMEM((Bp, 2 * Hp), jnp.float32),        # [h_f | h_r]
            pltpu.VMEM((Bp, Hp), jnp.float32),            # c forward
            pltpu.VMEM((Bp, Hp), jnp.float32),            # c reverse
            pltpu.VMEM((C, Bp, 4 * Hp), jnp.float32),     # hoisted gates fwd
            pltpu.VMEM((C, Bp, 4 * Hp), jnp.float32),     # hoisted gates rev
        ],
    )

    out_f, out_r = pl.pallas_call(
        kernel,
        out_shape=(jax.ShapeDtypeStruct((T_pad, Bp, Hp), act_dtype),
                   jax.ShapeDtypeStruct((T_pad, Bp, Hp), act_dtype)),
        grid_spec=grid_spec,
        compiler_params=pltpu.CompilerParams(
            dimension_semantics=("arbitrary",),           # recurrence over chunks
            vmem_limit_bytes=int(vmem_limit),
        ),
        cost_estimate=pl.CostEstimate(flops=int(flops),
                                      transcendentals=int(transcendentals),
                                      bytes_accessed=int(bytes_accessed)),
    )(x_tbd, x_tbd, wihf, wihr, whh_cat, b_f, b_r)

    if has_pad:
        out_f = out_f[:T]
        out_r = out_r[:T]
    # TODO(synk): feed out_f/out_r separately into the next layer (row-split
    # W_ih) to skip this HBM concat copy entirely.
    return jnp.concatenate([out_f, out_r], axis=-1)


# ----------------------------------------------------------------------------
# Parameter construction (raw PyTorch nn.LSTM shapes) and layout preparation.
# ----------------------------------------------------------------------------
def init_bdlstm_params(key, input_size, hidden_size, num_layers):
    params = []
    k = 1.0 / (hidden_size ** 0.5)
    for layer in range(num_layers):
        d_in = input_size if layer == 0 else 2 * hidden_size
        dirs = []
        for _ in range(2):  # forward, reverse
            key, k1, k2, k3, k4 = jax.random.split(key, 5)
            w_ih = jax.random.uniform(k1, (4 * hidden_size, d_in), jnp.float32, -k, k)
            w_hh = jax.random.uniform(k2, (4 * hidden_size, hidden_size), jnp.float32, -k, k)
            b_ih = jax.random.uniform(k3, (4 * hidden_size,), jnp.float32, -k, k)
            b_hh = jax.random.uniform(k4, (4 * hidden_size,), jnp.float32, -k, k)
            dirs.append((w_ih, w_hh, b_ih, b_hh))
        params.append(tuple(dirs))
    return params


def _pad_gate_cols(w, H, Hp):
    """(rows, 4H) -> (rows, 4Hp): zero-pad each gate block from H to Hp."""
    if Hp == H:
        return w
    rows = w.shape[0]
    w4 = w.reshape(rows, 4, H)
    w4 = jnp.pad(w4, ((0, 0), (0, 0), (0, Hp - H)))
    return w4.reshape(rows, 4 * Hp)


def _embed_rows_bidir(wt, H, Hp):
    """(2H, cols) -> (2Hp, cols): fwd-h rows at 0:H, rev-h rows at Hp:Hp+H."""
    if Hp == H:
        return wt
    cols = wt.shape[1]
    out = jnp.zeros((2 * Hp, cols), wt.dtype)
    out = out.at[0:H, :].set(wt[0:H]).at[Hp:Hp + H, :].set(wt[H:2 * H])
    return out


def _prepare_layer(fwd, rev, layer_idx, H, Hp, mxu_dtype):
    def prep_dir(w_ih, w_hh, b_ih, b_hh):
        wih_t = _pad_gate_cols(w_ih.T, H, Hp)                     # (Din, 4Hp)
        if layer_idx > 0:
            wih_t = _embed_rows_bidir(wih_t, H, Hp)               # (2Hp, 4Hp)
        whh_t = _pad_gate_cols(w_hh.T, H, Hp)
        whh_t = jnp.pad(whh_t, ((0, Hp - H), (0, 0)))             # (Hp, 4Hp)
        b = _pad_gate_cols((b_ih + b_hh)[None, :], H, Hp)         # (1, 4Hp)
        return (wih_t.astype(mxu_dtype), whh_t.astype(mxu_dtype),
                b.astype(jnp.float32))

    wihf, whhf, b_f = prep_dir(*fwd)
    wihr, whhr, b_r = prep_dir(*rev)
    zeros = jnp.zeros((Hp, 4 * Hp), whhf.dtype)
    whh_cat = jnp.concatenate(
        [jnp.concatenate([whhf, zeros], axis=1),
         jnp.concatenate([zeros, whhr], axis=1)], axis=0)         # (2Hp, 8Hp)
    return wihf, wihr, whh_cat.astype(mxu_dtype), b_f, b_r


def encoder_bdlstm(x, params, *, seq_chunk=None, mxu_dtype=jnp.bfloat16):
    """Forward pass of EncoderBdLSTM.

    x: (B, T, input_size) (batch_first=True).  Returns (B, T, 2*hidden_size).
    """
    B, T, _ = x.shape
    H = params[0][0][1].shape[1]
    Hp = _round_up(H, 128)                      # lane-dense hidden columns
    Bp = _round_up(B, 8)                        # full sublanes
    act_dtype = (jnp.bfloat16 if jnp.dtype(mxu_dtype) == jnp.dtype(jnp.bfloat16)
                 else jnp.float32)
    vmem_limit = _vmem_limit_bytes()

    layer_in = jnp.transpose(x, (1, 0, 2)).astype(act_dtype)      # (T, B, D)
    if Bp != B:
        layer_in = jnp.pad(layer_in, ((0, 0), (0, Bp - B), (0, 0)))

    for li, (fwd, rev) in enumerate(params):
        prepped = _prepare_layer(fwd, rev, li, H, Hp, mxu_dtype)
        layer_in = _run_bdlstm_layer(layer_in, prepped, Hp=Hp,
                                     seq_chunk=seq_chunk, mxu_dtype=mxu_dtype,
                                     act_dtype=act_dtype, vmem_limit=vmem_limit)

    out = jnp.transpose(layer_in, (1, 0, 2))[:B]                  # (B, T, 2Hp)
    out = jnp.concatenate([out[..., :H], out[..., Hp:Hp + H]], axis=-1)
    return out.astype(jnp.float32)


# ----------------------------------------------------------------------------
# Pure-JAX reference with matching precision choices (correctness check).
# ----------------------------------------------------------------------------
def _ref_lstm_direction(x_tbd, w_ih, w_hh, b_ih, b_hh, mxu_dtype):
    T, B, D = x_tbd.shape
    H = w_hh.shape[1]
    wih_t = w_ih.T.astype(mxu_dtype)
    whh_t = w_hh.T.astype(mxu_dtype)
    b = (b_ih + b_hh)[None, :].astype(jnp.float32)
    hi = jax.lax.Precision.HIGHEST
    gx = (jnp.dot(x_tbd.reshape(T * B, D).astype(mxu_dtype), wih_t,
                  preferred_element_type=jnp.float32,
                  precision=hi).reshape(T, B, 4 * H) + b)

    def step(carry, gx_t):
        h, c = carry
        g = gx_t + jnp.dot(h.astype(mxu_dtype), whh_t,
                           preferred_element_type=jnp.float32, precision=hi)
        i = jax.nn.sigmoid(g[:, 0:H])
        f = jax.nn.sigmoid(g[:, H:2 * H])
        gg = jnp.tanh(g[:, 2 * H:3 * H])
        o = jax.nn.sigmoid(g[:, 3 * H:4 * H])
        c = f * c + i * gg
        h = o * jnp.tanh(c)
        return (h, c), h

    init = (jnp.zeros((B, H), jnp.float32), jnp.zeros((B, H), jnp.float32))
    _, hs = jax.lax.scan(step, init, gx)
    return hs


def encoder_bdlstm_ref(x, params, *, mxu_dtype=jnp.bfloat16):
    act_dtype = (jnp.bfloat16 if jnp.dtype(mxu_dtype) == jnp.dtype(jnp.bfloat16)
                 else jnp.float32)
    layer_in = jnp.transpose(x, (1, 0, 2)).astype(act_dtype)
    for fwd, rev in params:
        out_f = _ref_lstm_direction(layer_in, *fwd, mxu_dtype=mxu_dtype)
        out_r = _ref_lstm_direction(layer_in[::-1], *rev, mxu_dtype=mxu_dtype)[::-1]
        layer_in = jnp.concatenate([out_f, out_r], axis=-1).astype(act_dtype)
    return jnp.transpose(layer_in, (1, 0, 2)).astype(jnp.float32)


if __name__ == "__main__":
    batch, seq, input_size, hidden_size, num_layers = 2, 8, 16, 32, 2

    key = jax.random.PRNGKey(0)
    kx, kp = jax.random.split(key)
    x = jax.random.normal(kx, (batch, seq, input_size), jnp.float32)
    params = init_bdlstm_params(kp, input_size, hidden_size, num_layers)

    # f32 MXU path, multi-chunk grid (exercises cross-chunk state carry).
    pred_f32 = jax.block_until_ready(
        encoder_bdlstm(x, params, seq_chunk=4, mxu_dtype=jnp.float32))
    assert pred_f32.shape == (batch, seq, 2 * hidden_size), pred_f32.shape
    ref_f32 = jax.block_until_ready(
        encoder_bdlstm_ref(x, params, mxu_dtype=jnp.float32))
    assert jnp.allclose(pred_f32, ref_f32, atol=1e-2, rtol=1e-2), "f32 mismatch"

    # bf16 MXU + bf16 activations (default fast path), auto chunk selection.
    pred_bf16 = jax.block_until_ready(
        encoder_bdlstm(x, params, mxu_dtype=jnp.bfloat16))
    assert pred_bf16.shape == (batch, seq, 2 * hidden_size), pred_bf16.shape
    ref_bf16 = jax.block_until_ready(
        encoder_bdlstm_ref(x, params, mxu_dtype=jnp.bfloat16))
    assert jnp.allclose(pred_bf16, ref_bf16, atol=2e-2, rtol=2e-2), "bf16 mismatch"

    # Ragged T (exercises T padding + reverse-direction masking).
    x7 = x[:, :7]
    pred7 = jax.block_until_ready(
        encoder_bdlstm(x7, params, seq_chunk=4, mxu_dtype=jnp.float32))
    assert pred7.shape == (batch, 7, 2 * hidden_size), pred7.shape
    ref7 = jax.block_until_ready(
        encoder_bdlstm_ref(x7, params, mxu_dtype=jnp.float32))
    assert jnp.allclose(pred7, ref7, atol=1e-2, rtol=1e-2), "ragged-T mismatch"

    print("KERNEL_OK")
</pallas_src>

<mosaic_0001>
module attributes {stable_mosaic.version = 11 : i64} {
  func.func @_bdlstm_layer_kernel(%arg0: i32, %arg1: memref<4x8x16xf32, #tpu.memory_space<vmem>>, %arg2: memref<4x8x16xf32, #tpu.memory_space<vmem>>, %arg3: memref<16x512xf32, #tpu.memory_space<vmem>>, %arg4: memref<16x512xf32, #tpu.memory_space<vmem>>, %arg5: memref<256x1024xf32, #tpu.memory_space<vmem>>, %arg6: memref<1x512xf32, #tpu.memory_space<vmem>>, %arg7: memref<1x512xf32, #tpu.memory_space<vmem>>, %arg8: memref<4x8x128xf32, #tpu.memory_space<vmem>>, %arg9: memref<4x8x128xf32, #tpu.memory_space<vmem>>, %arg10: memref<8x256xf32, #tpu.memory_space<vmem>>, %arg11: memref<8x128xf32, #tpu.memory_space<vmem>>, %arg12: memref<8x128xf32, #tpu.memory_space<vmem>>, %arg13: memref<4x8x512xf32, #tpu.memory_space<vmem>>, %arg14: memref<4x8x512xf32, #tpu.memory_space<vmem>>) attributes {dimension_semantics = [#tpu.dimension_semantics<arbitrary>], iteration_bounds = array<i64: 2>, scalar_prefetch = 0 : i64, scratch_operands = 5 : i64, tpu.core_type = #tpu.core_type<tc>, window_params = [{transform_indices = @transform_0, window_bounds = array<i64: 4, 8, 16>}, {transform_indices = @transform_1, window_bounds = array<i64: 4, 8, 16>}, {pipeline_mode = #tpu.pipeline_mode<synchronous>, transform_indices = @transform_2, window_bounds = array<i64: 16, 512>}, {pipeline_mode = #tpu.pipeline_mode<synchronous>, transform_indices = @transform_3, window_bounds = array<i64: 16, 512>}, {pipeline_mode = #tpu.pipeline_mode<synchronous>, transform_indices = @transform_4, window_bounds = array<i64: 256, 1024>}, {pipeline_mode = #tpu.pipeline_mode<synchronous>, transform_indices = @transform_5, window_bounds = array<i64: 1, 512>}, {pipeline_mode = #tpu.pipeline_mode<synchronous>, transform_indices = @transform_6, window_bounds = array<i64: 1, 512>}, {transform_indices = @transform_7, window_bounds = array<i64: 4, 8, 128>}, {transform_indices = @transform_8, window_bounds = array<i64: 4, 8, 128>}]} {
    %c0_i32 = arith.constant 0 : i32
    %0 = arith.cmpi eq, %arg0, %c0_i32 : i32
    %1 = arith.extui %0 : i1 to i32
    %c0_i32_0 = arith.constant 0 : i32
    %2 = arith.cmpi ne, %1, %c0_i32_0 : i32
    scf.if %2 {
      %cst_108 = arith.constant 0.000000e+00 : f32
      %320 = vector.broadcast %cst_108 : f32 to vector<8x256xf32>
      %c0_109 = arith.constant 0 : index
      %c0_110 = arith.constant 0 : index
      %321 = vector.load %arg10[%c0_109, %c0_110] : memref<8x256xf32, #tpu.memory_space<vmem>>, vector<8x256xf32>
      tpu.vector_store %arg10[%c0_109, %c0_110], %320 {strides = array<i32>} : memref<8x256xf32, #tpu.memory_space<vmem>>, vector<8x256xf32>,
      %cst_111 = arith.constant 0.000000e+00 : f32
      %322 = vector.broadcast %cst_111 : f32 to vector<8x128xf32>
      %c0_112 = arith.constant 0 : index
      %c0_113 = arith.constant 0 : index
      %323 = vector.load %arg11[%c0_112, %c0_113] : memref<8x128xf32, #tpu.memory_space<vmem>>, vector<8x128xf32>
      tpu.vector_store %arg11[%c0_112, %c0_113], %322 {strides = array<i32>} : memref<8x128xf32, #tpu.memory_space<vmem>>, vector<8x128xf32>,
      %cst_114 = arith.constant 0.000000e+00 : f32
      %324 = vector.broadcast %cst_114 : f32 to vector<8x128xf32>
      %c0_115 = arith.constant 0 : index
      %c0_116 = arith.constant 0 : index
      %325 = vector.load %arg12[%c0_115, %c0_116] : memref<8x128xf32, #tpu.memory_space<vmem>>, vector<8x128xf32>
      tpu.vector_store %arg12[%c0_115, %c0_116], %324 {strides = array<i32>} : memref<8x128xf32, #tpu.memory_space<vmem>>, vector<8x128xf32>,
    } else {
    }
    %c0 = arith.constant 0 : index
    %c0_1 = arith.constant 0 : index
    %c0_2 = arith.constant 0 : index
    %3 = vector.load %arg1[%c0, %c0_1, %c0_2] : memref<4x8x16xf32, #tpu.memory_space<vmem>>, vector<4x8x16xf32>
    %4 = vector.shape_cast %3 : vector<4x8x16xf32> to vector<32x16xf32>
    %c0_3 = arith.constant 0 : index
    %c0_4 = arith.constant 0 : index
    %c0_5 = arith.constant 0 : index
    %5 = vector.load %arg2[%c0_3, %c0_4, %c0_5] : memref<4x8x16xf32, #tpu.memory_space<vmem>>, vector<4x8x16xf32>
    %6 = vector.shape_cast %5 : vector<4x8x16xf32> to vector<32x16xf32>
    %c0_6 = arith.constant 0 : index
    %c0_7 = arith.constant 0 : index
    %7 = vector.load %arg3[%c0_6, %c0_7] : memref<16x512xf32, #tpu.memory_space<vmem>>, vector<16x512xf32>
    %cst = arith.constant dense<0.000000e+00> : vector<32x512xf32>
    %8 = tpu.matmul %4, %7, %cst {dimension_numbers = #tpu.dot_dimension_numbers<[1], [0], [0], [1], [0, 0, 1, 1], [], []>} : vector<32x16xf32>, vector<16x512xf32>, vector<32x512xf32> -> vector<32x512xf32>
    %c0_8 = arith.constant 0 : index
    %c0_9 = arith.constant 0 : index
    %9 = vector.load %arg6[%c0_8, %c0_9] : memref<1x512xf32, #tpu.memory_space<vmem>>, vector<1x512xf32>
    %10 = vector.broadcast %9 : vector<1x512xf32> to vector<32x512xf32>
    %11 = arith.addf %8, %10 : vector<32x512xf32>
    %12 = vector.shape_cast %11 : vector<32x512xf32> to vector<4x8x512xf32>
    %c0_10 = arith.constant 0 : index
    %c0_11 = arith.constant 0 : index
    %c0_12 = arith.constant 0 : index
    %13 = vector.load %arg13[%c0_10, %c0_11, %c0_12] : memref<4x8x512xf32, #tpu.memory_space<vmem>>, vector<4x8x512xf32>
    tpu.vector_store %arg13[%c0_10, %c0_11, %c0_12], %12 {strides = array<i32>} : memref<4x8x512xf32, #tpu.memory_space<vmem>>, vector<4x8x512xf32>,
    %c0_13 = arith.constant 0 : index
    %c0_14 = arith.constant 0 : index
    %14 = vector.load %arg4[%c0_13, %c0_14] : memref<16x512xf32, #tpu.memory_space<vmem>>, vector<16x512xf32>
    %cst_15 = arith.constant dense<0.000000e+00> : vector<32x512xf32>
    %15 = tpu.matmul %6, %14, %cst_15 {dimension_numbers = #tpu.dot_dimension_numbers<[1], [0], [0], [1], [0, 0, 1, 1], [], []>} : vector<32x16xf32>, vector<16x512xf32>, vector<32x512xf32> -> vector<32x512xf32>
    %c0_16 = arith.constant 0 : index
    %c0_17 = arith.constant 0 : index
    %16 = vector.load %arg7[%c0_16, %c0_17] : memref<1x512xf32, #tpu.memory_space<vmem>>, vector<1x512xf32>
    %17 = vector.broadcast %16 : vector<1x512xf32> to vector<32x512xf32>
    %18 = arith.addf %15, %17 : vector<32x512xf32>
    %19 = vector.shape_cast %18 : vector<32x512xf32> to vector<4x8x512xf32>
    %c0_18 = arith.constant 0 : index
    %c0_19 = arith.constant 0 : index
    %c0_20 = arith.constant 0 : index
    %20 = vector.load %arg14[%c0_18, %c0_19, %c0_20] : memref<4x8x512xf32, #tpu.memory_space<vmem>>, vector<4x8x512xf32>
    tpu.vector_store %arg14[%c0_18, %c0_19, %c0_20], %19 {strides = array<i32>} : memref<4x8x512xf32, #tpu.memory_space<vmem>>, vector<4x8x512xf32>,
    %c0_21 = arith.constant 0 : index
    %c0_22 = arith.constant 0 : index
    %21 = vector.load %arg10[%c0_21, %c0_22] : memref<8x256xf32, #tpu.memory_space<vmem>>, vector<8x256xf32>
    %c0_23 = arith.constant 0 : index
    %c0_24 = arith.constant 0 : index
    %22 = vector.load %arg11[%c0_23, %c0_24] : memref<8x128xf32, #tpu.memory_space<vmem>>, vector<8x128xf32>
    %c0_25 = arith.constant 0 : index
    %c0_26 = arith.constant 0 : index
    %23 = vector.load %arg12[%c0_25, %c0_26] : memref<8x128xf32, #tpu.memory_space<vmem>>, vector<8x128xf32>
    %c0_i32_27 = arith.constant 0 : i32
    %c4_i32 = arith.constant 4 : i32
    %24 = arith.muli %c0_i32_27, %c4_i32 : i32
    %c0_i32_28 = arith.constant 0 : i32
    %25 = arith.addi %24, %c0_i32_28 : i32
    %c0_29 = arith.constant 0 : index
    %c0_30 = arith.constant 0 : index
    %26 = vector.load %arg5[%c0_29, %c0_30] : memref<256x1024xf32, #tpu.memory_space<vmem>>, vector<256x1024xf32>
    %cst_31 = arith.constant dense<0.000000e+00> : vector<8x1024xf32>
    %27 = tpu.matmul %21, %26, %cst_31 {dimension_numbers = #tpu.dot_dimension_numbers<[1], [0], [0], [1], [0, 0, 1, 1], [], []>} : vector<8x256xf32>, vector<256x1024xf32>, vector<8x1024xf32> -> vector<8x1024xf32>
    %c3_i32 = arith.constant 3 : i32
    %28 = arith.subi %c3_i32, %25 : i32
    %29 = arith.index_cast %25 : i32 to index
    %c0_32 = arith.constant 0 : index
    %c0_33 = arith.constant 0 : index
    %30 = vector.load %arg13[%29, %c0_32, %c0_33] : memref<4x8x512xf32, #tpu.memory_space<vmem>>, vector<1x8x512xf32>
    %31 = vector.shape_cast %30 : vector<1x8x512xf32> to vector<8x512xf32>
    %32 = vector.extract_strided_slice %27 {offsets = [0, 0], sizes = [8, 512], strides = [1, 1]} : vector<8x1024xf32> to vector<8x512xf32>
    %33 = arith.addf %31, %32 : vector<8x512xf32>
    %34 = arith.index_cast %28 : i32 to index
    %c0_34 = arith.constant 0 : index
    %c0_35 = arith.constant 0 : index
    %35 = vector.load %arg14[%34, %c0_34, %c0_35] : memref<4x8x512xf32, #tpu.memory_space<vmem>>, vector<1x8x512xf32>
    %36 = vector.shape_cast %35 : vector<1x8x512xf32> to vector<8x512xf32>
    %37 = vector.extract_strided_slice %27 {offsets = [0, 512], sizes = [8, 512], strides = [1, 1]} : vector<8x1024xf32> to vector<8x512xf32>
    %38 = arith.addf %36, %37 : vector<8x512xf32>
    %39 = vector.extract_strided_slice %33 {offsets = [0, 0], sizes = [8, 128], strides = [1, 1]} : vector<8x512xf32> to vector<8x128xf32>
    %40 = arith.negf %39 : vector<8x128xf32>
    %41 = math.exp %40 : vector<8x128xf32>
    %cst_36 = arith.constant 1.000000e+00 : f32
    %42 = vector.broadcast %cst_36 : f32 to vector<8x128xf32>
    %43 = arith.addf %42, %41 : vector<8x128xf32>
    %44 = arith.divf %42, %43 : vector<8x128xf32>
    %45 = vector.extract_strided_slice %33 {offsets = [0, 128], sizes = [8, 128], strides = [1, 1]} : vector<8x512xf32> to vector<8x128xf32>
    %46 = arith.negf %45 : vector<8x128xf32>
    %47 = math.exp %46 : vector<8x128xf32>
    %cst_37 = arith.constant 1.000000e+00 : f32
    %48 = vector.broadcast %cst_37 : f32 to vector<8x128xf32>
    %49 = arith.addf %48, %47 : vector<8x128xf32>
    %50 = arith.divf %48, %49 : vector<8x128xf32>
    %51 = vector.extract_strided_slice %33 {offsets = [0, 256], sizes = [8, 128], strides = [1, 1]} : vector<8x512xf32> to vector<8x128xf32>
    %52 = math.tanh %51 : vector<8x128xf32>
    %53 = vector.extract_strided_slice %33 {offsets = [0, 384], sizes = [8, 128], strides = [1, 1]} : vector<8x512xf32> to vector<8x128xf32>
    %54 = arith.negf %53 : vector<8x128xf32>
    %55 = math.exp %54 : vector<8x128xf32>
    %cst_38 = arith.constant 1.000000e+00 : f32
    %56 = vector.broadcast %cst_38 : f32 to vector<8x128xf32>
    %57 = arith.addf %56, %55 : vector<8x128xf32>
    %58 = arith.divf %56, %57 : vector<8x128xf32>
    %59 = arith.mulf %50, %22 : vector<8x128xf32>
    %60 = arith.mulf %44, %52 : vector<8x128xf32>
    %61 = arith.addf %59, %60 : vector<8x128xf32>
    %62 = math.tanh %61 : vector<8x128xf32>
    %63 = arith.mulf %58, %62 : vector<8x128xf32>
    %64 = vector.extract_strided_slice %38 {offsets = [0, 0], sizes = [8, 128], strides = [1, 1]} : vector<8x512xf32> to vector<8x128xf32>
    %65 = arith.negf %64 : vector<8x128xf32>
    %66 = math.exp %65 : vector<8x128xf32>
    %cst_39 = arith.constant 1.000000e+00 : f32
    %67 = vector.broadcast %cst_39 : f32 to vector<8x128xf32>
    %68 = arith.addf %67, %66 : vector<8x128xf32>
    %69 = arith.divf %67, %68 : vector<8x128xf32>
    %70 = vector.extract_strided_slice %38 {offsets = [0, 128], sizes = [8, 128], strides = [1, 1]} : vector<8x512xf32> to vector<8x128xf32>
    %71 = arith.negf %70 : vector<8x128xf32>
    %72 = math.exp %71 : vector<8x128xf32>
    %cst_40 = arith.constant 1.000000e+00 : f32
    %73 = vector.broadcast %cst_40 : f32 to vector<8x128xf32>
    %74 = arith.addf %73, %72 : vector<8x128xf32>
    %75 = arith.divf %73, %74 : vector<8x128xf32>
    %76 = vector.extract_strided_slice %38 {offsets = [0, 256], sizes = [8, 128], strides = [1, 1]} : vector<8x512xf32> to vector<8x128xf32>
    %77 = math.tanh %76 : vector<8x128xf32>
    %78 = vector.extract_strided_slice %38 {offsets = [0, 384], sizes = [8, 128], strides = [1, 1]} : vector<8x512xf32> to vector<8x128xf32>
    %79 = arith.negf %78 : vector<8x128xf32>
    %80 = math.exp %79 : vector<8x128xf32>
    %cst_41 = arith.constant 1.000000e+00 : f32
    %81 = vector.broadcast %cst_41 : f32 to vector<8x128xf32>
    %82 = arith.addf %81, %80 : vector<8x128xf32>
    %83 = arith.divf %81, %82 : vector<8x128xf32>
    %84 = arith.mulf %75, %23 : vector<8x128xf32>
    %85 = arith.mulf %69, %77 : vector<8x128xf32>
    %86 = arith.addf %84, %85 : vector<8x128xf32>
    %87 = math.tanh %86 : vector<8x128xf32>
    %88 = arith.mulf %83, %87 : vector<8x128xf32>
    %89 = arith.index_cast %25 : i32 to index
    %c0_42 = arith.constant 0 : index
    %c0_43 = arith.constant 0 : index
    %90 = vector.load %arg8[%89, %c0_42, %c0_43] : memref<4x8x128xf32, #tpu.memory_space<vmem>>, vector<1x8x128xf32>
    %91 = vector.shape_cast %90 : vector<1x8x128xf32> to vector<8x128xf32>
    %92 = vector.shape_cast %63 : vector<8x128xf32> to vector<1x8x128xf32>
    tpu.vector_store %arg8[%89, %c0_42, %c0_43], %92 {strides = array<i32>} : memref<4x8x128xf32, #tpu.memory_space<vmem>>, vector<1x8x128xf32>,
    %93 = arith.index_cast %28 : i32 to index
    %c0_44 = arith.constant 0 : index
    %c0_45 = arith.constant 0 : index
    %94 = vector.load %arg9[%93, %c0_44, %c0_45] : memref<4x8x128xf32, #tpu.memory_space<vmem>>, vector<1x8x128xf32>
    %95 = vector.shape_cast %94 : vector<1x8x128xf32> to vector<8x128xf32>
    %96 = vector.shape_cast %88 : vector<8x128xf32> to vector<1x8x128xf32>
    tpu.vector_store %arg9[%93, %c0_44, %c0_45], %96 {strides = array<i32>} : memref<4x8x128xf32, #tpu.memory_space<vmem>>, vector<1x8x128xf32>,
    %97 = tpu.concatenate %63, %88 in 1 : vector<8x128xf32>, vector<8x128xf32> -> vector<8x256xf32>
    %c1_i32 = arith.constant 1 : i32
    %98 = arith.addi %24, %c1_i32 : i32
    %c0_46 = arith.constant 0 : index
    %c0_47 = arith.constant 0 : index
    %99 = vector.load %arg5[%c0_46, %c0_47] : memref<256x1024xf32, #tpu.memory_space<vmem>>, vector<256x1024xf32>
    %cst_48 = arith.constant dense<0.000000e+00> : vector<8x1024xf32>
    %100 = tpu.matmul %97, %99, %cst_48 {dimension_numbers = #tpu.dot_dimension_numbers<[1], [0], [0], [1], [0, 0, 1, 1], [], []>} : vector<8x256xf32>, vector<256x1024xf32>, vector<8x1024xf32> -> vector<8x1024xf32>
    %c3_i32_49 = arith.constant 3 : i32
    %101 = arith.subi %c3_i32_49, %98 : i32
    %102 = arith.index_cast %98 : i32 to index
    %c0_50 = arith.constant 0 : index
    %c0_51 = arith.constant 0 : index
    %103 = vector.load %arg13[%102, %c0_50, %c0_51] : memref<4x8x512xf32, #tpu.memory_space<vmem>>, vector<1x8x512xf32>
    %104 = vector.shape_cast %103 : vector<1x8x512xf32> to vector<8x512xf32>
    %105 = vector.extract_strided_slice %100 {offsets = [0, 0], sizes = [8, 512], strides = [1, 1]} : vector<8x1024xf32> to vector<8x512xf32>
    %106 = arith.addf %104, %105 : vector<8x512xf32>
    %107 = arith.index_cast %101 : i32 to index
    %c0_52 = arith.constant 0 : index
    %c0_53 = arith.constant 0 : index
    %108 = vector.load %arg14[%107, %c0_52, %c0_53] : memref<4x8x512xf32, #tpu.memory_space<vmem>>, vector<1x8x512xf32>
    %109 = vector.shape_cast %108 : vector<1x8x512xf32> to vector<8x512xf32>
    %110 = vector.extract_strided_slice %100 {offsets = [0, 512], sizes = [8, 512], strides = [1, 1]} : vector<8x1024xf32> to vector<8x512xf32>
    %111 = arith.addf %109, %110 : vector<8x512xf32>
    %112 = vector.extract_strided_slice %106 {offsets = [0, 0], sizes = [8, 128], strides = [1, 1]} : vector<8x512xf32> to vector<8x128xf32>
    %113 = arith.negf %112 : vector<8x128xf32>
    %114 = math.exp %113 : vector<8x128xf32>
    %cst_54 = arith.constant 1.000000e+00 : f32
    %115 = vector.broadcast %cst_54 : f32 to vector<8x128xf32>
    %116 = arith.addf %115, %114 : vector<8x128xf32>
    %117 = arith.divf %115, %116 : vector<8x128xf32>
    %118 = vector.extract_strided_slice %106 {offsets = [0, 128], sizes = [8, 128], strides = [1, 1]} : vector<8x512xf32> to vector<8x128xf32>
    %119 = arith.negf %118 : vector<8x128xf32>
    %120 = math.exp %119 : vector<8x128xf32>
    %cst_55 = arith.constant 1.000000e+00 : f32
    %121 = vector.broadcast %cst_55 : f32 to vector<8x128xf32>
    %122 = arith.addf %121, %120 : vector<8x128xf32>
    %123 = arith.divf %121, %122 : vector<8x128xf32>
    %124 = vector.extract_strided_slice %106 {offsets = [0, 256], sizes = [8, 128], strides = [1, 1]} : vector<8x512xf32> to vector<8x128xf32>
    %125 = math.tanh %124 : vector<8x128xf32>
    %126 = vector.extract_strided_slice %106 {offsets = [0, 384], sizes = [8, 128], strides = [1, 1]} : vector<8x512xf32> to vector<8x128xf32>
    %127 = arith.negf %126 : vector<8x128xf32>
    %128 = math.exp %127 : vector<8x128xf32>
    %cst_56 = arith.constant 1.000000e+00 : f32
    %129 = vector.broadcast %cst_56 : f32 to vector<8x128xf32>
    %130 = arith.addf %129, %128 : vector<8x128xf32>
    %131 = arith.divf %129, %130 : vector<8x128xf32>
    %132 = arith.mulf %123, %61 : vector<8x128xf32>
    %133 = arith.mulf %117, %125 : vector<8x128xf32>
    %134 = arith.addf %132, %133 : vector<8x128xf32>
    %135 = math.tanh %134 : vector<8x128xf32>
    %136 = arith.mulf %131, %135 : vector<8x128xf32>
    %137 = vector.extract_strided_slice %111 {offsets = [0, 0], sizes = [8, 128], strides = [1, 1]} : vector<8x512xf32> to vector<8x128xf32>
    %138 = arith.negf %137 : vector<8x128xf32>
    %139 = math.exp %138 : vector<8x128xf32>
    %cst_57 = arith.constant 1.000000e+00 : f32
    %140 = vector.broadcast %cst_57 : f32 to vector<8x128xf32>
    %141 = arith.addf %140, %139 : vector<8x128xf32>
    %142 = arith.divf %140, %141 : vector<8x128xf32>
    %143 = vector.extract_strided_slice %111 {offsets = [0, 128], sizes = [8, 128], strides = [1, 1]} : vector<8x512xf32> to vector<8x128xf32>
    %144 = arith.negf %143 : vector<8x128xf32>
    %145 = math.exp %144 : vector<8x128xf32>
    %cst_58 = arith.constant 1.000000e+00 : f32
    %146 = vector.broadcast %cst_58 : f32 to vector<8x128xf32>
    %147 = arith.addf %146, %145 : vector<8x128xf32>
    %148 = arith.divf %146, %147 : vector<8x128xf32>
    %149 = vector.extract_strided_slice %111 {offsets = [0, 256], sizes = [8, 128], strides = [1, 1]} : vector<8x512xf32> to vector<8x128xf32>
    %150 = math.tanh %149 : vector<8x128xf32>
    %151 = vector.extract_strided_slice %111 {offsets = [0, 384], sizes = [8, 128], strides = [1, 1]} : vector<8x512xf32> to vector<8x128xf32>
    %152 = arith.negf %151 : vector<8x128xf32>
    %153 = math.exp %152 : vector<8x128xf32>
    %cst_59 = arith.constant 1.000000e+00 : f32
    %154 = vector.broadcast %cst_59 : f32 to vector<8x128xf32>
    %155 = arith.addf %154, %153 : vector<8x128xf32>
    %156 = arith.divf %154, %155 : vector<8x128xf32>
    %157 = arith.mulf %148, %86 : vector<8x128xf32>
    %158 = arith.mulf %142, %150 : vector<8x128xf32>
    %159 = arith.addf %157, %158 : vector<8x128xf32>
    %160 = math.tanh %159 : vector<8x128xf32>
    %161 = arith.mulf %156, %160 : vector<8x128xf32>
    %162 = arith.index_cast %98 : i32 to index
    %c0_60 = arith.constant 0 : index
    %c0_61 = arith.constant 0 : index
    %163 = vector.load %arg8[%162, %c0_60, %c0_61] : memref<4x8x128xf32, #tpu.memory_space<vmem>>, vector<1x8x128xf32>
    %164 = vector.shape_cast %163 : vector<1x8x128xf32> to vector<8x128xf32>
    %165 = vector.shape_cast %136 : vector<8x128xf32> to vector<1x8x128xf32>
    tpu.vector_store %arg8[%162, %c0_60, %c0_61], %165 {strides = array<i32>} : memref<4x8x128xf32, #tpu.memory_space<vmem>>, vector<1x8x128xf32>,
    %166 = arith.index_cast %101 : i32 to index
    %c0_62 = arith.constant 0 : index
    %c0_63 = arith.constant 0 : index
    %167 = vector.load %arg9[%166, %c0_62, %c0_63] : memref<4x8x128xf32, #tpu.memory_space<vmem>>, vector<1x8x128xf32>
    %168 = vector.shape_cast %167 : vector<1x8x128xf32> to vector<8x128xf32>
    %169 = vector.shape_cast %161 : vector<8x128xf32> to vector<1x8x128xf32>
    tpu.vector_store %arg9[%166, %c0_62, %c0_63], %169 {strides = array<i32>} : memref<4x8x128xf32, #tpu.memory_space<vmem>>, vector<1x8x128xf32>,
    %170 = tpu.concatenate %136, %161 in 1 : vector<8x128xf32>, vector<8x128xf32> -> vector<8x256xf32>
    %c2_i32 = arith.constant 2 : i32
    %171 = arith.addi %24, %c2_i32 : i32
    %c0_64 = arith.constant 0 : index
    %c0_65 = arith.constant 0 : index
    %172 = vector.load %arg5[%c0_64, %c0_65] : memref<256x1024xf32, #tpu.memory_space<vmem>>, vector<256x1024xf32>
    %cst_66 = arith.constant dense<0.000000e+00> : vector<8x1024xf32>
    %173 = tpu.matmul %170, %172, %cst_66 {dimension_numbers = #tpu.dot_dimension_numbers<[1], [0], [0], [1], [0, 0, 1, 1], [], []>} : vector<8x256xf32>, vector<256x1024xf32>, vector<8x1024xf32> -> vector<8x1024xf32>
    %c3_i32_67 = arith.constant 3 : i32
    %174 = arith.subi %c3_i32_67, %171 : i32
    %175 = arith.index_cast %171 : i32 to index
    %c0_68 = arith.constant 0 : index
    %c0_69 = arith.constant 0 : index
    %176 = vector.load %arg13[%175, %c0_68, %c0_69] : memref<4x8x512xf32, #tpu.memory_space<vmem>>, vector<1x8x512xf32>
    %177 = vector.shape_cast %176 : vector<1x8x512xf32> to vector<8x512xf32>
    %178 = vector.extract_strided_slice %173 {offsets = [0, 0], sizes = [8, 512], strides = [1, 1]} : vector<8x1024xf32> to vector<8x512xf32>
    %179 = arith.addf %177, %178 : vector<8x512xf32>
    %180 = arith.index_cast %174 : i32 to index
    %c0_70 = arith.constant 0 : index
    %c0_71 = arith.constant 0 : index
    %181 = vector.load %arg14[%180, %c0_70, %c0_71] : memref<4x8x512xf32, #tpu.memory_space<vmem>>, vector<1x8x512xf32>
    %182 = vector.shape_cast %181 : vector<1x8x512xf32> to vector<8x512xf32>
    %183 = vector.extract_strided_slice %173 {offsets = [0, 512], sizes = [8, 512], strides = [1, 1]} : vector<8x1024xf32> to vector<8x512xf32>
    %184 = arith.addf %182, %183 : vector<8x512xf32>
    %185 = vector.extract_strided_slice %179 {offsets = [0, 0], sizes = [8, 128], strides = [1, 1]} : vector<8x512xf32> to vector<8x128xf32>
    %186 = arith.negf %185 : vector<8x128xf32>
    %187 = math.exp %186 : vector<8x128xf32>
    %cst_72 = arith.constant 1.000000e+00 : f32
    %188 = vector.broadcast %cst_72 : f32 to vector<8x128xf32>
    %189 = arith.addf %188, %187 : vector<8x128xf32>
    %190 = arith.divf %188, %189 : vector<8x128xf32>
    %191 = vector.extract_strided_slice %179 {offsets = [0, 128], sizes = [8, 128], strides = [1, 1]} : vector<8x512xf32> to vector<8x128xf32>
    %192 = arith.negf %191 : vector<8x128xf32>
    %193 = math.exp %192 : vector<8x128xf32>
    %cst_73 = arith.constant 1.000000e+00 : f32
    %194 = vector.broadcast %cst_73 : f32 to vector<8x128xf32>
    %195 = arith.addf %194, %193 : vector<8x128xf32>
    %196 = arith.divf %194, %195 : vector<8x128xf32>
    %197 = vector.extract_strided_slice %179 {offsets = [0, 256], sizes = [8, 128], strides = [1, 1]} : vector<8x512xf32> to vector<8x128xf32>
    %198 = math.tanh %197 : vector<8x128xf32>
    %199 = vector.extract_strided_slice %179 {offsets = [0, 384], sizes = [8, 128], strides = [1, 1]} : vector<8x512xf32> to vector<8x128xf32>
    %200 = arith.negf %199 : vector<8x128xf32>
    %201 = math.exp %200 : vector<8x128xf32>
    %cst_74 = arith.constant 1.000000e+00 : f32
    %202 = vector.broadcast %cst_74 : f32 to vector<8x128xf32>
    %203 = arith.addf %202, %201 : vector<8x128xf32>
    %204 = arith.divf %202, %203 : vector<8x128xf32>
    %205 = arith.mulf %196, %134 : vector<8x128xf32>
    %206 = arith.mulf %190, %198 : vector<8x128xf32>
    %207 = arith.addf %205, %206 : vector<8x128xf32>
    %208 = math.tanh %207 : vector<8x128xf32>
    %209 = arith.mulf %204, %208 : vector<8x128xf32>
    %210 = vector.extract_strided_slice %184 {offsets = [0, 0], sizes = [8, 128], strides = [1, 1]} : vector<8x512xf32> to vector<8x128xf32>
    %211 = arith.negf %210 : vector<8x128xf32>
    %212 = math.exp %211 : vector<8x128xf32>
    %cst_75 = arith.constant 1.000000e+00 : f32
    %213 = vector.broadcast %cst_75 : f32 to vector<8x128xf32>
    %214 = arith.addf %213, %212 : vector<8x128xf32>
    %215 = arith.divf %213, %214 : vector<8x128xf32>
    %216 = vector.extract_strided_slice %184 {offsets = [0, 128], sizes = [8, 128], strides = [1, 1]} : vector<8x512xf32> to vector<8x128xf32>
    %217 = arith.negf %216 : vector<8x128xf32>
    %218 = math.exp %217 : vector<8x128xf32>
    %cst_76 = arith.constant 1.000000e+00 : f32
    %219 = vector.broadcast %cst_76 : f32 to vector<8x128xf32>
    %220 = arith.addf %219, %218 : vector<8x128xf32>
    %221 = arith.divf %219, %220 : vector<8x128xf32>
    %222 = vector.extract_strided_slice %184 {offsets = [0, 256], sizes = [8, 128], strides = [1, 1]} : vector<8x512xf32> to vector<8x128xf32>
    %223 = math.tanh %222 : vector<8x128xf32>
    %224 = vector.extract_strided_slice %184 {offsets = [0, 384], sizes = [8, 128], strides = [1, 1]} : vector<8x512xf32> to vector<8x128xf32>
    %225 = arith.negf %224 : vector<8x128xf32>
    %226 = math.exp %225 : vector<8x128xf32>
    %cst_77 = arith.constant 1.000000e+00 : f32
    %227 = vector.broadcast %cst_77 : f32 to vector<8x128xf32>
    %228 = arith.addf %227, %226 : vector<8x128xf32>
    %229 = arith.divf %227, %228 : vector<8x128xf32>
    %230 = arith.mulf %221, %159 : vector<8x128xf32>
    %231 = arith.mulf %215, %223 : vector<8x128xf32>
    %232 = arith.addf %230, %231 : vector<8x128xf32>
    %233 = math.tanh %232 : vector<8x128xf32>
    %234 = arith.mulf %229, %233 : vector<8x128xf32>
    %235 = arith.index_cast %171 : i32 to index
    %c0_78 = arith.constant 0 : index
    %c0_79 = arith.constant 0 : index
    %236 = vector.load %arg8[%235, %c0_78, %c0_79] : memref<4x8x128xf32, #tpu.memory_space<vmem>>, vector<1x8x128xf32>
    %237 = vector.shape_cast %236 : vector<1x8x128xf32> to vector<8x128xf32>
    %238 = vector.shape_cast %209 : vector<8x128xf32> to vector<1x8x128xf32>
    tpu.vector_store %arg8[%235, %c0_78, %c0_79], %238 {strides = array<i32>} : memref<4x8x128xf32, #tpu.memory_space<vmem>>, vector<1x8x128xf32>,
    %239 = arith.index_cast %174 : i32 to index
    %c0_80 = arith.constant 0 : index
    %c0_81 = arith.constant 0 : index
    %240 = vector.load %arg9[%239, %c0_80, %c0_81] : memref<4x8x128xf32, #tpu.memory_space<vmem>>, vector<1x8x128xf32>
    %241 = vector.shape_cast %240 : vector<1x8x128xf32> to vector<8x128xf32>
    %242 = vector.shape_cast %234 : vector<8x128xf32> to vector<1x8x128xf32>
    tpu.vector_store %arg9[%239, %c0_80, %c0_81], %242 {strides = array<i32>} : memref<4x8x128xf32, #tpu.memory_space<vmem>>, vector<1x8x128xf32>,
    %243 = tpu.concatenate %209, %234 in 1 : vector<8x128xf32>, vector<8x128xf32> -> vector<8x256xf32>
    %c3_i32_82 = arith.constant 3 : i32
    %244 = arith.addi %24, %c3_i32_82 : i32
    %c0_83 = arith.constant 0 : index
    %c0_84 = arith.constant 0 : index
    %245 = vector.load %arg5[%c0_83, %c0_84] : memref<256x1024xf32, #tpu.memory_space<vmem>>, vector<256x1024xf32>
    %cst_85 = arith.constant dense<0.000000e+00> : vector<8x1024xf32>
    %246 = tpu.matmul %243, %245, %cst_85 {dimension_numbers = #tpu.dot_dimension_numbers<[1], [0], [0], [1], [0, 0, 1, 1], [], []>} : vector<8x256xf32>, vector<256x1024xf32>, vector<8x1024xf32> -> vector<8x1024xf32>
    %c3_i32_86 = arith.constant 3 : i32
    %247 = arith.subi %c3_i32_86, %244 : i32
    %248 = arith.index_cast %244 : i32 to index
    %c0_87 = arith.constant 0 : index
    %c0_88 = arith.constant 0 : index
    %249 = vector.load %arg13[%248, %c0_87, %c0_88] : memref<4x8x512xf32, #tpu.memory_space<vmem>>, vector<1x8x512xf32>
    %250 = vector.shape_cast %249 : vector<1x8x512xf32> to vector<8x512xf32>
    %251 = vector.extract_strided_slice %246 {offsets = [0, 0], sizes = [8, 512], strides = [1, 1]} : vector<8x1024xf32> to vector<8x512xf32>
    %252 = arith.addf %250, %251 : vector<8x512xf32>
    %253 = arith.index_cast %247 : i32 to index
    %c0_89 = arith.constant 0 : index
    %c0_90 = arith.constant 0 : index
    %254 = vector.load %arg14[%253, %c0_89, %c0_90] : memref<4x8x512xf32, #tpu.memory_space<vmem>>, vector<1x8x512xf32>
    %255 = vector.shape_cast %254 : vector<1x8x512xf32> to vector<8x512xf32>
    %256 = vector.extract_strided_slice %246 {offsets = [0, 512], sizes = [8, 512], strides = [1, 1]} : vector<8x1024xf32> to vector<8x512xf32>
    %257 = arith.addf %255, %256 : vector<8x512xf32>
    %258 = vector.extract_strided_slice %252 {offsets = [0, 0], sizes = [8, 128], strides = [1, 1]} : vector<8x512xf32> to vector<8x128xf32>
    %259 = arith.negf %258 : vector<8x128xf32>
    %260 = math.exp %259 : vector<8x128xf32>
    %cst_91 = arith.constant 1.000000e+00 : f32
    %261 = vector.broadcast %cst_91 : f32 to vector<8x128xf32>
    %262 = arith.addf %261, %260 : vector<8x128xf32>
    %263 = arith.divf %261, %262 : vector<8x128xf32>
    %264 = vector.extract_strided_slice %252 {offsets = [0, 128], sizes = [8, 128], strides = [1, 1]} : vector<8x512xf32> to vector<8x128xf32>
    %265 = arith.negf %264 : vector<8x128xf32>
    %266 = math.exp %265 : vector<8x128xf32>
    %cst_92 = arith.constant 1.000000e+00 : f32
    %267 = vector.broadcast %cst_92 : f32 to vector<8x128xf32>
    %268 = arith.addf %267, %266 : vector<8x128xf32>
    %269 = arith.divf %267, %268 : vector<8x128xf32>
    %270 = vector.extract_strided_slice %252 {offsets = [0, 256], sizes = [8, 128], strides = [1, 1]} : vector<8x512xf32> to vector<8x128xf32>
    %271 = math.tanh %270 : vector<8x128xf32>
    %272 = vector.extract_strided_slice %252 {offsets = [0, 384], sizes = [8, 128], strides = [1, 1]} : vector<8x512xf32> to vector<8x128xf32>
    %273 = arith.negf %272 : vector<8x128xf32>
    %274 = math.exp %273 : vector<8x128xf32>
    %cst_93 = arith.constant 1.000000e+00 : f32
    %275 = vector.broadcast %cst_93 : f32 to vector<8x128xf32>
    %276 = arith.addf %275, %274 : vector<8x128xf32>
    %277 = arith.divf %275, %276 : vector<8x128xf32>
    %278 = arith.mulf %269, %207 : vector<8x128xf32>
    %279 = arith.mulf %263, %271 : vector<8x128xf32>
    %280 = arith.addf %278, %279 : vector<8x128xf32>
    %281 = math.tanh %280 : vector<8x128xf32>
    %282 = arith.mulf %277, %281 : vector<8x128xf32>
    %283 = vector.extract_strided_slice %257 {offsets = [0, 0], sizes = [8, 128], strides = [1, 1]} : vector<8x512xf32> to vector<8x128xf32>
    %284 = arith.negf %283 : vector<8x128xf32>
    %285 = math.exp %284 : vector<8x128xf32>
    %cst_94 = arith.constant 1.000000e+00 : f32
    %286 = vector.broadcast %cst_94 : f32 to vector<8x128xf32>
    %287 = arith.addf %286, %285 : vector<8x128xf32>
    %288 = arith.divf %286, %287 : vector<8x128xf32>
    %289 = vector.extract_strided_slice %257 {offsets = [0, 128], sizes = [8, 128], strides = [1, 1]} : vector<8x512xf32> to vector<8x128xf32>
    %290 = arith.negf %289 : vector<8x128xf32>
    %291 = math.exp %290 : vector<8x128xf32>
    %cst_95 = arith.constant 1.000000e+00 : f32
    %292 = vector.broadcast %cst_95 : f32 to vector<8x128xf32>
    %293 = arith.addf %292, %291 : vector<8x128xf32>
    %294 = arith.divf %292, %293 : vector<8x128xf32>
    %295 = vector.extract_strided_slice %257 {offsets = [0, 256], sizes = [8, 128], strides = [1, 1]} : vector<8x512xf32> to vector<8x128xf32>
    %296 = math.tanh %295 : vector<8x128xf32>
    %297 = vector.extract_strided_slice %257 {offsets = [0, 384], sizes = [8, 128], strides = [1, 1]} : vector<8x512xf32> to vector<8x128xf32>
    %298 = arith.negf %297 : vector<8x128xf32>
    %299 = math.exp %298 : vector<8x128xf32>
    %cst_96 = arith.constant 1.000000e+00 : f32
    %300 = vector.broadcast %cst_96 : f32 to vector<8x128xf32>
    %301 = arith.addf %300, %299 : vector<8x128xf32>
    %302 = arith.divf %300, %301 : vector<8x128xf32>
    %303 = arith.mulf %294, %232 : vector<8x128xf32>
    %304 = arith.mulf %288, %296 : vector<8x128xf32>
    %305 = arith.addf %303, %304 : vector<8x128xf32>
    %306 = math.tanh %305 : vector<8x128xf32>
    %307 = arith.mulf %302, %306 : vector<8x128xf32>
    %308 = arith.index_cast %244 : i32 to index
    %c0_97 = arith.constant 0 : index
    %c0_98 = arith.constant 0 : index
    %309 = vector.load %arg8[%308, %c0_97, %c0_98] : memref<4x8x128xf32, #tpu.memory_space<vmem>>, vector<1x8x128xf32>
    %310 = vector.shape_cast %309 : vector<1x8x128xf32> to vector<8x128xf32>
    %311 = vector.shape_cast %282 : vector<8x128xf32> to vector<1x8x128xf32>
    tpu.vector_store %arg8[%308, %c0_97, %c0_98], %311 {strides = array<i32>} : memref<4x8x128xf32, #tpu.memory_space<vmem>>, vector<1x8x128xf32>,
    %312 = arith.index_cast %247 : i32 to index
    %c0_99 = arith.constant 0 : index
    %c0_100 = arith.constant 0 : index
    %313 = vector.load %arg9[%312, %c0_99, %c0_100] : memref<4x8x128xf32, #tpu.memory_space<vmem>>, vector<1x8x128xf32>
    %314 = vector.shape_cast %313 : vector<1x8x128xf32> to vector<8x128xf32>
    %315 = vector.shape_cast %307 : vector<8x128xf32> to vector<1x8x128xf32>
    tpu.vector_store %arg9[%312, %c0_99, %c0_100], %315 {strides = array<i32>} : memref<4x8x128xf32, #tpu.memory_space<vmem>>, vector<1x8x128xf32>,
    %316 = tpu.concatenate %282, %307 in 1 : vector<8x128xf32>, vector<8x128xf32> -> vector<8x256xf32>
    %c1_i32_101 = arith.constant 1 : i32
    %c0_102 = arith.constant 0 : index
    %c0_103 = arith.constant 0 : index
    %317 = vector.load %arg10[%c0_102, %c0_103] : memref<8x256xf32, #tpu.memory_space<vmem>>, vector<8x256xf32>
    tpu.vector_store %arg10[%c0_102, %c0_103], %316 {strides = array<i32>} : memref<8x256xf32, #tpu.memory_space<vmem>>, vector<8x256xf32>,
    %c0_104 = arith.constant 0 : index
    %c0_105 = arith.constant 0 : index
    %318 = vector.load %arg11[%c0_104, %c0_105] : memref<8x128xf32, #tpu.memory_space<vmem>>, vector<8x128xf32>
    tpu.vector_store %arg11[%c0_104, %c0_105], %280 {strides = array<i32>} : memref<8x128xf32, #tpu.memory_space<vmem>>, vector<8x128xf32>,
    %c0_106 = arith.constant 0 : index
    %c0_107 = arith.constant 0 : index
    %319 = vector.load %arg12[%c0_106, %c0_107] : memref<8x128xf32, #tpu.memory_space<vmem>>, vector<8x128xf32>
    tpu.vector_store %arg12[%c0_106, %c0_107], %305 {strides = array<i32>} : memref<8x128xf32, #tpu.memory_space<vmem>>, vector<8x128xf32>,
    return
  }
  func.func @transform_0(%arg0: i32) -> (i32, i32, i32) {
    %c0_i32 = arith.constant 0 : i32
    %c0_i32_0 = arith.constant 0 : i32
    %c0_i32_1 = arith.constant 0 : i32
    return %arg0, %c0_i32, %c0_i32_0 : i32, i32, i32
  }
  func.func @transform_1(%arg0: i32) -> (i32, i32, i32) {
    %c1_i32 = arith.constant 1 : i32
    %0 = arith.subi %c1_i32, %arg0 : i32
    %c0_i32 = arith.constant 0 : i32
    %c0_i32_0 = arith.constant 0 : i32
    %c0_i32_1 = arith.constant 0 : i32
    return %0, %c0_i32, %c0_i32_0 : i32, i32, i32
  }
  func.func @transform_2(%arg0: i32) -> (i32, i32) {
    %c0_i32 = arith.constant 0 : i32
    %c0_i32_0 = arith.constant 0 : i32
    %c0_i32_1 = arith.constant 0 : i32
    return %c0_i32, %c0_i32_0 : i32, i32
  }
  func.func @transform_3(%arg0: i32) -> (i32, i32) {
    %c0_i32 = arith.constant 0 : i32
    %c0_i32_0 = arith.constant 0 : i32
    %c0_i32_1 = arith.constant 0 : i32
    return %c0_i32, %c0_i32_0 : i32, i32
  }
  func.func @transform_4(%arg0: i32) -> (i32, i32) {
    %c0_i32 = arith.constant 0 : i32
    %c0_i32_0 = arith.constant 0 : i32
    %c0_i32_1 = arith.constant 0 : i32
    return %c0_i32, %c0_i32_0 : i32, i32
  }
  func.func @transform_5(%arg0: i32) -> (i32, i32) {
    %c0_i32 = arith.constant 0 : i32
    %c0_i32_0 = arith.constant 0 : i32
    %c0_i32_1 = arith.constant 0 : i32
    return %c0_i32, %c0_i32_0 : i32, i32
  }
  func.func @transform_6(%arg0: i32) -> (i32, i32) {
    %c0_i32 = arith.constant 0 : i32
    %c0_i32_0 = arith.constant 0 : i32
    %c0_i32_1 = arith.constant 0 : i32
    return %c0_i32, %c0_i32_0 : i32, i32
  }
  func.func @transform_7(%arg0: i32) -> (i32, i32, i32) {
    %c0_i32 = arith.constant 0 : i32
    %c0_i32_0 = arith.constant 0 : i32
    %c0_i32_1 = arith.constant 0 : i32
    return %arg0, %c0_i32, %c0_i32_0 : i32, i32, i32
  }
  func.func @transform_8(%arg0: i32) -> (i32, i32, i32) {
    %c1_i32 = arith.constant 1 : i32
    %0 = arith.subi %c1_i32, %arg0 : i32
    %c0_i32 = arith.constant 0 : i32
    %c0_i32_0 = arith.constant 0 : i32
    %c0_i32_1 = arith.constant 0 : i32
    return %0, %c0_i32, %c0_i32_0 : i32, i32, i32
  }
}

</mosaic_0001>

<llo_original>
// kernel: tpu_custom_call.1
$region0: #{tpu_custom_call.1}
  #allocation0 [shape = 'u32[]', space=smem, size = 0x4, offset = 0x4, fixed_abs, tag = 'smem constant byte address 0x4 - core index']
  #allocation1 [shape = 'u32[72,128]{1,0:T(1,128)}', space=vmem, size = 0x9000, scoped, tag = 'internal scratch']
  #allocation2 [shape = 'f32[8,256]{1,0:T(8,128)}', space=vmem, size = 0x2000, scoped, tag = 'scratch operand']
  #allocation3 [shape = 'f32[8,128]{1,0:T(8,128)}', space=vmem, size = 0x1000, scoped, tag = 'scratch operand']
  #allocation4 [shape = 'f32[8,128]{1,0:T(8,128)}', space=vmem, size = 0x1000, scoped, tag = 'scratch operand']
  #allocation5 [shape = 'f32[4,8,512]{2,1,0:T(8,128)}', space=vmem, size = 0x10000, scoped, tag = 'scratch operand']
  #allocation6 [shape = 'f32[4,8,512]{2,1,0:T(8,128)}', space=vmem, size = 0x10000, scoped, tag = 'scratch operand']
  %s0 = inlined_call_operand.hbm [shape: f32[8,8,16], index: 0, kind: input, shape index: {}]
  %s1 = inlined_call_operand.hbm [shape: f32[8,8,16], index: 1, kind: input, shape index: {}]
  %s2 = inlined_call_operand.hbm [shape: f32[16,512], index: 2, kind: input, shape index: {}]
  %s3 = inlined_call_operand.hbm [shape: f32[16,512], index: 3, kind: input, shape index: {}]
  %s4 = inlined_call_operand.hbm [shape: f32[256,1024], index: 4, kind: input, shape index: {}]
  %s5 = inlined_call_operand.vmem [shape: f32[1,512], index: 5, kind: input, shape index: {}]
  %s6 = inlined_call_operand.hbm [shape: f32[1,512], index: 6, kind: input, shape index: {}]
  %s7 = inlined_call_operand.hbm [shape: f32[8,8,128], index: 7, kind: output, shape index: {0}]
  %s8 = inlined_call_operand.hbm [shape: f32[8,8,128], index: 8, kind: output, shape index: {1}]
  %9 = xla_tuple %s7, %s8
  %s10 = sld [smem:[#allocation0]]
  $region97: #{tpu_custom_call.1} parent=0
    _
  %s12 = ssub.s32 1, %s10
  %s13 = scalar_select 0, %s12, %s10
  $region1: #{tpu_custom_call.1} parent=0
    #allocation7 [shape = 'u8[32768]{0}', space=vmem, size = 0x8000, scoped, tag = 'input window, operand 0']
    #allocation8 [shape = 's32[2]{0}', space=sflag, size = 0x8, scoped, tag = 'scoped memory for tpu_custom_call.1']
    #allocation9 [shape = 's32[2]{0}', space=sflag, size = 0x8, scoped, tag = 'scoped memory for tpu_custom_call.1']
    #allocation10 [shape = 'u8[32768]{0}', space=vmem, size = 0x8000, scoped, tag = 'input window, operand 1']
    #allocation11 [shape = 's32[2]{0}', space=sflag, size = 0x8, scoped, tag = 'scoped memory for tpu_custom_call.1']
    #allocation12 [shape = 'u8[32768]{0}', space=vmem, size = 0x8000, scoped, tag = 'input window, operand 2, single buffered']
    #allocation13 [shape = 'u8[32768]{0}', space=vmem, size = 0x8000, scoped, tag = 'input window, operand 3, single buffered']
    #allocation14 [shape = 's32[1]{0}', space=sflag, size = 0x4, scoped, tag = 'scoped memory for tpu_custom_call.1']
    #allocation15 [shape = 'u8[1048576]{0}', space=vmem, size = 0x100000, scoped, tag = 'input window, operand 4, single buffered']
    #allocation16 [shape = 'u8[2048]{0}', space=vmem, size = 0x800, scoped, tag = 'input window, operand 6, single buffered']
    #allocation17 [shape = 's32[1]{0}', space=sflag, size = 0x4, scoped, tag = 'scoped memory for tpu_custom_call.1']
    #allocation18 [shape = 'u8[32768]{0}', space=vmem, size = 0x8000, scoped, tag = 'output window, operand 0']
    #allocation19 [shape = 'u8[32768]{0}', space=vmem, size = 0x8000, scoped, tag = 'output window, operand 1']
    #allocation20 [shape = 's32[2]{0}', space=sflag, size = 0x8, scoped, tag = 'scoped memory for tpu_custom_call.1']
    %14 = vsyncpa [#allocation8], 0
    %s15 = scalar_lea.sflag [#allocation8], 1
    %16 = vsyncpa %s15, 0
    %17 = vsyncpa [#allocation11], 0
    %s18 = scalar_lea.sflag [#allocation11], 1
    %19 = vsyncpa %s18, 0
    %20 = vsyncpa [#allocation14], 0
    %21 = vsyncpa [#allocation17], 0
    %22 = vsyncpa [#allocation9], 0
    %s23 = scalar_lea.sflag [#allocation9], 1
    %24 = vsyncpa %s23, 0
    %25 = vsyncpa [#allocation20], 0
    %s26 = scalar_lea.sflag [#allocation20], 1
    %27 = vsyncpa %s26, 0
    loop: start=0, step=1, limit=4
    $region2: #{tpu_custom_call.1} parent=1 // loop_pre_header
      _
    $region3: #{tpu_custom_call.1} parent=1 // loop_header
      %s29 = sphi 0, %s33
      %p30 = scmp.ge.s32.totalorder %s29, 4
      %s39 = sphi 0, %s41
      %s42 = sphi 0, %s39
      %s43 = sphi 0, %s42
      %s59 = sphi 0, %s43
      %s67 = sphi 0, %s69
      %s70 = sphi 0, %s67
      %s71 = sphi 0, %s70
      %s87 = sphi 0, %s71
      %s91 = sphi 0, %s91
      %s93 = sphi 0, %s91
      %s94 = sphi 0, %s93
      %s108 = sphi 0, %s94
      %s112 = sphi 0, %s112
      %s114 = sphi 0, %s112
      %s115 = sphi 0, %s114
      %s129 = sphi 0, %s115
      %s133 = sphi 0, %s133
      %s135 = sphi 0, %s133
      %s136 = sphi 0, %s135
      %s150 = sphi 0, %s136
      %s154 = sphi 0, %s154
      %s156 = sphi 0, %s154
      %s157 = sphi 0, %s156
      %s171 = sphi 0, %s157
      %s175 = sphi 0, %s175
      %s177 = sphi 0, %s175
      %s178 = sphi 0, %s177
      %s192 = sphi 0, %s178
      %s198 = sphi 0, %s200
      %s201 = sphi 0, %s198
      %s202 = sphi 0, %s201
      %s218 = sphi 0, %s202
      %s226 = sphi 0, %s228
      %s229 = sphi 0, %s226
      %s230 = sphi 0, %s229
      %s246 = sphi 0, %s230
    $region4: #{tpu_custom_call.1} parent=1 // loop_header_branch
      %32 = sbr.rel (%p30) target = $region8
    $region5: #{tpu_custom_call.1} parent=1 // loop_body
      %s34 = ssub.s32 %s29, 1
      %s35 = ssub.s32 %s29, 2
      %s36 = sadd.s32 %s29, 1
      %s37 = ssub.s32 %s29, %s36
      %p38 = scmp.eq.s32.totalorder %s37, 0
      %s40 = sadd.s32 %s39, 1
      %s41 = scalar_select %p38, %s39, %s40
      %p44 = pneg %p38
      %p45 = scmp.eq.s32.totalorder %s29, 1
      %p46 = por %p44, %p45
      %p47 = scmp.ne.s32.totalorder %s39, %s42
      %p48 = scmp.eq.s32.totalorder %s29, 0
      %p49 = por %p47, %p48
      %p50 = scmp.ne.s32.totalorder %s39, %s42
      %p51 = scmp.eq.s32.totalorder %s34, 1
      %p52 = por %p50, %p51
      %p53 = scmp.ne.s32.totalorder %s42, %s43
      %p54 = scmp.eq.s32.totalorder %s34, 0
      %p55 = por %p53, %p54
      %p56 = scmp.ne.s32.totalorder %s42, %s43
      %p57 = scmp.eq.s32.totalorder %s35, 1
      %p58 = por %p56, %p57
      %p60 = scmp.ne.s32.totalorder %s43, %s59
      %p61 = scmp.eq.s32.totalorder %s35, 0
      %p62 = por %p60, %p61
      %s63 = ssub.s32 1, %s29
      %s64 = ssub.s32 1, %s36
      %s65 = ssub.s32 %s63, %s64
      %p66 = scmp.eq.s32.totalorder %s65, 0
      %s68 = sadd.s32 %s67, 1
      %s69 = scalar_select %p66, %s67, %s68
      %p72 = pneg %p66
      %p73 = scmp.eq.s32.totalorder %s29, 1
      %p74 = por %p72, %p73
      %p75 = scmp.ne.s32.totalorder %s67, %s70
      %p76 = scmp.eq.s32.totalorder %s29, 0
      %p77 = por %p75, %p76
      %p78 = scmp.ne.s32.totalorder %s67, %s70
      %p79 = scmp.eq.s32.totalorder %s34, 1
      %p80 = por %p78, %p79
      %p81 = scmp.ne.s32.totalorder %s70, %s71
      %p82 = scmp.eq.s32.totalorder %s34, 0
      %p83 = por %p81, %p82
      %p84 = scmp.ne.s32.totalorder %s70, %s71
      %p85 = scmp.eq.s32.totalorder %s35, 1
      %p86 = por %p84, %p85
      %p88 = scmp.ne.s32.totalorder %s71, %s87
      %p89 = scmp.eq.s32.totalorder %s35, 0
      %p90 = por %p88, %p89
      %s92 = sadd.s32 %s91, 1
      %p95 = scmp.eq.s32.totalorder %s29, 1
      %p96 = scmp.ne.s32.totalorder %s91, %s93
      %p97 = scmp.eq.s32.totalorder %s29, 0
      %p98 = por %p96, %p97
      %p99 = scmp.ne.s32.totalorder %s91, %s93
      %p100 = scmp.eq.s32.totalorder %s34, 1
      %p101 = por %p99, %p100
      %p102 = scmp.ne.s32.totalorder %s93, %s94
      %p103 = scmp.eq.s32.totalorder %s34, 0
      %p104 = por %p102, %p103
      %p105 = scmp.ne.s32.totalorder %s93, %s94
      %p106 = scmp.eq.s32.totalorder %s35, 1
      %p107 = por %p105, %p106
      %p109 = scmp.ne.s32.totalorder %s94, %s108
      %p110 = scmp.eq.s32.totalorder %s35, 0
      %p111 = por %p109, %p110
      %s113 = sadd.s32 %s112, 1
      %p116 = scmp.eq.s32.totalorder %s29, 1
      %p117 = scmp.ne.s32.totalorder %s112, %s114
      %p118 = scmp.eq.s32.totalorder %s29, 0
      %p119 = por %p117, %p118
      %p120 = scmp.ne.s32.totalorder %s112, %s114
      %p121 = scmp.eq.s32.totalorder %s34, 1
      %p122 = por %p120, %p121
      %p123 = scmp.ne.s32.totalorder %s114, %s115
      %p124 = scmp.eq.s32.totalorder %s34, 0
      %p125 = por %p123, %p124
      %p126 = scmp.ne.s32.totalorder %s114, %s115
      %p127 = scmp.eq.s32.totalorder %s35, 1
      %p128 = por %p126, %p127
      %p130 = scmp.ne.s32.totalorder %s115, %s129
      %p131 = scmp.eq.s32.totalorder %s35, 0
      %p132 = por %p130, %p131
      %s134 = sadd.s32 %s133, 1
      %p137 = scmp.eq.s32.totalorder %s29, 1
      %p138 = scmp.ne.s32.totalorder %s133, %s135
      %p139 = scmp.eq.s32.totalorder %s29, 0
      %p140 = por %p138, %p139
      %p141 = scmp.ne.s32.totalorder %s133, %s135
      %p142 = scmp.eq.s32.totalorder %s34, 1
      %p143 = por %p141, %p142
      %p144 = scmp.ne.s32.totalorder %s135, %s136
      %p145 = scmp.eq.s32.totalorder %s34, 0
      %p146 = por %p144, %p145
      %p147 = scmp.ne.s32.totalorder %s135, %s136
      %p148 = scmp.eq.s32.totalorder %s35, 1
      %p149 = por %p147, %p148
      %p151 = scmp.ne.s32.totalorder %s136, %s150
      %p152 = scmp.eq.s32.totalorder %s35, 0
      %p153 = por %p151, %p152
      %s155 = sadd.s32 %s154, 1
      %p158 = scmp.eq.s32.totalorder %s29, 1
      %p159 = scmp.ne.s32.totalorder %s154, %s156
      %p160 = scmp.eq.s32.totalorder %s29, 0
      %p161 = por %p159, %p160
      %p162 = scmp.ne.s32.totalorder %s154, %s156
      %p163 = scmp.eq.s32.totalorder %s34, 1
      %p164 = por %p162, %p163
      %p165 = scmp.ne.s32.totalorder %s156, %s157
      %p166 = scmp.eq.s32.totalorder %s34, 0
      %p167 = por %p165, %p166
      %p168 = scmp.ne.s32.totalorder %s156, %s157
      %p169 = scmp.eq.s32.totalorder %s35, 1
      %p170 = por %p168, %p169
      %p172 = scmp.ne.s32.totalorder %s157, %s171
      %p173 = scmp.eq.s32.totalorder %s35, 0
      %p174 = por %p172, %p173
      %s176 = sadd.s32 %s175, 1
      %p179 = scmp.eq.s32.totalorder %s29, 1
      %p180 = scmp.ne.s32.totalorder %s175, %s177
      %p181 = scmp.eq.s32.totalorder %s29, 0
      %p182 = por %p180, %p181
      %p183 = scmp.ne.s32.totalorder %s175, %s177
      %p184 = scmp.eq.s32.totalorder %s34, 1
      %p185 = por %p183, %p184
      %p186 = scmp.ne.s32.totalorder %s177, %s178
      %p187 = scmp.eq.s32.totalorder %s34, 0
      %p188 = por %p186, %p187
      %p189 = scmp.ne.s32.totalorder %s177, %s178
      %p190 = scmp.eq.s32.totalorder %s35, 1
      %p191 = por %p189, %p190
      %p193 = scmp.ne.s32.totalorder %s178, %s192
      %p194 = scmp.eq.s32.totalorder %s35, 0
      %p195 = por %p193, %p194
      %s196 = ssub.s32 %s29, %s36
      %p197 = scmp.eq.s32.totalorder %s196, 0
      %s199 = sadd.s32 %s198, 1
      %s200 = scalar_select %p197, %s198, %s199
      %p203 = pneg %p197
      %p204 = scmp.eq.s32.totalorder %s29, 1
      %p205 = por %p203, %p204
      %p206 = scmp.ne.s32.totalorder %s198, %s201
      %p207 = scmp.eq.s32.totalorder %s29, 0
      %p208 = por %p206, %p207
      %p209 = scmp.ne.s32.totalorder %s198, %s201
      %p210 = scmp.eq.s32.totalorder %s34, 1
      %p211 = por %p209, %p210
      %p212 = scmp.ne.s32.totalorder %s201, %s202
      %p213 = scmp.eq.s32.totalorder %s34, 0
      %p214 = por %p212, %p213
      %p215 = scmp.ne.s32.totalorder %s201, %s202
      %p216 = scmp.eq.s32.totalorder %s35, 1
      %p217 = por %p215, %p216
      %p219 = scmp.ne.s32.totalorder %s202, %s218
      %p220 = scmp.eq.s32.totalorder %s35, 0
      %p221 = por %p219, %p220
      %s222 = ssub.s32 1, %s29
      %s223 = ssub.s32 1, %s36
      %s224 = ssub.s32 %s222, %s223
      %p225 = scmp.eq.s32.totalorder %s224, 0
      %s227 = sadd.s32 %s226, 1
      %s228 = scalar_select %p225, %s226, %s227
      %p231 = pneg %p225
      %p232 = scmp.eq.s32.totalorder %s29, 1
      %p233 = por %p231, %p232
      %p234 = scmp.ne.s32.totalorder %s226, %s229
      %p235 = scmp.eq.s32.totalorder %s29, 0
      %p236 = por %p234, %p235
      %p237 = scmp.ne.s32.totalorder %s226, %s229
      %p238 = scmp.eq.s32.totalorder %s34, 1
      %p239 = por %p237, %p238
      %p240 = scmp.ne.s32.totalorder %s229, %s230
      %p241 = scmp.eq.s32.totalorder %s34, 0
      %p242 = por %p240, %p241
      %p243 = scmp.ne.s32.totalorder %s229, %s230
      %p244 = scmp.eq.s32.totalorder %s35, 1
      %p245 = por %p243, %p244
      %p247 = scmp.ne.s32.totalorder %s230, %s246
      %p248 = scmp.eq.s32.totalorder %s35, 0
      %p249 = por %p247, %p248
      %p250 = scmp.le.s32.totalorder 1, %s29
      %p251 = scmp.lt.s32.totalorder %s29, 3
      %p252 = pnand %p250, %p251
      %p253 = pneg %p252
      // Predicated region
      $region9: #{tpu_custom_call.1} parent=5 // pred_check
        _
      $region10: #{tpu_custom_call.1} parent=5 // pred_check_branch
        %255 = sbr.rel (%p252) target = $region12
      $region11: #{tpu_custom_call.1} parent=5 // pred_region
        %s256 = ssub.s32 %s29, 1
        // Predicated region
        $region13: #{tpu_custom_call.1} parent=11 // pred_check
          %p257 = pneg %p104
        $region14: #{tpu_custom_call.1} parent=11 // pred_check_branch
          %259 = sbr.rel (%p257) target = $region16
        $region15: #{tpu_custom_call.1} parent=11 // pred_region
          %261 = vsyncadd [#allocation11], 0
          %s262 = sshll.u32 %s2, 4
          %s263 = int_to_ptr.hbm [resolvable:$true] %s262
          %s264 = sshll.u32 [#allocation12], 4
          %s265 = int_to_ptr.vmem [resolvable:$true] %s264
          %270 = dma.hbm_to_vmem [thread:$0]  %s263, 1024, %s265, [#allocation11], 512, 512, 32
        $region16: #{tpu_custom_call.1} parent=11 // pred_fallthru
          _
        // Predicated region
        $region17: #{tpu_custom_call.1} parent=11 // pred_check
          %p271 = pneg %p125
        $region18: #{tpu_custom_call.1} parent=11 // pred_check_branch
          %273 = sbr.rel (%p271) target = $region20
        $region19: #{tpu_custom_call.1} parent=11 // pred_region
          %275 = vsyncadd [#allocation14], 0
          %s276 = sshll.u32 %s3, 4
          %s277 = int_to_ptr.hbm [resolvable:$true] %s276
          %s278 = sshll.u32 [#allocation13], 4
          %s279 = int_to_ptr.vmem [resolvable:$true] %s278
          %284 = dma.hbm_to_vmem [thread:$0]  %s277, 1024, %s279, [#allocation14], 512, 512, 32
        $region20: #{tpu_custom_call.1} parent=11 // pred_fallthru
          _
        // Predicated region
        $region21: #{tpu_custom_call.1} parent=11 // pred_check
          %p285 = pneg %p146
        $region22: #{tpu_custom_call.1} parent=11 // pred_check_branch
          %287 = sbr.rel (%p285) target = $region24
        $region23: #{tpu_custom_call.1} parent=11 // pred_region
          %289 = vsyncadd [#allocation14], 0
          %s290 = sshll.u32 %s4, 4
          %s291 = int_to_ptr.hbm [resolvable:$true] %s290
          %s292 = sshll.u32 [#allocation15], 4
          %s293 = int_to_ptr.vmem [resolvable:$true] %s292
          %298 = dma.hbm_to_vmem [thread:$0]  %s291, 32768, %s293, [#allocation14], 1024, 1024, 64
        $region24: #{tpu_custom_call.1} parent=11 // pred_fallthru
          _
        // Predicated region
        $region25: #{tpu_custom_call.1} parent=11 // pred_check
          %p299 = pneg %p167
        $region26: #{tpu_custom_call.1} parent=11 // pred_check_branch
          %301 = sbr.rel (%p299) target = $region28
        $region27: #{tpu_custom_call.1} parent=11 // pred_region
          _
        $region28: #{tpu_custom_call.1} parent=11 // pred_fallthru
          _
        // Predicated region
        $region29: #{tpu_custom_call.1} parent=11 // pred_check
          %p302 = pneg %p188
        $region30: #{tpu_custom_call.1} parent=11 // pred_check_branch
          %304 = sbr.rel (%p302) target = $region32
        $region31: #{tpu_custom_call.1} parent=11 // pred_region
          %306 = vsyncadd [#allocation17], 0
          %s308 = sshll.u32 %s6, 4
          %s309 = int_to_ptr.hbm [resolvable:$true] %s308
          %s310 = sshll.u32 [#allocation16], 4
          %s311 = int_to_ptr.vmem [resolvable:$true] %s310
          %313 = dma.hbm_to_vmem [thread:$0]  %s309, 64, %s311, [#allocation17]
        $region32: #{tpu_custom_call.1} parent=11 // pred_fallthru
          _
      $region12: #{tpu_custom_call.1} parent=5 // pred_fallthru
        _
      %p314 = scmp.lt.s32.totalorder %s29, 2
      // Predicated region
      $region33: #{tpu_custom_call.1} parent=5 // pred_check
        %p315 = pneg %p314
      $region34: #{tpu_custom_call.1} parent=5 // pred_check_branch
        %317 = sbr.rel (%p315) target = $region36
      $region35: #{tpu_custom_call.1} parent=5 // pred_region
        // Predicated region
        $region37: #{tpu_custom_call.1} parent=35 // pred_check
          %p318 = pneg %p49
        $region38: #{tpu_custom_call.1} parent=35 // pred_check_branch
          %320 = sbr.rel (%p318) target = $region40
        $region39: #{tpu_custom_call.1} parent=35 // pred_region
          %s321 = sand.u32 %s39, 1
          %s322 = scalar_lea.sflag [#allocation8], %s321
          %s323 = sand.u32 %s39, 1
          %s324 = smul.addr %s323, 32
          %s325 = scalar_lea.vmem [#allocation7], %s324
          %s326 = smul.u32 4, %s29
          %328 = vsyncadd %s322, 0
          %s329 = smul.addr %s326, 8
          %s330 = scalar_lea.hbm %s0, %s329
          %s331 = sshll.u32 %s330, 4
          %s332 = int_to_ptr.hbm [resolvable:$true] %s331
          %s333 = sshll.u32 %s325, 4
          %s334 = int_to_ptr.vmem [resolvable:$true] %s333
          %339 = dma.hbm_to_vmem [thread:$0]  %s332, 512, %s334, %s322, 128, 128, 8
        $region40: #{tpu_custom_call.1} parent=35 // pred_fallthru
          _
        // Predicated region
        $region41: #{tpu_custom_call.1} parent=35 // pred_check
          %p340 = pneg %p77
        $region42: #{tpu_custom_call.1} parent=35 // pred_check_branch
          %342 = sbr.rel (%p340) target = $region44
        $region43: #{tpu_custom_call.1} parent=35 // pred_region
          %s343 = sand.u32 %s29, 1
          %s344 = scalar_lea.sflag [#allocation11], %s343
          %s345 = sand.u32 %s67, 1
          %s346 = smul.addr %s345, 32
          %s347 = scalar_lea.vmem [#allocation10], %s346
          %s348 = ssub.s32 1, %s29
          %s349 = smul.u32 4, %s348
          %351 = vsyncadd %s344, 0
          %s352 = smul.addr %s349, 8
          %s353 = scalar_lea.hbm %s1, %s352
          %s354 = sshll.u32 %s353, 4
          %s355 = int_to_ptr.hbm [resolvable:$true] %s354
          %s356 = sshll.u32 %s347, 4
          %s357 = int_to_ptr.vmem [resolvable:$true] %s356
          %362 = dma.hbm_to_vmem [thread:$0]  %s355, 512, %s357, %s344, 128, 128, 8
        $region44: #{tpu_custom_call.1} parent=35 // pred_fallthru
          _
      $region36: #{tpu_custom_call.1} parent=5 // pred_fallthru
        _
      %p363 = scmp.le.s32.totalorder 1, %s29
      %p364 = scmp.lt.s32.totalorder %s29, 3
      %p365 = pnand %p363, %p364
      %p366 = pneg %p365
      // Predicated region
      $region45: #{tpu_custom_call.1} parent=5 // pred_check
        _
      $region46: #{tpu_custom_call.1} parent=5 // pred_check_branch
        %368 = sbr.rel (%p365) target = $region48
      $region47: #{tpu_custom_call.1} parent=5 // pred_region
        %s369 = ssub.s32 %s29, 1
        %s370 = sand.u32 %s42, 1
        %s371 = scalar_lea.sflag [#allocation8], %s370
        %s372 = sand.u32 %s42, 1
        %s373 = smul.addr %s372, 32
        %s374 = scalar_lea.vmem [#allocation7], %s373
        // Predicated region
        $region49: #{tpu_custom_call.1} parent=47 // pred_check
          %p375 = pneg %p55
        $region50: #{tpu_custom_call.1} parent=47 // pred_check_branch
          %377 = sbr.rel (%p375) target = $region52
        $region51: #{tpu_custom_call.1} parent=47 // pred_region
          %379 = dma.done %s371, 512
        $region52: #{tpu_custom_call.1} parent=47 // pred_fallthru
          _
        %s380 = sand.u32 %s34, 1
        %s381 = scalar_lea.sflag [#allocation11], %s380
        %s382 = sand.u32 %s70, 1
        %s383 = smul.addr %s382, 32
        %s384 = scalar_lea.vmem [#allocation10], %s383
        // Predicated region
        $region53: #{tpu_custom_call.1} parent=47 // pred_check
          %p385 = pneg %p83
        $region54: #{tpu_custom_call.1} parent=47 // pred_check_branch
          %387 = sbr.rel (%p385) target = $region56
        $region55: #{tpu_custom_call.1} parent=47 // pred_region
          %389 = dma.done %s381, 512
        $region56: #{tpu_custom_call.1} parent=47 // pred_fallthru
          _
        // Predicated region
        $region57: #{tpu_custom_call.1} parent=47 // pred_check
          %p390 = pneg %p104
        $region58: #{tpu_custom_call.1} parent=47 // pred_check_branch
          %392 = sbr.rel (%p390) target = $region60
        $region59: #{tpu_custom_call.1} parent=47 // pred_region
          %394 = dma.done [#allocation11], 1024
        $region60: #{tpu_custom_call.1} parent=47 // pred_fallthru
          _
        // Predicated region
        $region61: #{tpu_custom_call.1} parent=47 // pred_check
          %p395 = pneg %p125
        $region62: #{tpu_custom_call.1} parent=47 // pred_check_branch
          %397 = sbr.rel (%p395) target = $region64
        $region63: #{tpu_custom_call.1} parent=47 // pred_region
          %399 = dma.done [#allocation14], 1024
        $region64: #{tpu_custom_call.1} parent=47 // pred_fallthru
          _
        // Predicated region
        $region65: #{tpu_custom_call.1} parent=47 // pred_check
          %p400 = pneg %p146
        $region66: #{tpu_custom_call.1} parent=47 // pred_check_branch
          %402 = sbr.rel (%p400) target = $region68
        $region67: #{tpu_custom_call.1} parent=47 // pred_region
          %404 = dma.done [#allocation14], 32768
        $region68: #{tpu_custom_call.1} parent=47 // pred_fallthru
          _
        // Predicated region
        $region69: #{tpu_custom_call.1} parent=47 // pred_check
          %p405 = pneg %p188
        $region70: #{tpu_custom_call.1} parent=47 // pred_check_branch
          %407 = sbr.rel (%p405) target = $region72
        $region71: #{tpu_custom_call.1} parent=47 // pred_region
          %409 = dma.done [#allocation17], 64
        $region72: #{tpu_custom_call.1} parent=47 // pred_fallthru
          _
        %s410 = sand.u32 %s42, 1
        %s411 = scalar_lea.sflag [#allocation8], %s410
        %s412 = sand.u32 %s42, 1
        %s413 = smul.addr %s412, 32
        %s414 = scalar_lea.vmem [#allocation7], %s413
        %p415 = pneg %p55
        %p416 = pneg %p52
        %s417 = sand.u32 %s34, 1
        %s418 = scalar_lea.sflag [#allocation11], %s417
        %s419 = sand.u32 %s70, 1
        %s420 = smul.addr %s419, 32
        %s421 = scalar_lea.vmem [#allocation10], %s420
        %p422 = pneg %p83
        %p423 = pneg %p80
        %p424 = pneg %p104
        %p425 = pneg %p101
        %p426 = pneg %p125
        %p427 = pneg %p122
        %p428 = pneg %p146
        %p429 = pneg %p143
        %p430 = pneg %p167
        %p431 = pneg %p164
        %p432 = pneg %p188
        %p433 = pneg %p185
        %p434 = pneg %p214
        %p435 = pneg %p211
        %s436 = sand.u32 %s201, 1
        %s437 = scalar_lea.sflag [#allocation9], %s436
        %s438 = sand.u32 %s201, 1
        %s439 = smul.addr %s438, 32
        %s440 = scalar_lea.vmem [#allocation18], %s439
        %p441 = pneg %p242
        %p442 = pneg %p239
        %s443 = sand.u32 %s229, 1
        %s444 = scalar_lea.sflag [#allocation20], %s443
        %s445 = sand.u32 %s229, 1
        %s446 = smul.addr %s445, 32
        %s447 = scalar_lea.vmem [#allocation19], %s446
        %s448 = smul.u32 4, %s34
        %s449 = ssub.s32 1, %s34
        %s450 = smul.u32 4, %s449
        %s451 = smul.u32 4, %s34
        %s452 = ssub.s32 1, %s34
        %s453 = smul.u32 4, %s452
        %p454 = scmp.eq.s32.totalorder %s34, 0
        // Predicated region
        $region73: #{tpu_custom_call.1} parent=47 // pred_check
          %p455 = pneg %p454
        $region74: #{tpu_custom_call.1} parent=47 // pred_check_branch
          %457 = sbr.rel (%p455) target = $region76
        $region75: #{tpu_custom_call.1} parent=47 // pred_region
          %458 = vst [vmem:[#allocation2] sm:$0xff] 0.0
          %459 = vst [vmem:[#allocation2 + $0x8] sm:$0xff] 0.0
          %460 = vst [vmem:[#allocation3] sm:$0xff] 0.0
          %461 = vst [vmem:[#allocation4] sm:$0xff] 0.0
        $region76: #{tpu_custom_call.1} parent=47 // pred_fallthru
          _
        %v462 = vld [vmem:[%s374] sm:$0xff]
        %v463 = vld [vmem:[%s374 + $0x8] sm:$0xff]
        %v464 = vld [vmem:[%s374 + $0x10] sm:$0xff]
        %v465 = vld [vmem:[%s374 + $0x18] sm:$0xff]
        %v466 = vld [vmem:[%s384] sm:$0xff]
        %v467 = vld [vmem:[%s384 + $0x8] sm:$0xff]
        %v468 = vld [vmem:[%s384 + $0x10] sm:$0xff]
        %v469 = vld [vmem:[%s384 + $0x18] sm:$0xff]
        %v470 = vld [vmem:[#allocation12] sm:$0xff]
        %v471 = vld [vmem:[#allocation12 + $0x8] sm:$0xff]
        %v472 = vld [vmem:[#allocation12 + $0x10] sm:$0xff]
        %v473 = vld [vmem:[#allocation12 + $0x18] sm:$0xff]
        %v474 = vld [vmem:[#allocation12 + $0x20] sm:$0xff]
        %v475 = vld [vmem:[#allocation12 + $0x28] sm:$0xff]
        %v476 = vld [vmem:[#allocation12 + $0x30] sm:$0xff]
        %v477 = vld [vmem:[#allocation12 + $0x38] sm:$0xff]
        %v478 = vld [vmem:[%s5] sm:$0xf]
        %v480 = vperm.slane %v478, 0
        %v481 = vperm.slane %v478, 1
        %v482 = vperm.slane %v478, 2
        %v483 = vperm.slane %v478, 3
        %vm488 = vcmask 130048
        %v490 = vsel %vm488, %v462, 0
        %v493 = vsel %vm488, %v463, 0
        %v496 = vsel %vm488, %v464, 0
        %v499 = vsel %vm488, %v465, 0
        %501 = vmatpush.msra.mxu0 0.0
        %502 = vmatpush.msra.mxu0 0.0
        %503 = vmatpush.msra.mxu0 0.0
        %504 = vmatpush.msra.mxu0 0.0
        %505 = vmatpush.msra.mxu0 0.0
        %506 = vmatpush.msra.mxu0 0.0
        %507 = vmatpush.msra.mxu0 0.0
        %508 = vmatpush.msra.mxu0 0.0
        %509 = vmatpush.msra.mxu0 0.0
        %510 = vmatpush.msra.mxu0 0.0
        %511 = vmatpush.msra.mxu0 0.0
        %512 = vmatpush.msra.mxu0 0.0
        %513 = vmatpush.msra.mxu0 0.0
        %514 = vmatpush.msra.mxu0 0.0
        %515 = vmatpush.msra.mxu0 %v474
        %516 = vmatpush.msra.mxu0 %v470
        %517 = vmatmul.f32.gmra.mxu0 %v490
        %v518 = vpop.f32.mrf.mxu0
        %v519 = vadd.f32 %v480, %v518
        %520 = vmatmul.f32.gmra.mxu0 %v493
        %v521 = vpop.f32.mrf.mxu0
        %v522 = vadd.f32 %v480, %v521
        %523 = vmatmul.f32.gmra.mxu0 %v496
        %v524 = vpop.f32.mrf.mxu0
        %v525 = vadd.f32 %v480, %v524
        %526 = vmatmul.f32.gmra.mxu0 %v499
        %v527 = vpop.f32.mrf.mxu0
        %v528 = vadd.f32 %v480, %v527
        %529 = vdwg.mxu0
        %530 = vmatpush.msra.mxu0 0.0
        %531 = vmatpush.msra.mxu0 0.0
        %532 = vmatpush.msra.mxu0 0.0
        %533 = vmatpush.msra.mxu0 0.0
        %534 = vmatpush.msra.mxu0 0.0
        %535 = vmatpush.msra.mxu0 0.0
        %536 = vmatpush.msra.mxu0 0.0
        %537 = vmatpush.msra.mxu0 0.0
        %538 = vmatpush.msra.mxu0 0.0
        %539 = vmatpush.msra.mxu0 0.0
        %540 = vmatpush.msra.mxu0 0.0
        %541 = vmatpush.msra.mxu0 0.0
        %542 = vmatpush.msra.mxu0 0.0
        %543 = vmatpush.msra.mxu0 0.0
        %544 = vmatpush.msra.mxu0 %v475
        %545 = vmatpush.msra.mxu0 %v471
        %546 = vmatmul.f32.gmra.mxu0 %v490
        %v547 = vpop.f32.mrf.mxu0
        %v548 = vadd.f32 %v481, %v547
        %549 = vmatmul.f32.gmra.mxu0 %v493
        %v550 = vpop.f32.mrf.mxu0
        %v551 = vadd.f32 %v481, %v550
        %552 = vmatmul.f32.gmra.mxu0 %v496
        %v553 = vpop.f32.mrf.mxu0
        %v554 = vadd.f32 %v481, %v553
        %555 = vmatmul.f32.gmra.mxu0 %v499
        %v556 = vpop.f32.mrf.mxu0
        %v557 = vadd.f32 %v481, %v556
        %558 = vdwg.mxu0
        %559 = vmatpush.msra.mxu0 0.0
        %560 = vmatpush.msra.mxu0 0.0
        %561 = vmatpush.msra.mxu0 0.0
        %562 = vmatpush.msra.mxu0 0.0
        %563 = vmatpush.msra.mxu0 0.0
        %564 = vmatpush.msra.mxu0 0.0
        %565 = vmatpush.msra.mxu0 0.0
        %566 = vmatpush.msra.mxu0 0.0
        %567 = vmatpush.msra.mxu0 0.0
        %568 = vmatpush.msra.mxu0 0.0
        %569 = vmatpush.msra.mxu0 0.0
        %570 = vmatpush.msra.mxu0 0.0
        %571 = vmatpush.msra.mxu0 0.0
        %572 = vmatpush.msra.mxu0 0.0
        %573 = vmatpush.msra.mxu0 %v476
        %574 = vmatpush.msra.mxu0 %v472
        %575 = vmatmul.f32.gmra.mxu0 %v490
        %v576 = vpop.f32.mrf.mxu0
        %v577 = vadd.f32 %v482, %v576
        %578 = vmatmul.f32.gmra.mxu0 %v493
        %v579 = vpop.f32.mrf.mxu0
        %v580 = vadd.f32 %v482, %v579
        %581 = vmatmul.f32.gmra.mxu0 %v496
        %v582 = vpop.f32.mrf.mxu0
        %v583 = vadd.f32 %v482, %v582
        %584 = vmatmul.f32.gmra.mxu0 %v499
        %v585 = vpop.f32.mrf.mxu0
        %v586 = vadd.f32 %v482, %v585
        %587 = vdwg.mxu0
        %588 = vmatpush.msra.mxu0 0.0
        %589 = vmatpush.msra.mxu0 0.0
        %590 = vmatpush.msra.mxu0 0.0
        %591 = vmatpush.msra.mxu0 0.0
        %592 = vmatpush.msra.mxu0 0.0
        %593 = vmatpush.msra.mxu0 0.0
        %594 = vmatpush.msra.mxu0 0.0
        %595 = vmatpush.msra.mxu0 0.0
        %596 = vmatpush.msra.mxu0 0.0
        %597 = vmatpush.msra.mxu0 0.0
        %598 = vmatpush.msra.mxu0 0.0
        %599 = vmatpush.msra.mxu0 0.0
        %600 = vmatpush.msra.mxu0 0.0
        %601 = vmatpush.msra.mxu0 0.0
        %602 = vmatpush.msra.mxu0 %v477
        %603 = vmatpush.msra.mxu0 %v473
        %604 = vmatmul.f32.gmra.mxu0 %v490
        %v605 = vpop.f32.mrf.mxu0
        %v606 = vadd.f32 %v483, %v605
        %607 = vmatmul.f32.gmra.mxu0 %v493
        %v608 = vpop.f32.mrf.mxu0
        %v609 = vadd.f32 %v483, %v608
        %610 = vmatmul.f32.gmra.mxu0 %v496
        %v611 = vpop.f32.mrf.mxu0
        %v612 = vadd.f32 %v483, %v611
        %613 = vmatmul.f32.gmra.mxu0 %v499
        %v614 = vpop.f32.mrf.mxu0
        %v615 = vadd.f32 %v483, %v614
        %616 = vdwg.mxu0
        %617 = vst [vmem:[#allocation5] sm:$0xff] %v519
        %618 = vst [vmem:[#allocation5 + $0x8] sm:$0xff] %v548
        %619 = vst [vmem:[#allocation5 + $0x10] sm:$0xff] %v577
        %620 = vst [vmem:[#allocation5 + $0x18] sm:$0xff] %v606
        %621 = vst [vmem:[#allocation5 + $0x20] sm:$0xff] %v522
        %622 = vst [vmem:[#allocation5 + $0x28] sm:$0xff] %v551
        %623 = vst [vmem:[#allocation5 + $0x30] sm:$0xff] %v580
        %624 = vst [vmem:[#allocation5 + $0x38] sm:$0xff] %v609
        %625 = vst [vmem:[#allocation5 + $0x40] sm:$0xff] %v525
        %626 = vst [vmem:[#allocation5 + $0x48] sm:$0xff] %v554
        %627 = vst [vmem:[#allocation5 + $0x50] sm:$0xff] %v583
        %628 = vst [vmem:[#allocation5 + $0x58] sm:$0xff] %v612
        %629 = vst [vmem:[#allocation5 + $0x60] sm:$0xff] %v528
        %630 = vst [vmem:[#allocation5 + $0x68] sm:$0xff] %v557
        %631 = vst [vmem:[#allocation5 + $0x70] sm:$0xff] %v586
        %632 = vst [vmem:[#allocation5 + $0x78] sm:$0xff] %v615
        %v633 = vld [vmem:[#allocation13] sm:$0xff]
        %v634 = vld [vmem:[#allocation13 + $0x8] sm:$0xff]
        %v635 = vld [vmem:[#allocation13 + $0x10] sm:$0xff]
        %v636 = vld [vmem:[#allocation13 + $0x18] sm:$0xff]
        %v637 = vld [vmem:[#allocation13 + $0x20] sm:$0xff]
        %v638 = vld [vmem:[#allocation13 + $0x28] sm:$0xff]
        %v639 = vld [vmem:[#allocation13 + $0x30] sm:$0xff]
        %v640 = vld [vmem:[#allocation13 + $0x38] sm:$0xff]
        %v641 = vld [vmem:[#allocation16] sm:$0xf]
        %v643 = vperm.slane %v641, 0
        %v644 = vperm.slane %v641, 1
        %v645 = vperm.slane %v641, 2
        %v646 = vperm.slane %v641, 3
        %v652 = vsel %vm488, %v466, 0
        %v655 = vsel %vm488, %v467, 0
        %v658 = vsel %vm488, %v468, 0
        %v661 = vsel %vm488, %v469, 0
        %663 = vmatpush.msra.mxu0 0.0
        %664 = vmatpush.msra.mxu0 0.0
        %665 = vmatpush.msra.mxu0 0.0
        %666 = vmatpush.msra.mxu0 0.0
        %667 = vmatpush.msra.mxu0 0.0
        %668 = vmatpush.msra.mxu0 0.0
        %669 = vmatpush.msra.mxu0 0.0
        %670 = vmatpush.msra.mxu0 0.0
        %671 = vmatpush.msra.mxu0 0.0
        %672 = vmatpush.msra.mxu0 0.0
        %673 = vmatpush.msra.mxu0 0.0
        %674 = vmatpush.msra.mxu0 0.0
        %675 = vmatpush.msra.mxu0 0.0
        %676 = vmatpush.msra.mxu0 0.0
        %677 = vmatpush.msra.mxu0 %v637
        %678 = vmatpush.msra.mxu0 %v633
        %679 = vmatmul.f32.gmra.mxu0 %v652
        %v680 = vpop.f32.mrf.mxu0
        %v681 = vadd.f32 %v643, %v680
        %682 = vmatmul.f32.gmra.mxu0 %v655
        %v683 = vpop.f32.mrf.mxu0
        %v684 = vadd.f32 %v643, %v683
        %685 = vmatmul.f32.gmra.mxu0 %v658
        %v686 = vpop.f32.mrf.mxu0
        %v687 = vadd.f32 %v643, %v686
        %688 = vmatmul.f32.gmra.mxu0 %v661
        %v689 = vpop.f32.mrf.mxu0
        %v690 = vadd.f32 %v643, %v689
        %691 = vdwg.mxu0
        %692 = vmatpush.msra.mxu0 0.0
        %693 = vmatpush.msra.mxu0 0.0
        %694 = vmatpush.msra.mxu0 0.0
        %695 = vmatpush.msra.mxu0 0.0
        %696 = vmatpush.msra.mxu0 0.0
        %697 = vmatpush.msra.mxu0 0.0
        %698 = vmatpush.msra.mxu0 0.0
        %699 = vmatpush.msra.mxu0 0.0
        %700 = vmatpush.msra.mxu0 0.0
        %701 = vmatpush.msra.mxu0 0.0
        %702 = vmatpush.msra.mxu0 0.0
        %703 = vmatpush.msra.mxu0 0.0
        %704 = vmatpush.msra.mxu0 0.0
        %705 = vmatpush.msra.mxu0 0.0
        %706 = vmatpush.msra.mxu0 %v638
        %707 = vmatpush.msra.mxu0 %v634
        %708 = vmatmul.f32.gmra.mxu0 %v652
        %v709 = vpop.f32.mrf.mxu0
        %v710 = vadd.f32 %v644, %v709
        %711 = vmatmul.f32.gmra.mxu0 %v655
        %v712 = vpop.f32.mrf.mxu0
        %v713 = vadd.f32 %v644, %v712
        %714 = vmatmul.f32.gmra.mxu0 %v658
        %v715 = vpop.f32.mrf.mxu0
        %v716 = vadd.f32 %v644, %v715
        %717 = vmatmul.f32.gmra.mxu0 %v661
        %v718 = vpop.f32.mrf.mxu0
        %v719 = vadd.f32 %v644, %v718
        %720 = vdwg.mxu0
        %721 = vmatpush.msra.mxu0 0.0
        %722 = vmatpush.msra.mxu0 0.0
        %723 = vmatpush.msra.mxu0 0.0
        %724 = vmatpush.msra.mxu0 0.0
        %725 = vmatpush.msra.mxu0 0.0
        %726 = vmatpush.msra.mxu0 0.0
        %727 = vmatpush.msra.mxu0 0.0
        %728 = vmatpush.msra.mxu0 0.0
        %729 = vmatpush.msra.mxu0 0.0
        %730 = vmatpush.msra.mxu0 0.0
        %731 = vmatpush.msra.mxu0 0.0
        %732 = vmatpush.msra.mxu0 0.0
        %733 = vmatpush.msra.mxu0 0.0
        %734 = vmatpush.msra.mxu0 0.0
        %735 = vmatpush.msra.mxu0 %v639
        %736 = vmatpush.msra.mxu0 %v635
        %737 = vmatmul.f32.gmra.mxu0 %v652
        %v738 = vpop.f32.mrf.mxu0
        %v739 = vadd.f32 %v645, %v738
        %740 = vmatmul.f32.gmra.mxu0 %v655
        %v741 = vpop.f32.mrf.mxu0
        %v742 = vadd.f32 %v645, %v741
        %743 = vmatmul.f32.gmra.mxu0 %v658
        %v744 = vpop.f32.mrf.mxu0
        %v745 = vadd.f32 %v645, %v744
        %746 = vmatmul.f32.gmra.mxu0 %v661
        %v747 = vpop.f32.mrf.mxu0
        %v748 = vadd.f32 %v645, %v747
        %749 = vdwg.mxu0
        %750 = vmatpush.msra.mxu0 0.0
        %751 = vmatpush.msra.mxu0 0.0
        %752 = vmatpush.msra.mxu0 0.0
        %753 = vmatpush.msra.mxu0 0.0
        %754 = vmatpush.msra.mxu0 0.0
        %755 = vmatpush.msra.mxu0 0.0
        %756 = vmatpush.msra.mxu0 0.0
        %757 = vmatpush.msra.mxu0 0.0
        %758 = vmatpush.msra.mxu0 0.0
        %759 = vmatpush.msra.mxu0 0.0
        %760 = vmatpush.msra.mxu0 0.0
        %761 = vmatpush.msra.mxu0 0.0
        %762 = vmatpush.msra.mxu0 0.0
        %763 = vmatpush.msra.mxu0 0.0
        %764 = vmatpush.msra.mxu0 %v640
        %765 = vmatpush.msra.mxu0 %v636
        %766 = vmatmul.f32.gmra.mxu0 %v652
        %v767 = vpop.f32.mrf.mxu0
        %v768 = vadd.f32 %v646, %v767
        %769 = vmatmul.f32.gmra.mxu0 %v655
        %v770 = vpop.f32.mrf.mxu0
        %v771 = vadd.f32 %v646, %v770
        %772 = vmatmul.f32.gmra.mxu0 %v658
        %v773 = vpop.f32.mrf.mxu0
        %v774 = vadd.f32 %v646, %v773
        %775 = vmatmul.f32.gmra.mxu0 %v661
        %v776 = vpop.f32.mrf.mxu0
        %v777 = vadd.f32 %v646, %v776
        %778 = vdwg.mxu0
        %779 = vst [vmem:[#allocation6] sm:$0xff] %v681
        %780 = vst [vmem:[#allocation6 + $0x8] sm:$0xff] %v710
        %781 = vst [vmem:[#allocation6 + $0x10] sm:$0xff] %v739
        %782 = vst [vmem:[#allocation6 + $0x18] sm:$0xff] %v768
        %783 = vst [vmem:[#allocation6 + $0x20] sm:$0xff] %v684
        %784 = vst [vmem:[#allocation6 + $0x28] sm:$0xff] %v713
        %785 = vst [vmem:[#allocation6 + $0x30] sm:$0xff] %v742
        %786 = vst [vmem:[#allocation6 + $0x38] sm:$0xff] %v771
        %787 = vst [vmem:[#allocation6 + $0x40] sm:$0xff] %v687
        %788 = vst [vmem:[#allocation6 + $0x48] sm:$0xff] %v716
        %789 = vst [vmem:[#allocation6 + $0x50] sm:$0xff] %v745
        %790 = vst [vmem:[#allocation6 + $0x58] sm:$0xff] %v774
        %791 = vst [vmem:[#allocation6 + $0x60] sm:$0xff] %v690
        %792 = vst [vmem:[#allocation6 + $0x68] sm:$0xff] %v719
        %793 = vst [vmem:[#allocation6 + $0x70] sm:$0xff] %v748
        %794 = vst [vmem:[#allocation6 + $0x78] sm:$0xff] %v777
        %v795 = vld [vmem:[#allocation2] sm:$0xff]
        %v796 = vld [vmem:[#allocation2 + $0x8] sm:$0xff]
        %v797 = vld [vmem:[#allocation3] sm:$0xff]
        %v798 = vld [vmem:[#allocation4] sm:$0xff]
        %v799 = vld [vmem:[#allocation15] sm:$0xff]
        %v800 = vld [vmem:[#allocation15 + $0x8] sm:$0xff]
        %v801 = vld [vmem:[#allocation15 + $0x10] sm:$0xff]
        %v802 = vld [vmem:[#allocation15 + $0x18] sm:$0xff]
        %v803 = vld [vmem:[#allocation15 + $0x20] sm:$0xff]
        %v804 = vld [vmem:[#allocation15 + $0x28] sm:$0xff]
        %v805 = vld [vmem:[#allocation15 + $0x30] sm:$0xff]
        %v806 = vld [vmem:[#allocation15 + $0x38] sm:$0xff]
        %v807 = vld [vmem:[#allocation15 + $0x40] sm:$0xff]
        %v808 = vld [vmem:[#allocation15 + $0x48] sm:$0xff]
        %v809 = vld [vmem:[#allocation15 + $0x50] sm:$0xff]
        %v810 = vld [vmem:[#allocation15 + $0x58] sm:$0xff]
        %v811 = vld [vmem:[#allocation15 + $0x60] sm:$0xff]
        %v812 = vld [vmem:[#allocation15 + $0x68] sm:$0xff]
        %v813 = vld [vmem:[#allocation15 + $0x70] sm:$0xff]
        %v814 = vld [vmem:[#allocation15 + $0x78] sm:$0xff]
        %v815 = vld [vmem:[#allocation15 + $0x80] sm:$0xff]
        %v816 = vld [vmem:[#allocation15 + $0x88] sm:$0xff]
        %v817 = vld [vmem:[#allocation15 + $0x90] sm:$0xff]
        %v818 = vld [vmem:[#allocation15 + $0x98] sm:$0xff]
        %v819 = vld [vmem:[#allocation15 + $0xa0] sm:$0xff]
        %v820 = vld [vmem:[#allocation15 + $0xa8] sm:$0xff]
        %v821 = vld [vmem:[#allocation15 + $0xb0] sm:$0xff]
        %v822 = vld [vmem:[#allocation15 + $0xb8] sm:$0xff]
        %v823 = vld [vmem:[#allocation15 + $0xc0] sm:$0xff]
        %v824 = vld [vmem:[#allocation15 + $0xc8] sm:$0xff]
        %v825 = vld [vmem:[#allocation15 + $0xd0] sm:$0xff]
        %v826 = vld [vmem:[#allocation15 + $0xd8] sm:$0xff]
        %v827 = vld [vmem:[#allocation15 + $0xe0] sm:$0xff]
        %v828 = vld [vmem:[#allocation15 + $0xe8] sm:$0xff]
        %v829 = vld [vmem:[#allocation15 + $0xf0] sm:$0xff]
        %v830 = vld [vmem:[#allocation15 + $0xf8] sm:$0xff]
        %v831 = vld [vmem:[#allocation15 + $0x100] sm:$0xff]
        %v832 = vld [vmem:[#allocation15 + $0x108] sm:$0xff]
        %v833 = vld [vmem:[#allocation15 + $0x110] sm:$0xff]
        %v834 = vld [vmem:[#allocation15 + $0x118] sm:$0xff]
        %v835 = vld [vmem:[#allocation15 + $0x120] sm:$0xff]
        %v836 = vld [vmem:[#allocation15 + $0x128] sm:$0xff]
        %v837 = vld [vmem:[#allocation15 + $0x130] sm:$0xff]
        %v838 = vld [vmem:[#allocation15 + $0x138] sm:$0xff]
        %v839 = vld [vmem:[#allocation15 + $0x140] sm:$0xff]
        %v840 = vld [vmem:[#allocation15 + $0x148] sm:$0xff]
        %v841 = vld [vmem:[#allocation15 + $0x150] sm:$0xff]
        %v842 = vld [vmem:[#allocation15 + $0x158] sm:$0xff]
        %v843 = vld [vmem:[#allocation15 + $0x160] sm:$0xff]
        %v844 = vld [vmem:[#allocation15 + $0x168] sm:$0xff]
        %v845 = vld [vmem:[#allocation15 + $0x170] sm:$0xff]
        %v846 = vld [vmem:[#allocation15 + $0x178] sm:$0xff]
        %v847 = vld [vmem:[#allocation15 + $0x180] sm:$0xff]
        %v848 = vld [vmem:[#allocation15 + $0x188] sm:$0xff]
        %v849 = vld [vmem:[#allocation15 + $0x190] sm:$0xff]
        %v850 = vld [vmem:[#allocation15 + $0x198] sm:$0xff]
        %v851 = vld [vmem:[#allocation15 + $0x1a0] sm:$0xff]
        %v852 = vld [vmem:[#allocation15 + $0x1a8] sm:$0xff]
        %v853 = vld [vmem:[#allocation15 + $0x1b0] sm:$0xff]
        %v854 = vld [vmem:[#allocation15 + $0x1b8] sm:$0xff]
        %v855 = vld [vmem:[#allocation15 + $0x1c0] sm:$0xff]
        %v856 = vld [vmem:[#allocation15 + $0x1c8] sm:$0xff]
        %v857 = vld [vmem:[#allocation15 + $0x1d0] sm:$0xff]
        %v858 = vld [vmem:[#allocation15 + $0x1d8] sm:$0xff]
        %v859 = vld [vmem:[#allocation15 + $0x1e0] sm:$0xff]
        %v860 = vld [vmem:[#allocation15 + $0x1e8] sm:$0xff]
        %v861 = vld [vmem:[#allocation15 + $0x1f0] sm:$0xff]
        %v862 = vld [vmem:[#allocation15 + $0x1f8] sm:$0xff]
        %v863 = vld [vmem:[#allocation15 + $0x200] sm:$0xff]
        %v864 = vld [vmem:[#allocation15 + $0x208] sm:$0xff]
        %v865 = vld [vmem:[#allocation15 + $0x210] sm:$0xff]
        %v866 = vld [vmem:[#allocation15 + $0x218] sm:$0xff]
        %v867 = vld [vmem:[#allocation15 + $0x220] sm:$0xff]
        %v868 = vld [vmem:[#allocation15 + $0x228] sm:$0xff]
        %v869 = vld [vmem:[#allocation15 + $0x230] sm:$0xff]
        %v870 = vld [vmem:[#allocation15 + $0x238] sm:$0xff]
        %v871 = vld [vmem:[#allocation15 + $0x240] sm:$0xff]
        %v872 = vld [vmem:[#allocation15 + $0x248] sm:$0xff]
        %v873 = vld [vmem:[#allocation15 + $0x250] sm:$0xff]
        %v874 = vld [vmem:[#allocation15 + $0x258] sm:$0xff]
        %v875 = vld [vmem:[#allocation15 + $0x260] sm:$0xff]
        %v876 = vld [vmem:[#allocation15 + $0x268] sm:$0xff]
        %v877 = vld [vmem:[#allocation15 + $0x270] sm:$0xff]
        %v878 = vld [vmem:[#allocation15 + $0x278] sm:$0xff]
        %v879 = vld [vmem:[#allocation15 + $0x280] sm:$0xff]
        %v880 = vld [vmem:[#allocation15 + $0x288] sm:$0xff]
        %v881 = vld [vmem:[#allocation15 + $0x290] sm:$0xff]
        %v882 = vld [vmem:[#allocation15 + $0x298] sm:$0xff]
        %v883 = vld [vmem:[#allocation15 + $0x2a0] sm:$0xff]
        %v884 = vld [vmem:[#allocation15 + $0x2a8] sm:$0xff]
        %v885 = vld [vmem:[#allocation15 + $0x2b0] sm:$0xff]
        %v886 = vld [vmem:[#allocation15 + $0x2b8] sm:$0xff]
        %v887 = vld [vmem:[#allocation15 + $0x2c0] sm:$0xff]
        %v888 = vld [vmem:[#allocation15 + $0x2c8] sm:$0xff]
        %v889 = vld [vmem:[#allocation15 + $0x2d0] sm:$0xff]
        %v890 = vld [vmem:[#allocation15 + $0x2d8] sm:$0xff]
        %v891 = vld [vmem:[#allocation15 + $0x2e0] sm:$0xff]
        %v892 = vld [vmem:[#allocation15 + $0x2e8] sm:$0xff]
        %v893 = vld [vmem:[#allocation15 + $0x2f0] sm:$0xff]
        %v894 = vld [vmem:[#allocation15 + $0x2f8] sm:$0xff]
        %v895 = vld [vmem:[#allocation15 + $0x300] sm:$0xff]
        %v896 = vld [vmem:[#allocation15 + $0x308] sm:$0xff]
        %v897 = vld [vmem:[#allocation15 + $0x310] sm:$0xff]
        %v898 = vld [vmem:[#allocation15 + $0x318] sm:$0xff]
        %v899 = vld [vmem:[#allocation15 + $0x320] sm:$0xff]
        %v900 = vld [vmem:[#allocation15 + $0x328] sm:$0xff]
        %v901 = vld [vmem:[#allocation15 + $0x330] sm:$0xff]
        %v902 = vld [vmem:[#allocation15 + $0x338] sm:$0xff]
        %v903 = vld [vmem:[#allocation15 + $0x340] sm:$0xff]
        %v904 = vld [vmem:[#allocation15 + $0x348] sm:$0xff]
        %v905 = vld [vmem:[#allocation15 + $0x350] sm:$0xff]
        %v906 = vld [vmem:[#allocation15 + $0x358] sm:$0xff]
        %v907 = vld [vmem:[#allocation15 + $0x360] sm:$0xff]
        %v908 = vld [vmem:[#allocation15 + $0x368] sm:$0xff]
        %v909 = vld [vmem:[#allocation15 + $0x370] sm:$0xff]
        %v910 = vld [vmem:[#allocation15 + $0x378] sm:$0xff]
        %v911 = vld [vmem:[#allocation15 + $0x380] sm:$0xff]
        %v912 = vld [vmem:[#allocation15 + $0x388] sm:$0xff]
        %v913 = vld [vmem:[#allocation15 + $0x390] sm:$0xff]
        %v914 = vld [vmem:[#allocation15 + $0x398] sm:$0xff]
        %v915 = vld [vmem:[#allocation15 + $0x3a0] sm:$0xff]
        %v916 = vld [vmem:[#allocation15 + $0x3a8] sm:$0xff]
        %v917 = vld [vmem:[#allocation15 + $0x3b0] sm:$0xff]
        %v918 = vld [vmem:[#allocation15 + $0x3b8] sm:$0xff]
        %v919 = vld [vmem:[#allocation15 + $0x3c0] sm:$0xff]
        %v920 = vld [vmem:[#allocation15 + $0x3c8] sm:$0xff]
        %v921 = vld [vmem:[#allocation15 + $0x3d0] sm:$0xff]
        %v922 = vld [vmem:[#allocation15 + $0x3d8] sm:$0xff]
        %v923 = vld [vmem:[#allocation15 + $0x3e0] sm:$0xff]
        %v924 = vld [vmem:[#allocation15 + $0x3e8] sm:$0xff]
        %v925 = vld [vmem:[#allocation15 + $0x3f0] sm:$0xff]
        %v926 = vld [vmem:[#allocation15 + $0x3f8] sm:$0xff]
        %v927 = vld [vmem:[#allocation15 + $0x400] sm:$0xff]
        %v928 = vld [vmem:[#allocation15 + $0x408] sm:$0xff]
        %v929 = vld [vmem:[#allocation15 + $0x410] sm:$0xff]
        %v930 = vld [vmem:[#allocation15 + $0x418] sm:$0xff]
        %v931 = vld [vmem:[#allocation15 + $0x420] sm:$0xff]
        %v932 = vld [vmem:[#allocation15 + $0x428] sm:$0xff]
        %v933 = vld [vmem:[#allocation15 + $0x430] sm:$0xff]
        %v934 = vld [vmem:[#allocation15 + $0x438] sm:$0xff]
        %v935 = vld [vmem:[#allocation15 + $0x440] sm:$0xff]
        %v936 = vld [vmem:[#allocation15 + $0x448] sm:$0xff]
        %v937 = vld [vmem:[#allocation15 + $0x450] sm:$0xff]
        %v938 = vld [vmem:[#allocation15 + $0x458] sm:$0xff]
        %v939 = vld [vmem:[#allocation15 + $0x460] sm:$0xff]
        %v940 = vld [vmem:[#allocation15 + $0x468] sm:$0xff]
        %v941 = vld [vmem:[#allocation15 + $0x470] sm:$0xff]
        %v942 = vld [vmem:[#allocation15 + $0x478] sm:$0xff]
        %v943 = vld [vmem:[#allocation15 + $0x480] sm:$0xff]
        %v944 = vld [vmem:[#allocation15 + $0x488] sm:$0xff]
        %v945 = vld [vmem:[#allocation15 + $0x490] sm:$0xff]
        %v946 = vld [vmem:[#allocation15 + $0x498] sm:$0xff]
        %v947 = vld [vmem:[#allocation15 + $0x4a0] sm:$0xff]
        %v948 = vld [vmem:[#allocation15 + $0x4a8] sm:$0xff]
        %v949 = vld [vmem:[#allocation15 + $0x4b0] sm:$0xff]
        %v950 = vld [vmem:[#allocation15 + $0x4b8] sm:$0xff]
        %v951 = vld [vmem:[#allocation15 + $0x4c0] sm:$0xff]
        %v952 = vld [vmem:[#allocation15 + $0x4c8] sm:$0xff]
        %v953 = vld [vmem:[#allocation15 + $0x4d0] sm:$0xff]
        %v954 = vld [vmem:[#allocation15 + $0x4d8] sm:$0xff]
        %v955 = vld [vmem:[#allocation15 + $0x4e0] sm:$0xff]
        %v956 = vld [vmem:[#allocation15 + $0x4e8] sm:$0xff]
        %v957 = vld [vmem:[#allocation15 + $0x4f0] sm:$0xff]
        %v958 = vld [vmem:[#allocation15 + $0x4f8] sm:$0xff]
        %v959 = vld [vmem:[#allocation15 + $0x500] sm:$0xff]
        %v960 = vld [vmem:[#allocation15 + $0x508] sm:$0xff]
        %v961 = vld [vmem:[#allocation15 + $0x510] sm:$0xff]
        %v962 = vld [vmem:[#allocation15 + $0x518] sm:$0xff]
        %v963 = vld [vmem:[#allocation15 + $0x520] sm:$0xff]
        %v964 = vld [vmem:[#allocation15 + $0x528] sm:$0xff]
        %v965 = vld [vmem:[#allocation15 + $0x530] sm:$0xff]
        %v966 = vld [vmem:[#allocation15 + $0x538] sm:$0xff]
        %v967 = vld [vmem:[#allocation15 + $0x540] sm:$0xff]
        %v968 = vld [vmem:[#allocation15 + $0x548] sm:$0xff]
        %v969 = vld [vmem:[#allocation15 + $0x550] sm:$0xff]
        %v970 = vld [vmem:[#allocation15 + $0x558] sm:$0xff]
        %v971 = vld [vmem:[#allocation15 + $0x560] sm:$0xff]
        %v972 = vld [vmem:[#allocation15 + $0x568] sm:$0xff]
        %v973 = vld [vmem:[#allocation15 + $0x570] sm:$0xff]
        %v974 = vld [vmem:[#allocation15 + $0x578] sm:$0xff]
        %v975 = vld [vmem:[#allocation15 + $0x580] sm:$0xff]
        %v976 = vld [vmem:[#allocation15 + $0x588] sm:$0xff]
        %v977 = vld [vmem:[#allocation15 + $0x590] sm:$0xff]
        %v978 = vld [vmem:[#allocation15 + $0x598] sm:$0xff]
        %v979 = vld [vmem:[#allocation15 + $0x5a0] sm:$0xff]
        %v980 = vld [vmem:[#allocation15 + $0x5a8] sm:$0xff]
        %v981 = vld [vmem:[#allocation15 + $0x5b0] sm:$0xff]
        %v982 = vld [vmem:[#allocation15 + $0x5b8] sm:$0xff]
        %v983 = vld [vmem:[#allocation15 + $0x5c0] sm:$0xff]
        %v984 = vld [vmem:[#allocation15 + $0x5c8] sm:$0xff]
        %v985 = vld [vmem:[#allocation15 + $0x5d0] sm:$0xff]
        %v986 = vld [vmem:[#allocation15 + $0x5d8] sm:$0xff]
        %v987 = vld [vmem:[#allocation15 + $0x5e0] sm:$0xff]
        %v988 = vld [vmem:[#allocation15 + $0x5e8] sm:$0xff]
        %v989 = vld [vmem:[#allocation15 + $0x5f0] sm:$0xff]
        %v990 = vld [vmem:[#allocation15 + $0x5f8] sm:$0xff]
        %v991 = vld [vmem:[#allocation15 + $0x600] sm:$0xff]
        %v992 = vld [vmem:[#allocation15 + $0x608] sm:$0xff]
        %v993 = vld [vmem:[#allocation15 + $0x610] sm:$0xff]
        %v994 = vld [vmem:[#allocation15 + $0x618] sm:$0xff]
        %v995 = vld [vmem:[#allocation15 + $0x620] sm:$0xff]
        %v996 = vld [vmem:[#allocation15 + $0x628] sm:$0xff]
        %v997 = vld [vmem:[#allocation15 + $0x630] sm:$0xff]
        %v998 = vld [vmem:[#allocation15 + $0x638] sm:$0xff]
        %v999 = vld [vmem:[#allocation15 + $0x640] sm:$0xff]
        %v1000 = vld [vmem:[#allocation15 + $0x648] sm:$0xff]
        %v1001 = vld [vmem:[#allocation15 + $0x650] sm:$0xff]
        %v1002 = vld [vmem:[#allocation15 + $0x658] sm:$0xff]
        %v1003 = vld [vmem:[#allocation15 + $0x660] sm:$0xff]
        %v1004 = vld [vmem:[#allocation15 + $0x668] sm:$0xff]
        %v1005 = vld [vmem:[#allocation15 + $0x670] sm:$0xff]
        %v1006 = vld [vmem:[#allocation15 + $0x678] sm:$0xff]
        %v1007 = vld [vmem:[#allocation15 + $0x680] sm:$0xff]
        %v1008 = vld [vmem:[#allocation15 + $0x688] sm:$0xff]
        %v1009 = vld [vmem:[#allocation15 + $0x690] sm:$0xff]
        %v1010 = vld [vmem:[#allocation15 + $0x698] sm:$0xff]
        %v1011 = vld [vmem:[#allocation15 + $0x6a0] sm:$0xff]
        %v1012 = vld [vmem:[#allocation15 + $0x6a8] sm:$0xff]
        %v1013 = vld [vmem:[#allocation15 + $0x6b0] sm:$0xff]
        %v1014 = vld [vmem:[#allocation15 + $0x6b8] sm:$0xff]
        %v1015 = vld [vmem:[#allocation15 + $0x6c0] sm:$0xff]
        %v1016 = vld [vmem:[#allocation15 + $0x6c8] sm:$0xff]
        %v1017 = vld [vmem:[#allocation15 + $0x6d0] sm:$0xff]
        %v1018 = vld [vmem:[#allocation15 + $0x6d8] sm:$0xff]
        %v1019 = vld [vmem:[#allocation15 + $0x6e0] sm:$0xff]
        %v1020 = vld [vmem:[#allocation15 + $0x6e8] sm:$0xff]
        %v1021 = vld [vmem:[#allocation15 + $0x6f0] sm:$0xff]
        %v1022 = vld [vmem:[#allocation15 + $0x6f8] sm:$0xff]
        %v1023 = vld [vmem:[#allocation15 + $0x700] sm:$0xff]
        %v1024 = vld [vmem:[#allocation15 + $0x708] sm:$0xff]
        %v1025 = vld [vmem:[#allocation15 + $0x710] sm:$0xff]
        %v1026 = vld [vmem:[#allocation15 + $0x718] sm:$0xff]
        %v1027 = vld [vmem:[#allocation15 + $0x720] sm:$0xff]
        %v1028 = vld [vmem:[#allocation15 + $0x728] sm:$0xff]
        %v1029 = vld [vmem:[#allocation15 + $0x730] sm:$0xff]
        %v1030 = vld [vmem:[#allocation15 + $0x738] sm:$0xff]
        %v1031 = vld [vmem:[#allocation15 + $0x740] sm:$0xff]
        %v1032 = vld [vmem:[#allocation15 + $0x748] sm:$0xff]
        %v1033 = vld [vmem:[#allocation15 + $0x750] sm:$0xff]
        %v1034 = vld [vmem:[#allocation15 + $0x758] sm:$0xff]
        %v1035 = vld [vmem:[#allocation15 + $0x760] sm:$0xff]
        %v1036 = vld [vmem:[#allocation15 + $0x768] sm:$0xff]
        %v1037 = vld [vmem:[#allocation15 + $0x770] sm:$0xff]
        %v1038 = vld [vmem:[#allocation15 + $0x778] sm:$0xff]
        %v1039 = vld [vmem:[#allocation15 + $0x780] sm:$0xff]
        %v1040 = vld [vmem:[#allocation15 + $0x788] sm:$0xff]
        %v1041 = vld [vmem:[#allocation15 + $0x790] sm:$0xff]
        %v1042 = vld [vmem:[#allocation15 + $0x798] sm:$0xff]
        %v1043 = vld [vmem:[#allocation15 + $0x7a0] sm:$0xff]
        %v1044 = vld [vmem:[#allocation15 + $0x7a8] sm:$0xff]
        %v1045 = vld [vmem:[#allocation15 + $0x7b0] sm:$0xff]
        %v1046 = vld [vmem:[#allocation15 + $0x7b8] sm:$0xff]
        %v1047 = vld [vmem:[#allocation15 + $0x7c0] sm:$0xff]
        %v1048 = vld [vmem:[#allocation15 + $0x7c8] sm:$0xff]
        %v1049 = vld [vmem:[#allocation15 + $0x7d0] sm:$0xff]
        %v1050 = vld [vmem:[#allocation15 + $0x7d8] sm:$0xff]
        %v1051 = vld [vmem:[#allocation15 + $0x7e0] sm:$0xff]
        %v1052 = vld [vmem:[#allocation15 + $0x7e8] sm:$0xff]
        %v1053 = vld [vmem:[#allocation15 + $0x7f0] sm:$0xff]
        %v1054 = vld [vmem:[#allocation15 + $0x7f8] sm:$0xff]
        %1055 = vmatpush.msra.mxu0 %v919
        %1056 = vmatpush.msra.mxu0 %v911
        %1057 = vmatpush.msra.mxu0 %v903
        %1058 = vmatpush.msra.mxu0 %v895
        %1059 = vmatpush.msra.mxu0 %v887
        %1060 = vmatpush.msra.mxu0 %v879
        %1061 = vmatpush.msra.mxu0 %v871
        %1062 = vmatpush.msra.mxu0 %v863
        %1063 = vmatpush.msra.mxu0 %v855
        %1064 = vmatpush.msra.mxu0 %v847
        %1065 = vmatpush.msra.mxu0 %v839
        %1066 = vmatpush.msra.mxu0 %v831
        %1067 = vmatpush.msra.mxu0 %v823
        %1068 = vmatpush.msra.mxu0 %v815
        %1069 = vmatpush.msra.mxu0 %v807
        %1070 = vmatpush.msra.mxu0 %v799
        %1071 = vmatmul.f32.gmra.mxu0 %v795
        %v1072 = vpop.f32.mrf.mxu0
        %v1073 = vadd.f32 0.0, %v1072
        %1074 = vdwg.mxu0
        %1075 = vmatpush.msra.mxu0 %v1047
        %1076 = vmatpush.msra.mxu0 %v1039
        %1077 = vmatpush.msra.mxu0 %v1031
        %1078 = vmatpush.msra.mxu0 %v1023
        %1079 = vmatpush.msra.mxu0 %v1015
        %1080 = vmatpush.msra.mxu0 %v1007
        %1081 = vmatpush.msra.mxu0 %v999
        %1082 = vmatpush.msra.mxu0 %v991
        %1083 = vmatpush.msra.mxu0 %v983
        %1084 = vmatpush.msra.mxu0 %v975
        %1085 = vmatpush.msra.mxu0 %v967
        %1086 = vmatpush.msra.mxu0 %v959
        %1087 = vmatpush.msra.mxu0 %v951
        %1088 = vmatpush.msra.mxu0 %v943
        %1089 = vmatpush.msra.mxu0 %v935
        %1090 = vmatpush.msra.mxu0 %v927
        %1091 = vmatmul.f32.gmra.mxu0 %v796
        %v1092 = vpop.f32.mrf.mxu0
        %v1093 = vadd.f32 %v1073, %v1092
        %1094 = vdwg.mxu0
        %1095 = vmatpush.msra.mxu0 %v920
        %1096 = vmatpush.msra.mxu0 %v912
        %1097 = vmatpush.msra.mxu0 %v904
        %1098 = vmatpush.msra.mxu0 %v896
        %1099 = vmatpush.msra.mxu0 %v888
        %1100 = vmatpush.msra.mxu0 %v880
        %1101 = vmatpush.msra.mxu0 %v872
        %1102 = vmatpush.msra.mxu0 %v864
        %1103 = vmatpush.msra.mxu0 %v856
        %1104 = vmatpush.msra.mxu0 %v848
        %1105 = vmatpush.msra.mxu0 %v840
        %1106 = vmatpush.msra.mxu0 %v832
        %1107 = vmatpush.msra.mxu0 %v824
        %1108 = vmatpush.msra.mxu0 %v816
        %1109 = vmatpush.msra.mxu0 %v808
        %1110 = vmatpush.msra.mxu0 %v800
        %1111 = vmatmul.f32.gmra.mxu0 %v795
        %v1112 = vpop.f32.mrf.mxu0
        %v1113 = vadd.f32 0.0, %v1112
        %1114 = vdwg.mxu0
        %1115 = vmatpush.msra.mxu0 %v1048
        %1116 = vmatpush.msra.mxu0 %v1040
        %1117 = vmatpush.msra.mxu0 %v1032
        %1118 = vmatpush.msra.mxu0 %v1024
        %1119 = vmatpush.msra.mxu0 %v1016
        %1120 = vmatpush.msra.mxu0 %v1008
        %1121 = vmatpush.msra.mxu0 %v1000
        %1122 = vmatpush.msra.mxu0 %v992
        %1123 = vmatpush.msra.mxu0 %v984
        %1124 = vmatpush.msra.mxu0 %v976
        %1125 = vmatpush.msra.mxu0 %v968
        %1126 = vmatpush.msra.mxu0 %v960
        %1127 = vmatpush.msra.mxu0 %v952
        %1128 = vmatpush.msra.mxu0 %v944
        %1129 = vmatpush.msra.mxu0 %v936
        %1130 = vmatpush.msra.mxu0 %v928
        %1131 = vmatmul.f32.gmra.mxu0 %v796
        %v1132 = vpop.f32.mrf.mxu0
        %v1133 = vadd.f32 %v1113, %v1132
        %1134 = vdwg.mxu0
        %1135 = vmatpush.msra.mxu0 %v921
        %1136 = vmatpush.msra.mxu0 %v913
        %1137 = vmatpush.msra.mxu0 %v905
        %1138 = vmatpush.msra.mxu0 %v897
        %1139 = vmatpush.msra.mxu0 %v889
        %1140 = vmatpush.msra.mxu0 %v881
        %1141 = vmatpush.msra.mxu0 %v873
        %1142 = vmatpush.msra.mxu0 %v865
        %1143 = vmatpush.msra.mxu0 %v857
        %1144 = vmatpush.msra.mxu0 %v849
        %1145 = vmatpush.msra.mxu0 %v841
        %1146 = vmatpush.msra.mxu0 %v833
        %1147 = vmatpush.msra.mxu0 %v825
        %1148 = vmatpush.msra.mxu0 %v817
        %1149 = vmatpush.msra.mxu0 %v809
        %1150 = vmatpush.msra.mxu0 %v801
        %1151 = vmatmul.f32.gmra.mxu0 %v795
        %v1152 = vpop.f32.mrf.mxu0
        %v1153 = vadd.f32 0.0, %v1152
        %1154 = vdwg.mxu0
        %1155 = vmatpush.msra.mxu0 %v1049
        %1156 = vmatpush.msra.mxu0 %v1041
        %1157 = vmatpush.msra.mxu0 %v1033
        %1158 = vmatpush.msra.mxu0 %v1025
        %1159 = vmatpush.msra.mxu0 %v1017
        %1160 = vmatpush.msra.mxu0 %v1009
        %1161 = vmatpush.msra.mxu0 %v1001
        %1162 = vmatpush.msra.mxu0 %v993
        %1163 = vmatpush.msra.mxu0 %v985
        %1164 = vmatpush.msra.mxu0 %v977
        %1165 = vmatpush.msra.mxu0 %v969
        %1166 = vmatpush.msra.mxu0 %v961
        %1167 = vmatpush.msra.mxu0 %v953
        %1168 = vmatpush.msra.mxu0 %v945
        %1169 = vmatpush.msra.mxu0 %v937
        %1170 = vmatpush.msra.mxu0 %v929
        %1171 = vmatmul.f32.gmra.mxu0 %v796
        %v1172 = vpop.f32.mrf.mxu0
        %v1173 = vadd.f32 %v1153, %v1172
        %1174 = vdwg.mxu0
        %1175 = vmatpush.msra.mxu0 %v922
        %1176 = vmatpush.msra.mxu0 %v914
        %1177 = vmatpush.msra.mxu0 %v906
        %1178 = vmatpush.msra.mxu0 %v898
        %1179 = vmatpush.msra.mxu0 %v890
        %1180 = vmatpush.msra.mxu0 %v882
        %1181 = vmatpush.msra.mxu0 %v874
        %1182 = vmatpush.msra.mxu0 %v866
        %1183 = vmatpush.msra.mxu0 %v858
        %1184 = vmatpush.msra.mxu0 %v850
        %1185 = vmatpush.msra.mxu0 %v842
        %1186 = vmatpush.msra.mxu0 %v834
        %1187 = vmatpush.msra.mxu0 %v826
        %1188 = vmatpush.msra.mxu0 %v818
        %1189 = vmatpush.msra.mxu0 %v810
        %1190 = vmatpush.msra.mxu0 %v802
        %1191 = vmatmul.f32.gmra.mxu0 %v795
        %v1192 = vpop.f32.mrf.mxu0
        %v1193 = vadd.f32 0.0, %v1192
        %1194 = vdwg.mxu0
        %1195 = vmatpush.msra.mxu0 %v1050
        %1196 = vmatpush.msra.mxu0 %v1042
        %1197 = vmatpush.msra.mxu0 %v1034
        %1198 = vmatpush.msra.mxu0 %v1026
        %1199 = vmatpush.msra.mxu0 %v1018
        %1200 = vmatpush.msra.mxu0 %v1010
        %1201 = vmatpush.msra.mxu0 %v1002
        %1202 = vmatpush.msra.mxu0 %v994
        %1203 = vmatpush.msra.mxu0 %v986
        %1204 = vmatpush.msra.mxu0 %v978
        %1205 = vmatpush.msra.mxu0 %v970
        %1206 = vmatpush.msra.mxu0 %v962
        %1207 = vmatpush.msra.mxu0 %v954
        %1208 = vmatpush.msra.mxu0 %v946
        %1209 = vmatpush.msra.mxu0 %v938
        %1210 = vmatpush.msra.mxu0 %v930
        %1211 = vmatmul.f32.gmra.mxu0 %v796
        %v1212 = vpop.f32.mrf.mxu0
        %v1213 = vadd.f32 %v1193, %v1212
        %1214 = vdwg.mxu0
        %1215 = vmatpush.msra.mxu0 %v923
        %1216 = vmatpush.msra.mxu0 %v915
        %1217 = vmatpush.msra.mxu0 %v907
        %1218 = vmatpush.msra.mxu0 %v899
        %1219 = vmatpush.msra.mxu0 %v891
        %1220 = vmatpush.msra.mxu0 %v883
        %1221 = vmatpush.msra.mxu0 %v875
        %1222 = vmatpush.msra.mxu0 %v867
        %1223 = vmatpush.msra.mxu0 %v859
        %1224 = vmatpush.msra.mxu0 %v851
        %1225 = vmatpush.msra.mxu0 %v843
        %1226 = vmatpush.msra.mxu0 %v835
        %1227 = vmatpush.msra.mxu0 %v827
        %1228 = vmatpush.msra.mxu0 %v819
        %1229 = vmatpush.msra.mxu0 %v811
        %1230 = vmatpush.msra.mxu0 %v803
        %1231 = vmatmul.f32.gmra.mxu0 %v795
        %v1232 = vpop.f32.mrf.mxu0
        %v1233 = vadd.f32 0.0, %v1232
        %1234 = vdwg.mxu0
        %1235 = vmatpush.msra.mxu0 %v1051
        %1236 = vmatpush.msra.mxu0 %v1043
        %1237 = vmatpush.msra.mxu0 %v1035
        %1238 = vmatpush.msra.mxu0 %v1027
        %1239 = vmatpush.msra.mxu0 %v1019
        %1240 = vmatpush.msra.mxu0 %v1011
        %1241 = vmatpush.msra.mxu0 %v1003
        %1242 = vmatpush.msra.mxu0 %v995
        %1243 = vmatpush.msra.mxu0 %v987
        %1244 = vmatpush.msra.mxu0 %v979
        %1245 = vmatpush.msra.mxu0 %v971
        %1246 = vmatpush.msra.mxu0 %v963
        %1247 = vmatpush.msra.mxu0 %v955
        %1248 = vmatpush.msra.mxu0 %v947
        %1249 = vmatpush.msra.mxu0 %v939
        %1250 = vmatpush.msra.mxu0 %v931
        %1251 = vmatmul.f32.gmra.mxu0 %v796
        %v1252 = vpop.f32.mrf.mxu0
        %v1253 = vadd.f32 %v1233, %v1252
        %1254 = vdwg.mxu0
        %1255 = vmatpush.msra.mxu0 %v924
        %1256 = vmatpush.msra.mxu0 %v916
        %1257 = vmatpush.msra.mxu0 %v908
        %1258 = vmatpush.msra.mxu0 %v900
        %1259 = vmatpush.msra.mxu0 %v892
        %1260 = vmatpush.msra.mxu0 %v884
        %1261 = vmatpush.msra.mxu0 %v876
        %1262 = vmatpush.msra.mxu0 %v868
        %1263 = vmatpush.msra.mxu0 %v860
        %1264 = vmatpush.msra.mxu0 %v852
        %1265 = vmatpush.msra.mxu0 %v844
        %1266 = vmatpush.msra.mxu0 %v836
        %1267 = vmatpush.msra.mxu0 %v828
        %1268 = vmatpush.msra.mxu0 %v820
        %1269 = vmatpush.msra.mxu0 %v812
        %1270 = vmatpush.msra.mxu0 %v804
        %1271 = vmatmul.f32.gmra.mxu0 %v795
        %v1272 = vpop.f32.mrf.mxu0
        %v1273 = vadd.f32 0.0, %v1272
        %1274 = vdwg.mxu0
        %1275 = vmatpush.msra.mxu0 %v1052
        %1276 = vmatpush.msra.mxu0 %v1044
        %1277 = vmatpush.msra.mxu0 %v1036
        %1278 = vmatpush.msra.mxu0 %v1028
        %1279 = vmatpush.msra.mxu0 %v1020
        %1280 = vmatpush.msra.mxu0 %v1012
        %1281 = vmatpush.msra.mxu0 %v1004
        %1282 = vmatpush.msra.mxu0 %v996
        %1283 = vmatpush.msra.mxu0 %v988
        %1284 = vmatpush.msra.mxu0 %v980
        %1285 = vmatpush.msra.mxu0 %v972
        %1286 = vmatpush.msra.mxu0 %v964
        %1287 = vmatpush.msra.mxu0 %v956
        %1288 = vmatpush.msra.mxu0 %v948
        %1289 = vmatpush.msra.mxu0 %v940
        %1290 = vmatpush.msra.mxu0 %v932
        %1291 = vmatmul.f32.gmra.mxu0 %v796
        %v1292 = vpop.f32.mrf.mxu0
        %v1293 = vadd.f32 %v1273, %v1292
        %1294 = vdwg.mxu0
        %1295 = vmatpush.msra.mxu0 %v925
        %1296 = vmatpush.msra.mxu0 %v917
        %1297 = vmatpush.msra.mxu0 %v909
        %1298 = vmatpush.msra.mxu0 %v901
        %1299 = vmatpush.msra.mxu0 %v893
        %1300 = vmatpush.msra.mxu0 %v885
        %1301 = vmatpush.msra.mxu0 %v877
        %1302 = vmatpush.msra.mxu0 %v869
        %1303 = vmatpush.msra.mxu0 %v861
        %1304 = vmatpush.msra.mxu0 %v853
        %1305 = vmatpush.msra.mxu0 %v845
        %1306 = vmatpush.msra.mxu0 %v837
        %1307 = vmatpush.msra.mxu0 %v829
        %1308 = vmatpush.msra.mxu0 %v821
        %1309 = vmatpush.msra.mxu0 %v813
        %1310 = vmatpush.msra.mxu0 %v805
        %1311 = vmatmul.f32.gmra.mxu0 %v795
        %v1312 = vpop.f32.mrf.mxu0
        %v1313 = vadd.f32 0.0, %v1312
        %1314 = vdwg.mxu0
        %1315 = vmatpush.msra.mxu0 %v1053
        %1316 = vmatpush.msra.mxu0 %v1045
        %1317 = vmatpush.msra.mxu0 %v1037
        %1318 = vmatpush.msra.mxu0 %v1029
        %1319 = vmatpush.msra.mxu0 %v1021
        %1320 = vmatpush.msra.mxu0 %v1013
        %1321 = vmatpush.msra.mxu0 %v1005
        %1322 = vmatpush.msra.mxu0 %v997
        %1323 = vmatpush.msra.mxu0 %v989
        %1324 = vmatpush.msra.mxu0 %v981
        %1325 = vmatpush.msra.mxu0 %v973
        %1326 = vmatpush.msra.mxu0 %v965
        %1327 = vmatpush.msra.mxu0 %v957
        %1328 = vmatpush.msra.mxu0 %v949
        %1329 = vmatpush.msra.mxu0 %v941
        %1330 = vmatpush.msra.mxu0 %v933
        %1331 = vmatmul.f32.gmra.mxu0 %v796
        %v1332 = vpop.f32.mrf.mxu0
        %v1333 = vadd.f32 %v1313, %v1332
        %1334 = vdwg.mxu0
        %1335 = vmatpush.msra.mxu0 %v926
        %1336 = vmatpush.msra.mxu0 %v918
        %1337 = vmatpush.msra.mxu0 %v910
        %1338 = vmatpush.msra.mxu0 %v902
        %1339 = vmatpush.msra.mxu0 %v894
        %1340 = vmatpush.msra.mxu0 %v886
        %1341 = vmatpush.msra.mxu0 %v878
        %1342 = vmatpush.msra.mxu0 %v870
        %1343 = vmatpush.msra.mxu0 %v862
        %1344 = vmatpush.msra.mxu0 %v854
        %1345 = vmatpush.msra.mxu0 %v846
        %1346 = vmatpush.msra.mxu0 %v838
        %1347 = vmatpush.msra.mxu0 %v830
        %1348 = vmatpush.msra.mxu0 %v822
        %1349 = vmatpush.msra.mxu0 %v814
        %1350 = vmatpush.msra.mxu0 %v806
        %1351 = vmatmul.f32.gmra.mxu0 %v795
        %v1352 = vpop.f32.mrf.mxu0
        %v1353 = vadd.f32 0.0, %v1352
        %1354 = vdwg.mxu0
        %1355 = vmatpush.msra.mxu0 %v1054
        %1356 = vmatpush.msra.mxu0 %v1046
        %1357 = vmatpush.msra.mxu0 %v1038
        %1358 = vmatpush.msra.mxu0 %v1030
        %1359 = vmatpush.msra.mxu0 %v1022
        %1360 = vmatpush.msra.mxu0 %v1014
        %1361 = vmatpush.msra.mxu0 %v1006
        %1362 = vmatpush.msra.mxu0 %v998
        %1363 = vmatpush.msra.mxu0 %v990
        %1364 = vmatpush.msra.mxu0 %v982
        %1365 = vmatpush.msra.mxu0 %v974
        %1366 = vmatpush.msra.mxu0 %v966
        %1367 = vmatpush.msra.mxu0 %v958
        %1368 = vmatpush.msra.mxu0 %v950
        %1369 = vmatpush.msra.mxu0 %v942
        %1370 = vmatpush.msra.mxu0 %v934
        %1371 = vmatmul.f32.gmra.mxu0 %v796
        %v1372 = vpop.f32.mrf.mxu0
        %v1373 = vadd.f32 %v1353, %v1372
        %1374 = vdwg.mxu0
        %v1375 = vld [vmem:[#allocation5] sm:$0xff]
        %v1376 = vld [vmem:[#allocation5 + $0x8] sm:$0xff]
        %v1377 = vld [vmem:[#allocation5 + $0x10] sm:$0xff]
        %v1378 = vld [vmem:[#allocation5 + $0x18] sm:$0xff]
        %v1379 = vadd.f32 %v1375, %v1093
        %v1380 = vadd.f32 %v1376, %v1133
        %v1381 = vadd.f32 %v1377, %v1173
        %v1382 = vadd.f32 %v1378, %v1213
        %s1383 = scalar_lea.vmem [#allocation6], 96
        %v1384 = vld [vmem:[%s1383] sm:$0xff]
        %v1385 = vld [vmem:[%s1383 + $0x8] sm:$0xff]
        %v1386 = vld [vmem:[%s1383 + $0x10] sm:$0xff]
        %v1387 = vld [vmem:[%s1383 + $0x18] sm:$0xff]
        %v1388 = vadd.f32 %v1384, %v1253
        %v1389 = vadd.f32 %v1385, %v1293
        %v1390 = vadd.f32 %v1386, %v1333
        %v1391 = vadd.f32 %v1387, %v1373
        %v1392 = vxor.u32 %v1379, 2147483648
        %v1393 = vmul.f32 %v1392, 1.442695
        %v1394 = vpow.pop %v1393
        %v1395 = vadd.f32 %v1394, 1.0
        %v1396 = vrcp.pop %v1395
        %v1397 = vmul.f32 %v1395, %v1396
        %v1398 = vsub.f32 1.0, %v1397
        %v1399 = vmul.f32 %v1396, %v1398
        %v1400 = vadd.f32 %v1396, %v1399
        %vm1401 = vweird.f32 %v1395
        %vm1402 = vweird.f32 %v1396
        %vm1403 = vmor %vm1401, %vm1402
        %v1404 = vsel %vm1403, %v1396, %v1400
        %v1405 = vand.u32 2147483647, %v1395
        %vm1406 = vcmp.eq.f32.partialorder %v1405, 8.507059e+37
        %v1407 = vand.u32 %v1395, 2147483648
        %v1408 = vor.u32 1.1754944e-38, %v1407
        %v1409 = vsel %vm1406, %v1408, %v1404
        %v1410 = vmul.f32 1.0, %v1409
        %v1411 = vxor.u32 %v1380, 2147483648
        %v1412 = vmul.f32 %v1411, 1.442695
        %v1413 = vpow.pop %v1412
        %v1414 = vadd.f32 %v1413, 1.0
        %v1415 = vrcp.pop %v1414
        %v1416 = vmul.f32 %v1414, %v1415
        %v1417 = vsub.f32 1.0, %v1416
        %v1418 = vmul.f32 %v1415, %v1417
        %v1419 = vadd.f32 %v1415, %v1418
        %vm1420 = vweird.f32 %v1414
        %vm1421 = vweird.f32 %v1415
        %vm1422 = vmor %vm1420, %vm1421
        %v1423 = vsel %vm1422, %v1415, %v1419
        %v1424 = vand.u32 2147483647, %v1414
        %vm1425 = vcmp.eq.f32.partialorder %v1424, 8.507059e+37
        %v1426 = vand.u32 %v1414, 2147483648
        %v1427 = vor.u32 1.1754944e-38, %v1426
        %v1428 = vsel %vm1425, %v1427, %v1423
        %v1429 = vmul.f32 1.0, %v1428
        %v1430 = vtanh.pop %v1381
        %v1431 = vxor.u32 %v1382, 2147483648
        %v1432 = vmul.f32 %v1431, 1.442695
        %v1433 = vpow.pop %v1432
        %v1434 = vadd.f32 %v1433, 1.0
        %v1435 = vrcp.pop %v1434
        %v1436 = vmul.f32 %v1434, %v1435
        %v1437 = vsub.f32 1.0, %v1436
        %v1438 = vmul.f32 %v1435, %v1437
        %v1439 = vadd.f32 %v1435, %v1438
        %vm1440 = vweird.f32 %v1434
        %vm1441 = vweird.f32 %v1435
        %vm1442 = vmor %vm1440, %vm1441
        %v1443 = vsel %vm1442, %v1435, %v1439
        %v1444 = vand.u32 2147483647, %v1434
        %vm1445 = vcmp.eq.f32.partialorder %v1444, 8.507059e+37
        %v1446 = vand.u32 %v1434, 2147483648
        %v1447 = vor.u32 1.1754944e-38, %v1446
        %v1448 = vsel %vm1445, %v1447, %v1443
        %v1449 = vmul.f32 1.0, %v1448
        %v1450 = vmul.f32 %v1429, %v797
        %v1451 = vmul.f32 %v1410, %v1430
        %v1452 = vadd.f32 %v1450, %v1451
        %v1453 = vtanh.pop %v1452
        %v1454 = vmul.f32 %v1449, %v1453
        %v1455 = vxor.u32 %v1388, 2147483648
        %v1456 = vmul.f32 %v1455, 1.442695
        %v1457 = vpow.pop %v1456
        %v1458 = vadd.f32 %v1457, 1.0
        %v1459 = vrcp.pop %v1458
        %v1460 = vmul.f32 %v1458, %v1459
        %v1461 = vsub.f32 1.0, %v1460
        %v1462 = vmul.f32 %v1459, %v1461
        %v1463 = vadd.f32 %v1459, %v1462
        %vm1464 = vweird.f32 %v1458
        %vm1465 = vweird.f32 %v1459
        %vm1466 = vmor %vm1464, %vm1465
        %v1467 = vsel %vm1466, %v1459, %v1463
        %v1468 = vand.u32 2147483647, %v1458
        %vm1469 = vcmp.eq.f32.partialorder %v1468, 8.507059e+37
        %v1470 = vand.u32 %v1458, 2147483648
        %v1471 = vor.u32 1.1754944e-38, %v1470
        %v1472 = vsel %vm1469, %v1471, %v1467
        %v1473 = vmul.f32 1.0, %v1472
        %v1474 = vxor.u32 %v1389, 2147483648
        %v1475 = vmul.f32 %v1474, 1.442695
        %v1476 = vpow.pop %v1475
        %v1477 = vadd.f32 %v1476, 1.0
        %v1478 = vrcp.pop %v1477
        %v1479 = vmul.f32 %v1477, %v1478
        %v1480 = vsub.f32 1.0, %v1479
        %v1481 = vmul.f32 %v1478, %v1480
        %v1482 = vadd.f32 %v1478, %v1481
        %vm1483 = vweird.f32 %v1477
        %vm1484 = vweird.f32 %v1478
        %vm1485 = vmor %vm1483, %vm1484
        %v1486 = vsel %vm1485, %v1478, %v1482
        %v1487 = vand.u32 2147483647, %v1477
        %vm1488 = vcmp.eq.f32.partialorder %v1487, 8.507059e+37
        %v1489 = vand.u32 %v1477, 2147483648
        %v1490 = vor.u32 1.1754944e-38, %v1489
        %v1491 = vsel %vm1488, %v1490, %v1486
        %v1492 = vmul.f32 1.0, %v1491
        %v1493 = vtanh.pop %v1390
        %v1494 = vxor.u32 %v1391, 2147483648
        %v1495 = vmul.f32 %v1494, 1.442695
        %v1496 = vpow.pop %v1495
        %v1497 = vadd.f32 %v1496, 1.0
        %v1498 = vrcp.pop %v1497
        %v1499 = vmul.f32 %v1497, %v1498
        %v1500 = vsub.f32 1.0, %v1499
        %v1501 = vmul.f32 %v1498, %v1500
        %v1502 = vadd.f32 %v1498, %v1501
        %vm1503 = vweird.f32 %v1497
        %vm1504 = vweird.f32 %v1498
        %vm1505 = vmor %vm1503, %vm1504
        %v1506 = vsel %vm1505, %v1498, %v1502
        %v1507 = vand.u32 2147483647, %v1497
        %vm1508 = vcmp.eq.f32.partialorder %v1507, 8.507059e+37
        %v1509 = vand.u32 %v1497, 2147483648
        %v1510 = vor.u32 1.1754944e-38, %v1509
        %v1511 = vsel %vm1508, %v1510, %v1506
        %v1512 = vmul.f32 1.0, %v1511
        %v1513 = vmul.f32 %v1492, %v798
        %v1514 = vmul.f32 %v1473, %v1493
        %v1515 = vadd.f32 %v1513, %v1514
        %v1516 = vtanh.pop %v1515
        %v1517 = vmul.f32 %v1512, %v1516
        %1518 = vst [vmem:[%s440] sm:$0xff] %v1454
        %s1519 = scalar_lea.vmem %s447, 24 [#allocation19]
        %1520 = vst [vmem:[%s1519] sm:$0xff] %v1517
        %v1521 = vld [vmem:[#allocation15] sm:$0xff]
        %v1522 = vld [vmem:[#allocation15 + $0x8] sm:$0xff]
        %v1523 = vld [vmem:[#allocation15 + $0x10] sm:$0xff]
        %v1524 = vld [vmem:[#allocation15 + $0x18] sm:$0xff]
        %v1525 = vld [vmem:[#allocation15 + $0x20] sm:$0xff]
        %v1526 = vld [vmem:[#allocation15 + $0x28] sm:$0xff]
        %v1527 = vld [vmem:[#allocation15 + $0x30] sm:$0xff]
        %v1528 = vld [vmem:[#allocation15 + $0x38] sm:$0xff]
        %v1529 = vld [vmem:[#allocation15 + $0x40] sm:$0xff]
        %v1530 = vld [vmem:[#allocation15 + $0x48] sm:$0xff]
        %v1531 = vld [vmem:[#allocation15 + $0x50] sm:$0xff]
        %v1532 = vld [vmem:[#allocation15 + $0x58] sm:$0xff]
        %v1533 = vld [vmem:[#allocation15 + $0x60] sm:$0xff]
        %v1534 = vld [vmem:[#allocation15 + $0x68] sm:$0xff]
        %v1535 = vld [vmem:[#allocation15 + $0x70] sm:$0xff]
        %v1536 = vld [vmem:[#allocation15 + $0x78] sm:$0xff]
        %v1537 = vld [vmem:[#allocation15 + $0x80] sm:$0xff]
        %v1538 = vld [vmem:[#allocation15 + $0x88] sm:$0xff]
        %v1539 = vld [vmem:[#allocation15 + $0x90] sm:$0xff]
        %v1540 = vld [vmem:[#allocation15 + $0x98] sm:$0xff]
        %v1541 = vld [vmem:[#allocation15 + $0xa0] sm:$0xff]
        %v1542 = vld [vmem:[#allocation15 + $0xa8] sm:$0xff]
        %v1543 = vld [vmem:[#allocation15 + $0xb0] sm:$0xff]
        %v1544 = vld [vmem:[#allocation15 + $0xb8] sm:$0xff]
        %v1545 = vld [vmem:[#allocation15 + $0xc0] sm:$0xff]
        %v1546 = vld [vmem:[#allocation15 + $0xc8] sm:$0xff]
        %v1547 = vld [vmem:[#allocation15 + $0xd0] sm:$0xff]
        %v1548 = vld [vmem:[#allocation15 + $0xd8] sm:$0xff]
        %v1549 = vld [vmem:[#allocation15 + $0xe0] sm:$0xff]
        %v1550 = vld [vmem:[#allocation15 + $0xe8] sm:$0xff]
        %v1551 = vld [vmem:[#allocation15 + $0xf0] sm:$0xff]
        %v1552 = vld [vmem:[#allocation15 + $0xf8] sm:$0xff]
        %v1553 = vld [vmem:[#allocation15 + $0x100] sm:$0xff]
        %v1554 = vld [vmem:[#allocation15 + $0x108] sm:$0xff]
        %v1555 = vld [vmem:[#allocation15 + $0x110] sm:$0xff]
        %v1556 = vld [vmem:[#allocation15 + $0x118] sm:$0xff]
        %v1557 = vld [vmem:[#allocation15 + $0x120] sm:$0xff]
        %v1558 = vld [vmem:[#allocation15 + $0x128] sm:$0xff]
        %v1559 = vld [vmem:[#allocation15 + $0x130] sm:$0xff]
        %v1560 = vld [vmem:[#allocation15 + $0x138] sm:$0xff]
        %v1561 = vld [vmem:[#allocation15 + $0x140] sm:$0xff]
        %v1562 = vld [vmem:[#allocation15 + $0x148] sm:$0xff]
        %v1563 = vld [vmem:[#allocation15 + $0x150] sm:$0xff]
        %v1564 = vld [vmem:[#allocation15 + $0x158] sm:$0xff]
        %v1565 = vld [vmem:[#allocation15 + $0x160] sm:$0xff]
        %v1566 = vld [vmem:[#allocation15 + $0x168] sm:$0xff]
        %v1567 = vld [vmem:[#allocation15 + $0x170] sm:$0xff]
        %v1568 = vld [vmem:[#allocation15 + $0x178] sm:$0xff]
        %v1569 = vld [vmem:[#allocation15 + $0x180] sm:$0xff]
        %v1570 = vld [vmem:[#allocation15 + $0x188] sm:$0xff]
        %v1571 = vld [vmem:[#allocation15 + $0x190] sm:$0xff]
        %v1572 = vld [vmem:[#allocation15 + $0x198] sm:$0xff]
        %v1573 = vld [vmem:[#allocation15 + $0x1a0] sm:$0xff]
        %v1574 = vld [vmem:[#allocation15 + $0x1a8] sm:$0xff]
        %v1575 = vld [vmem:[#allocation15 + $0x1b0] sm:$0xff]
        %v1576 = vld [vmem:[#allocation15 + $0x1b8] sm:$0xff]
        %v1577 = vld [vmem:[#allocation15 + $0x1c0] sm:$0xff]
        %v1578 = vld [vmem:[#allocation15 + $0x1c8] sm:$0xff]
        %v1579 = vld [vmem:[#allocation15 + $0x1d0] sm:$0xff]
        %v1580 = vld [vmem:[#allocation15 + $0x1d8] sm:$0xff]
        %v1581 = vld [vmem:[#allocation15 + $0x1e0] sm:$0xff]
        %v1582 = vld [vmem:[#allocation15 + $0x1e8] sm:$0xff]
        %v1583 = vld [vmem:[#allocation15 + $0x1f0] sm:$0xff]
        %v1584 = vld [vmem:[#allocation15 + $0x1f8] sm:$0xff]
        %v1585 = vld [vmem:[#allocation15 + $0x200] sm:$0xff]
        %v1586 = vld [vmem:[#allocation15 + $0x208] sm:$0xff]
        %v1587 = vld [vmem:[#allocation15 + $0x210] sm:$0xff]
        %v1588 = vld [vmem:[#allocation15 + $0x218] sm:$0xff]
        %v1589 = vld [vmem:[#allocation15 + $0x220] sm:$0xff]
        %v1590 = vld [vmem:[#allocation15 + $0x228] sm:$0xff]
        %v1591 = vld [vmem:[#allocation15 + $0x230] sm:$0xff]
        %v1592 = vld [vmem:[#allocation15 + $0x238] sm:$0xff]
        %v1593 = vld [vmem:[#allocation15 + $0x240] sm:$0xff]
        %v1594 = vld [vmem:[#allocation15 + $0x248] sm:$0xff]
        %v1595 = vld [vmem:[#allocation15 + $0x250] sm:$0xff]
        %v1596 = vld [vmem:[#allocation15 + $0x258] sm:$0xff]
        %v1597 = vld [vmem:[#allocation15 + $0x260] sm:$0xff]
        %v1598 = vld [vmem:[#allocation15 + $0x268] sm:$0xff]
        %v1599 = vld [vmem:[#allocation15 + $0x270] sm:$0xff]
        %v1600 = vld [vmem:[#allocation15 + $0x278] sm:$0xff]
        %v1601 = vld [vmem:[#allocation15 + $0x280] sm:$0xff]
        %v1602 = vld [vmem:[#allocation15 + $0x288] sm:$0xff]
        %v1603 = vld [vmem:[#allocation15 + $0x290] sm:$0xff]
        %v1604 = vld [vmem:[#allocation15 + $0x298] sm:$0xff]
        %v1605 = vld [vmem:[#allocation15 + $0x2a0] sm:$0xff]
        %v1606 = vld [vmem:[#allocation15 + $0x2a8] sm:$0xff]
        %v1607 = vld [vmem:[#allocation15 + $0x2b0] sm:$0xff]
        %v1608 = vld [vmem:[#allocation15 + $0x2b8] sm:$0xff]
        %v1609 = vld [vmem:[#allocation15 + $0x2c0] sm:$0xff]
        %v1610 = vld [vmem:[#allocation15 + $0x2c8] sm:$0xff]
        %v1611 = vld [vmem:[#allocation15 + $0x2d0] sm:$0xff]
        %v1612 = vld [vmem:[#allocation15 + $0x2d8] sm:$0xff]
        %v1613 = vld [vmem:[#allocation15 + $0x2e0] sm:$0xff]
        %v1614 = vld [vmem:[#allocation15 + $0x2e8] sm:$0xff]
        %v1615 = vld [vmem:[#allocation15 + $0x2f0] sm:$0xff]
        %v1616 = vld [vmem:[#allocation15 + $0x2f8] sm:$0xff]
        %v1617 = vld [vmem:[#allocation15 + $0x300] sm:$0xff]
        %v1618 = vld [vmem:[#allocation15 + $0x308] sm:$0xff]
        %v1619 = vld [vmem:[#allocation15 + $0x310] sm:$0xff]
        %v1620 = vld [vmem:[#allocation15 + $0x318] sm:$0xff]
        %v1621 = vld [vmem:[#allocation15 + $0x320] sm:$0xff]
        %v1622 = vld [vmem:[#allocation15 + $0x328] sm:$0xff]
        %v1623 = vld [vmem:[#allocation15 + $0x330] sm:$0xff]
        %v1624 = vld [vmem:[#allocation15 + $0x338] sm:$0xff]
        %v1625 = vld [vmem:[#allocation15 + $0x340] sm:$0xff]
        %v1626 = vld [vmem:[#allocation15 + $0x348] sm:$0xff]
        %v1627 = vld [vmem:[#allocation15 + $0x350] sm:$0xff]
        %v1628 = vld [vmem:[#allocation15 + $0x358] sm:$0xff]
        %v1629 = vld [vmem:[#allocation15 + $0x360] sm:$0xff]
        %v1630 = vld [vmem:[#allocation15 + $0x368] sm:$0xff]
        %v1631 = vld [vmem:[#allocation15 + $0x370] sm:$0xff]
        %v1632 = vld [vmem:[#allocation15 + $0x378] sm:$0xff]
        %v1633 = vld [vmem:[#allocation15 + $0x380] sm:$0xff]
        %v1634 = vld [vmem:[#allocation15 + $0x388] sm:$0xff]
        %v1635 = vld [vmem:[#allocation15 + $0x390] sm:$0xff]
        %v1636 = vld [vmem:[#allocation15 + $0x398] sm:$0xff]
        %v1637 = vld [vmem:[#allocation15 + $0x3a0] sm:$0xff]
        %v1638 = vld [vmem:[#allocation15 + $0x3a8] sm:$0xff]
        %v1639 = vld [vmem:[#allocation15 + $0x3b0] sm:$0xff]
        %v1640 = vld [vmem:[#allocation15 + $0x3b8] sm:$0xff]
        %v1641 = vld [vmem:[#allocation15 + $0x3c0] sm:$0xff]
        %v1642 = vld [vmem:[#allocation15 + $0x3c8] sm:$0xff]
        %v1643 = vld [vmem:[#allocation15 + $0x3d0] sm:$0xff]
        %v1644 = vld [vmem:[#allocation15 + $0x3d8] sm:$0xff]
        %v1645 = vld [vmem:[#allocation15 + $0x3e0] sm:$0xff]
        %v1646 = vld [vmem:[#allocation15 + $0x3e8] sm:$0xff]
        %v1647 = vld [vmem:[#allocation15 + $0x3f0] sm:$0xff]
        %v1648 = vld [vmem:[#allocation15 + $0x3f8] sm:$0xff]
        %v1649 = vld [vmem:[#allocation15 + $0x400] sm:$0xff]
        %v1650 = vld [vmem:[#allocation15 + $0x408] sm:$0xff]
        %v1651 = vld [vmem:[#allocation15 + $0x410] sm:$0xff]
        %v1652 = vld [vmem:[#allocation15 + $0x418] sm:$0xff]
        %v1653 = vld [vmem:[#allocation15 + $0x420] sm:$0xff]
        %v1654 = vld [vmem:[#allocation15 + $0x428] sm:$0xff]
        %v1655 = vld [vmem:[#allocation15 + $0x430] sm:$0xff]
        %v1656 = vld [vmem:[#allocation15 + $0x438] sm:$0xff]
        %v1657 = vld [vmem:[#allocation15 + $0x440] sm:$0xff]
        %v1658 = vld [vmem:[#allocation15 + $0x448] sm:$0xff]
        %v1659 = vld [vmem:[#allocation15 + $0x450] sm:$0xff]
        %v1660 = vld [vmem:[#allocation15 + $0x458] sm:$0xff]
        %v1661 = vld [vmem:[#allocation15 + $0x460] sm:$0xff]
        %v1662 = vld [vmem:[#allocation15 + $0x468] sm:$0xff]
        %v1663 = vld [vmem:[#allocation15 + $0x470] sm:$0xff]
        %v1664 = vld [vmem:[#allocation15 + $0x478] sm:$0xff]
        %v1665 = vld [vmem:[#allocation15 + $0x480] sm:$0xff]
        %v1666 = vld [vmem:[#allocation15 + $0x488] sm:$0xff]
        %v1667 = vld [vmem:[#allocation15 + $0x490] sm:$0xff]
        %v1668 = vld [vmem:[#allocation15 + $0x498] sm:$0xff]
        %v1669 = vld [vmem:[#allocation15 + $0x4a0] sm:$0xff]
        %v1670 = vld [vmem:[#allocation15 + $0x4a8] sm:$0xff]
        %v1671 = vld [vmem:[#allocation15 + $0x4b0] sm:$0xff]
        %v1672 = vld [vmem:[#allocation15 + $0x4b8] sm:$0xff]
        %v1673 = vld [vmem:[#allocation15 + $0x4c0] sm:$0xff]
        %v1674 = vld [vmem:[#allocation15 + $0x4c8] sm:$0xff]
        %v1675 = vld [vmem:[#allocation15 + $0x4d0] sm:$0xff]
        %v1676 = vld [vmem:[#allocation15 + $0x4d8] sm:$0xff]
        %v1677 = vld [vmem:[#allocation15 + $0x4e0] sm:$0xff]
        %v1678 = vld [vmem:[#allocation15 + $0x4e8] sm:$0xff]
        %v1679 = vld [vmem:[#allocation15 + $0x4f0] sm:$0xff]
        %v1680 = vld [vmem:[#allocation15 + $0x4f8] sm:$0xff]
        %v1681 = vld [vmem:[#allocation15 + $0x500] sm:$0xff]
        %v1682 = vld [vmem:[#allocation15 + $0x508] sm:$0xff]
        %v1683 = vld [vmem:[#allocation15 + $0x510] sm:$0xff]
        %v1684 = vld [vmem:[#allocation15 + $0x518] sm:$0xff]
        %v1685 = vld [vmem:[#allocation15 + $0x520] sm:$0xff]
        %v1686 = vld [vmem:[#allocation15 + $0x528] sm:$0xff]
        %v1687 = vld [vmem:[#allocation15 + $0x530] sm:$0xff]
        %v1688 = vld [vmem:[#allocation15 + $0x538] sm:$0xff]
        %v1689 = vld [vmem:[#allocation15 + $0x540] sm:$0xff]
        %v1690 = vld [vmem:[#allocation15 + $0x548] sm:$0xff]
        %v1691 = vld [vmem:[#allocation15 + $0x550] sm:$0xff]
        %v1692 = vld [vmem:[#allocation15 + $0x558] sm:$0xff]
        %v1693 = vld [vmem:[#allocation15 + $0x560] sm:$0xff]
        %v1694 = vld [vmem:[#allocation15 + $0x568] sm:$0xff]
        %v1695 = vld [vmem:[#allocation15 + $0x570] sm:$0xff]
        %v1696 = vld [vmem:[#allocation15 + $0x578] sm:$0xff]
        %v1697 = vld [vmem:[#allocation15 + $0x580] sm:$0xff]
        %v1698 = vld [vmem:[#allocation15 + $0x588] sm:$0xff]
        %v1699 = vld [vmem:[#allocation15 + $0x590] sm:$0xff]
        %v1700 = vld [vmem:[#allocation15 + $0x598] sm:$0xff]
        %v1701 = vld [vmem:[#allocation15 + $0x5a0] sm:$0xff]
        %v1702 = vld [vmem:[#allocation15 + $0x5a8] sm:$0xff]
        %v1703 = vld [vmem:[#allocation15 + $0x5b0] sm:$0xff]
        %v1704 = vld [vmem:[#allocation15 + $0x5b8] sm:$0xff]
        %v1705 = vld [vmem:[#allocation15 + $0x5c0] sm:$0xff]
        %v1706 = vld [vmem:[#allocation15 + $0x5c8] sm:$0xff]
        %v1707 = vld [vmem:[#allocation15 + $0x5d0] sm:$0xff]
        %v1708 = vld [vmem:[#allocation15 + $0x5d8] sm:$0xff]
        %v1709 = vld [vmem:[#allocation15 + $0x5e0] sm:$0xff]
        %v1710 = vld [vmem:[#allocation15 + $0x5e8] sm:$0xff]
        %v1711 = vld [vmem:[#allocation15 + $0x5f0] sm:$0xff]
        %v1712 = vld [vmem:[#allocation15 + $0x5f8] sm:$0xff]
        %v1713 = vld [vmem:[#allocation15 + $0x600] sm:$0xff]
        %v1714 = vld [vmem:[#allocation15 + $0x608] sm:$0xff]
        %v1715 = vld [vmem:[#allocation15 + $0x610] sm:$0xff]
        %v1716 = vld [vmem:[#allocation15 + $0x618] sm:$0xff]
        %v1717 = vld [vmem:[#allocation15 + $0x620] sm:$0xff]
        %v1718 = vld [vmem:[#allocation15 + $0x628] sm:$0xff]
        %v1719 = vld [vmem:[#allocation15 + $0x630] sm:$0xff]
        %v1720 = vld [vmem:[#allocation15 + $0x638] sm:$0xff]
        %v1721 = vld [vmem:[#allocation15 + $0x640] sm:$0xff]
        %v1722 = vld [vmem:[#allocation15 + $0x648] sm:$0xff]
        %v1723 = vld [vmem:[#allocation15 + $0x650] sm:$0xff]
        %v1724 = vld [vmem:[#allocation15 + $0x658] sm:$0xff]
        %v1725 = vld [vmem:[#allocation15 + $0x660] sm:$0xff]
        %v1726 = vld [vmem:[#allocation15 + $0x668] sm:$0xff]
        %v1727 = vld [vmem:[#allocation15 + $0x670] sm:$0xff]
        %v1728 = vld [vmem:[#allocation15 + $0x678] sm:$0xff]
        %v1729 = vld [vmem:[#allocation15 + $0x680] sm:$0xff]
        %v1730 = vld [vmem:[#allocation15 + $0x688] sm:$0xff]
        %v1731 = vld [vmem:[#allocation15 + $0x690] sm:$0xff]
        %v1732 = vld [vmem:[#allocation15 + $0x698] sm:$0xff]
        %v1733 = vld [vmem:[#allocation15 + $0x6a0] sm:$0xff]
        %v1734 = vld [vmem:[#allocation15 + $0x6a8] sm:$0xff]
        %v1735 = vld [vmem:[#allocation15 + $0x6b0] sm:$0xff]
        %v1736 = vld [vmem:[#allocation15 + $0x6b8] sm:$0xff]
        %v1737 = vld [vmem:[#allocation15 + $0x6c0] sm:$0xff]
        %v1738 = vld [vmem:[#allocation15 + $0x6c8] sm:$0xff]
        %v1739 = vld [vmem:[#allocation15 + $0x6d0] sm:$0xff]
        %v1740 = vld [vmem:[#allocation15 + $0x6d8] sm:$0xff]
        %v1741 = vld [vmem:[#allocation15 + $0x6e0] sm:$0xff]
        %v1742 = vld [vmem:[#allocation15 + $0x6e8] sm:$0xff]
        %v1743 = vld [vmem:[#allocation15 + $0x6f0] sm:$0xff]
        %v1744 = vld [vmem:[#allocation15 + $0x6f8] sm:$0xff]
        %v1745 = vld [vmem:[#allocation15 + $0x700] sm:$0xff]
        %v1746 = vld [vmem:[#allocation15 + $0x708] sm:$0xff]
        %v1747 = vld [vmem:[#allocation15 + $0x710] sm:$0xff]
        %v1748 = vld [vmem:[#allocation15 + $0x718] sm:$0xff]
        %v1749 = vld [vmem:[#allocation15 + $0x720] sm:$0xff]
        %v1750 = vld [vmem:[#allocation15 + $0x728] sm:$0xff]
        %v1751 = vld [vmem:[#allocation15 + $0x730] sm:$0xff]
        %v1752 = vld [vmem:[#allocation15 + $0x738] sm:$0xff]
        %v1753 = vld [vmem:[#allocation15 + $0x740] sm:$0xff]
        %v1754 = vld [vmem:[#allocation15 + $0x748] sm:$0xff]
        %v1755 = vld [vmem:[#allocation15 + $0x750] sm:$0xff]
        %v1756 = vld [vmem:[#allocation15 + $0x758] sm:$0xff]
        %v1757 = vld [vmem:[#allocation15 + $0x760] sm:$0xff]
        %v1758 = vld [vmem:[#allocation15 + $0x768] sm:$0xff]
        %v1759 = vld [vmem:[#allocation15 + $0x770] sm:$0xff]
        %v1760 = vld [vmem:[#allocation15 + $0x778] sm:$0xff]
        %v1761 = vld [vmem:[#allocation15 + $0x780] sm:$0xff]
        %v1762 = vld [vmem:[#allocation15 + $0x788] sm:$0xff]
        %v1763 = vld [vmem:[#allocation15 + $0x790] sm:$0xff]
        %v1764 = vld [vmem:[#allocation15 + $0x798] sm:$0xff]
        %v1765 = vld [vmem:[#allocation15 + $0x7a0] sm:$0xff]
        %v1766 = vld [vmem:[#allocation15 + $0x7a8] sm:$0xff]
        %v1767 = vld [vmem:[#allocation15 + $0x7b0] sm:$0xff]
        %v1768 = vld [vmem:[#allocation15 + $0x7b8] sm:$0xff]
        %v1769 = vld [vmem:[#allocation15 + $0x7c0] sm:$0xff]
        %v1770 = vld [vmem:[#allocation15 + $0x7c8] sm:$0xff]
        %v1771 = vld [vmem:[#allocation15 + $0x7d0] sm:$0xff]
        %v1772 = vld [vmem:[#allocation15 + $0x7d8] sm:$0xff]
        %v1773 = vld [vmem:[#allocation15 + $0x7e0] sm:$0xff]
        %v1774 = vld [vmem:[#allocation15 + $0x7e8] sm:$0xff]
        %v1775 = vld [vmem:[#allocation15 + $0x7f0] sm:$0xff]
        %v1776 = vld [vmem:[#allocation15 + $0x7f8] sm:$0xff]
        %1777 = vmatpush.msra.mxu0 %v1641
        %1778 = vmatpush.msra.mxu0 %v1633
        %1779 = vmatpush.msra.mxu0 %v1625
        %1780 = vmatpush.msra.mxu0 %v1617
        %1781 = vmatpush.msra.mxu0 %v1609
        %1782 = vmatpush.msra.mxu0 %v1601
        %1783 = vmatpush.msra.mxu0 %v1593
        %1784 = vmatpush.msra.mxu0 %v1585
        %1785 = vmatpush.msra.mxu0 %v1577
        %1786 = vmatpush.msra.mxu0 %v1569
        %1787 = vmatpush.msra.mxu0 %v1561
        %1788 = vmatpush.msra.mxu0 %v1553
        %1789 = vmatpush.msra.mxu0 %v1545
        %1790 = vmatpush.msra.mxu0 %v1537
        %1791 = vmatpush.msra.mxu0 %v1529
        %1792 = vmatpush.msra.mxu0 %v1521
        %1793 = vmatmul.f32.gmra.mxu0 %v1454
        %v1794 = vpop.f32.mrf.mxu0
        %v1795 = vadd.f32 0.0, %v1794
        %1796 = vdwg.mxu0
        %1797 = vmatpush.msra.mxu0 %v1769
        %1798 = vmatpush.msra.mxu0 %v1761
        %1799 = vmatpush.msra.mxu0 %v1753
        %1800 = vmatpush.msra.mxu0 %v1745
        %1801 = vmatpush.msra.mxu0 %v1737
        %1802 = vmatpush.msra.mxu0 %v1729
        %1803 = vmatpush.msra.mxu0 %v1721
        %1804 = vmatpush.msra.mxu0 %v1713
        %1805 = vmatpush.msra.mxu0 %v1705
        %1806 = vmatpush.msra.mxu0 %v1697
        %1807 = vmatpush.msra.mxu0 %v1689
        %1808 = vmatpush.msra.mxu0 %v1681
        %1809 = vmatpush.msra.mxu0 %v1673
        %1810 = vmatpush.msra.mxu0 %v1665
        %1811 = vmatpush.msra.mxu0 %v1657
        %1812 = vmatpush.msra.mxu0 %v1649
        %1813 = vmatmul.f32.gmra.mxu0 %v1517
        %v1814 = vpop.f32.mrf.mxu0
        %v1815 = vadd.f32 %v1795, %v1814
        %1816 = vdwg.mxu0
        %1817 = vmatpush.msra.mxu0 %v1642
        %1818 = vmatpush.msra.mxu0 %v1634
        %1819 = vmatpush.msra.mxu0 %v1626
        %1820 = vmatpush.msra.mxu0 %v1618
        %1821 = vmatpush.msra.mxu0 %v1610
        %1822 = vmatpush.msra.mxu0 %v1602
        %1823 = vmatpush.msra.mxu0 %v1594
        %1824 = vmatpush.msra.mxu0 %v1586
        %1825 = vmatpush.msra.mxu0 %v1578
        %1826 = vmatpush.msra.mxu0 %v1570
        %1827 = vmatpush.msra.mxu0 %v1562
        %1828 = vmatpush.msra.mxu0 %v1554
        %1829 = vmatpush.msra.mxu0 %v1546
        %1830 = vmatpush.msra.mxu0 %v1538
        %1831 = vmatpush.msra.mxu0 %v1530
        %1832 = vmatpush.msra.mxu0 %v1522
        %1833 = vmatmul.f32.gmra.mxu0 %v1454
        %v1834 = vpop.f32.mrf.mxu0
        %v1835 = vadd.f32 0.0, %v1834
        %1836 = vdwg.mxu0
        %1837 = vmatpush.msra.mxu0 %v1770
        %1838 = vmatpush.msra.mxu0 %v1762
        %1839 = vmatpush.msra.mxu0 %v1754
        %1840 = vmatpush.msra.mxu0 %v1746
        %1841 = vmatpush.msra.mxu0 %v1738
        %1842 = vmatpush.msra.mxu0 %v1730
        %1843 = vmatpush.msra.mxu0 %v1722
        %1844 = vmatpush.msra.mxu0 %v1714
        %1845 = vmatpush.msra.mxu0 %v1706
        %1846 = vmatpush.msra.mxu0 %v1698
        %1847 = vmatpush.msra.mxu0 %v1690
        %1848 = vmatpush.msra.mxu0 %v1682
        %1849 = vmatpush.msra.mxu0 %v1674
        %1850 = vmatpush.msra.mxu0 %v1666
        %1851 = vmatpush.msra.mxu0 %v1658
        %1852 = vmatpush.msra.mxu0 %v1650
        %1853 = vmatmul.f32.gmra.mxu0 %v1517
        %v1854 = vpop.f32.mrf.mxu0
        %v1855 = vadd.f32 %v1835, %v1854
        %1856 = vdwg.mxu0
        %1857 = vmatpush.msra.mxu0 %v1643
        %1858 = vmatpush.msra.mxu0 %v1635
        %1859 = vmatpush.msra.mxu0 %v1627
        %1860 = vmatpush.msra.mxu0 %v1619
        %1861 = vmatpush.msra.mxu0 %v1611
        %1862 = vmatpush.msra.mxu0 %v1603
        %1863 = vmatpush.msra.mxu0 %v1595
        %1864 = vmatpush.msra.mxu0 %v1587
        %1865 = vmatpush.msra.mxu0 %v1579
        %1866 = vmatpush.msra.mxu0 %v1571
        %1867 = vmatpush.msra.mxu0 %v1563
        %1868 = vmatpush.msra.mxu0 %v1555
        %1869 = vmatpush.msra.mxu0 %v1547
        %1870 = vmatpush.msra.mxu0 %v1539
        %1871 = vmatpush.msra.mxu0 %v1531
        %1872 = vmatpush.msra.mxu0 %v1523
        %1873 = vmatmul.f32.gmra.mxu0 %v1454
        %v1874 = vpop.f32.mrf.mxu0
        %v1875 = vadd.f32 0.0, %v1874
        %1876 = vdwg.mxu0
        %1877 = vmatpush.msra.mxu0 %v1771
        %1878 = vmatpush.msra.mxu0 %v1763
        %1879 = vmatpush.msra.mxu0 %v1755
        %1880 = vmatpush.msra.mxu0 %v1747
        %1881 = vmatpush.msra.mxu0 %v1739
        %1882 = vmatpush.msra.mxu0 %v1731
        %1883 = vmatpush.msra.mxu0 %v1723
        %1884 = vmatpush.msra.mxu0 %v1715
        %1885 = vmatpush.msra.mxu0 %v1707
        %1886 = vmatpush.msra.mxu0 %v1699
        %1887 = vmatpush.msra.mxu0 %v1691
        %1888 = vmatpush.msra.mxu0 %v1683
        %1889 = vmatpush.msra.mxu0 %v1675
        %1890 = vmatpush.msra.mxu0 %v1667
        %1891 = vmatpush.msra.mxu0 %v1659
        %1892 = vmatpush.msra.mxu0 %v1651
        %1893 = vmatmul.f32.gmra.mxu0 %v1517
        %v1894 = vpop.f32.mrf.mxu0
        %v1895 = vadd.f32 %v1875, %v1894
        %1896 = vdwg.mxu0
        %1897 = vmatpush.msra.mxu0 %v1644
        %1898 = vmatpush.msra.mxu0 %v1636
        %1899 = vmatpush.msra.mxu0 %v1628
        %1900 = vmatpush.msra.mxu0 %v1620
        %1901 = vmatpush.msra.mxu0 %v1612
        %1902 = vmatpush.msra.mxu0 %v1604
        %1903 = vmatpush.msra.mxu0 %v1596
        %1904 = vmatpush.msra.mxu0 %v1588
        %1905 = vmatpush.msra.mxu0 %v1580
        %1906 = vmatpush.msra.mxu0 %v1572
        %1907 = vmatpush.msra.mxu0 %v1564
        %1908 = vmatpush.msra.mxu0 %v1556
        %1909 = vmatpush.msra.mxu0 %v1548
        %1910 = vmatpush.msra.mxu0 %v1540
        %1911 = vmatpush.msra.mxu0 %v1532
        %1912 = vmatpush.msra.mxu0 %v1524
        %1913 = vmatmul.f32.gmra.mxu0 %v1454
        %v1914 = vpop.f32.mrf.mxu0
        %v1915 = vadd.f32 0.0, %v1914
        %1916 = vdwg.mxu0
        %1917 = vmatpush.msra.mxu0 %v1772
        %1918 = vmatpush.msra.mxu0 %v1764
        %1919 = vmatpush.msra.mxu0 %v1756
        %1920 = vmatpush.msra.mxu0 %v1748
        %1921 = vmatpush.msra.mxu0 %v1740
        %1922 = vmatpush.msra.mxu0 %v1732
        %1923 = vmatpush.msra.mxu0 %v1724
        %1924 = vmatpush.msra.mxu0 %v1716
        %1925 = vmatpush.msra.mxu0 %v1708
        %1926 = vmatpush.msra.mxu0 %v1700
        %1927 = vmatpush.msra.mxu0 %v1692
        %1928 = vmatpush.msra.mxu0 %v1684
        %1929 = vmatpush.msra.mxu0 %v1676
        %1930 = vmatpush.msra.mxu0 %v1668
        %1931 = vmatpush.msra.mxu0 %v1660
        %1932 = vmatpush.msra.mxu0 %v1652
        %1933 = vmatmul.f32.gmra.mxu0 %v1517
        %v1934 = vpop.f32.mrf.mxu0
        %v1935 = vadd.f32 %v1915, %v1934
        %1936 = vdwg.mxu0
        %1937 = vmatpush.msra.mxu0 %v1645
        %1938 = vmatpush.msra.mxu0 %v1637
        %1939 = vmatpush.msra.mxu0 %v1629
        %1940 = vmatpush.msra.mxu0 %v1621
        %1941 = vmatpush.msra.mxu0 %v1613
        %1942 = vmatpush.msra.mxu0 %v1605
        %1943 = vmatpush.msra.mxu0 %v1597
        %1944 = vmatpush.msra.mxu0 %v1589
        %1945 = vmatpush.msra.mxu0 %v1581
        %1946 = vmatpush.msra.mxu0 %v1573
        %1947 = vmatpush.msra.mxu0 %v1565
        %1948 = vmatpush.msra.mxu0 %v1557
        %1949 = vmatpush.msra.mxu0 %v1549
        %1950 = vmatpush.msra.mxu0 %v1541
        %1951 = vmatpush.msra.mxu0 %v1533
        %1952 = vmatpush.msra.mxu0 %v1525
        %1953 = vmatmul.f32.gmra.mxu0 %v1454
        %v1954 = vpop.f32.mrf.mxu0
        %v1955 = vadd.f32 0.0, %v1954
        %1956 = vdwg.mxu0
        %1957 = vmatpush.msra.mxu0 %v1773
        %1958 = vmatpush.msra.mxu0 %v1765
        %1959 = vmatpush.msra.mxu0 %v1757
        %1960 = vmatpush.msra.mxu0 %v1749
        %1961 = vmatpush.msra.mxu0 %v1741
        %1962 = vmatpush.msra.mxu0 %v1733
        %1963 = vmatpush.msra.mxu0 %v1725
        %1964 = vmatpush.msra.mxu0 %v1717
        %1965 = vmatpush.msra.mxu0 %v1709
        %1966 = vmatpush.msra.mxu0 %v1701
        %1967 = vmatpush.msra.mxu0 %v1693
        %1968 = vmatpush.msra.mxu0 %v1685
        %1969 = vmatpush.msra.mxu0 %v1677
        %1970 = vmatpush.msra.mxu0 %v1669
        %1971 = vmatpush.msra.mxu0 %v1661
        %1972 = vmatpush.msra.mxu0 %v1653
        %1973 = vmatmul.f32.gmra.mxu0 %v1517
        %v1974 = vpop.f32.mrf.mxu0
        %v1975 = vadd.f32 %v1955, %v1974
        %1976 = vdwg.mxu0
        %1977 = vmatpush.msra.mxu0 %v1646
        %1978 = vmatpush.msra.mxu0 %v1638
        %1979 = vmatpush.msra.mxu0 %v1630
        %1980 = vmatpush.msra.mxu0 %v1622
        %1981 = vmatpush.msra.mxu0 %v1614
        %1982 = vmatpush.msra.mxu0 %v1606
        %1983 = vmatpush.msra.mxu0 %v1598
        %1984 = vmatpush.msra.mxu0 %v1590
        %1985 = vmatpush.msra.mxu0 %v1582
        %1986 = vmatpush.msra.mxu0 %v1574
        %1987 = vmatpush.msra.mxu0 %v1566
        %1988 = vmatpush.msra.mxu0 %v1558
        %1989 = vmatpush.msra.mxu0 %v1550
        %1990 = vmatpush.msra.mxu0 %v1542
        %1991 = vmatpush.msra.mxu0 %v1534
        %1992 = vmatpush.msra.mxu0 %v1526
        %1993 = vmatmul.f32.gmra.mxu0 %v1454
        %v1994 = vpop.f32.mrf.mxu0
        %v1995 = vadd.f32 0.0, %v1994
        %1996 = vdwg.mxu0
        %1997 = vmatpush.msra.mxu0 %v1774
        %1998 = vmatpush.msra.mxu0 %v1766
        %1999 = vmatpush.msra.mxu0 %v1758
        %2000 = vmatpush.msra.mxu0 %v1750
        %2001 = vmatpush.msra.mxu0 %v1742
        %2002 = vmatpush.msra.mxu0 %v1734
        %2003 = vmatpush.msra.mxu0 %v1726
        %2004 = vmatpush.msra.mxu0 %v1718
        %2005 = vmatpush.msra.mxu0 %v1710
        %2006 = vmatpush.msra.mxu0 %v1702
        %2007 = vmatpush.msra.mxu0 %v1694
        %2008 = vmatpush.msra.mxu0 %v1686
        %2009 = vmatpush.msra.mxu0 %v1678
        %2010 = vmatpush.msra.mxu0 %v1670
        %2011 = vmatpush.msra.mxu0 %v1662
        %2012 = vmatpush.msra.mxu0 %v1654
        %2013 = vmatmul.f32.gmra.mxu0 %v1517
        %v2014 = vpop.f32.mrf.mxu0
        %v2015 = vadd.f32 %v1995, %v2014
        %2016 = vdwg.mxu0
        %2017 = vmatpush.msra.mxu0 %v1647
        %2018 = vmatpush.msra.mxu0 %v1639
        %2019 = vmatpush.msra.mxu0 %v1631
        %2020 = vmatpush.msra.mxu0 %v1623
        %2021 = vmatpush.msra.mxu0 %v1615
        %2022 = vmatpush.msra.mxu0 %v1607
        %2023 = vmatpush.msra.mxu0 %v1599
        %2024 = vmatpush.msra.mxu0 %v1591
        %2025 = vmatpush.msra.mxu0 %v1583
        %2026 = vmatpush.msra.mxu0 %v1575
        %2027 = vmatpush.msra.mxu0 %v1567
        %2028 = vmatpush.msra.mxu0 %v1559
        %2029 = vmatpush.msra.mxu0 %v1551
        %2030 = vmatpush.msra.mxu0 %v1543
        %2031 = vmatpush.msra.mxu0 %v1535
        %2032 = vmatpush.msra.mxu0 %v1527
        %2033 = vmatmul.f32.gmra.mxu0 %v1454
        %v2034 = vpop.f32.mrf.mxu0
        %v2035 = vadd.f32 0.0, %v2034
        %2036 = vdwg.mxu0
        %2037 = vmatpush.msra.mxu0 %v1775
        %2038 = vmatpush.msra.mxu0 %v1767
        %2039 = vmatpush.msra.mxu0 %v1759
        %2040 = vmatpush.msra.mxu0 %v1751
        %2041 = vmatpush.msra.mxu0 %v1743
        %2042 = vmatpush.msra.mxu0 %v1735
        %2043 = vmatpush.msra.mxu0 %v1727
        %2044 = vmatpush.msra.mxu0 %v1719
        %2045 = vmatpush.msra.mxu0 %v1711
        %2046 = vmatpush.msra.mxu0 %v1703
        %2047 = vmatpush.msra.mxu0 %v1695
        %2048 = vmatpush.msra.mxu0 %v1687
        %2049 = vmatpush.msra.mxu0 %v1679
        %2050 = vmatpush.msra.mxu0 %v1671
        %2051 = vmatpush.msra.mxu0 %v1663
        %2052 = vmatpush.msra.mxu0 %v1655
        %2053 = vmatmul.f32.gmra.mxu0 %v1517
        %v2054 = vpop.f32.mrf.mxu0
        %v2055 = vadd.f32 %v2035, %v2054
        %2056 = vdwg.mxu0
        %2057 = vmatpush.msra.mxu0 %v1648
        %2058 = vmatpush.msra.mxu0 %v1640
        %2059 = vmatpush.msra.mxu0 %v1632
        %2060 = vmatpush.msra.mxu0 %v1624
        %2061 = vmatpush.msra.mxu0 %v1616
        %2062 = vmatpush.msra.mxu0 %v1608
        %2063 = vmatpush.msra.mxu0 %v1600
        %2064 = vmatpush.msra.mxu0 %v1592
        %2065 = vmatpush.msra.mxu0 %v1584
        %2066 = vmatpush.msra.mxu0 %v1576
        %2067 = vmatpush.msra.mxu0 %v1568
        %2068 = vmatpush.msra.mxu0 %v1560
        %2069 = vmatpush.msra.mxu0 %v1552
        %2070 = vmatpush.msra.mxu0 %v1544
        %2071 = vmatpush.msra.mxu0 %v1536
        %2072 = vmatpush.msra.mxu0 %v1528
        %2073 = vmatmul.f32.gmra.mxu0 %v1454
        %v2074 = vpop.f32.mrf.mxu0
        %v2075 = vadd.f32 0.0, %v2074
        %2076 = vdwg.mxu0
        %2077 = vmatpush.msra.mxu0 %v1776
        %2078 = vmatpush.msra.mxu0 %v1768
        %2079 = vmatpush.msra.mxu0 %v1760
        %2080 = vmatpush.msra.mxu0 %v1752
        %2081 = vmatpush.msra.mxu0 %v1744
        %2082 = vmatpush.msra.mxu0 %v1736
        %2083 = vmatpush.msra.mxu0 %v1728
        %2084 = vmatpush.msra.mxu0 %v1720
        %2085 = vmatpush.msra.mxu0 %v1712
        %2086 = vmatpush.msra.mxu0 %v1704
        %2087 = vmatpush.msra.mxu0 %v1696
        %2088 = vmatpush.msra.mxu0 %v1688
        %2089 = vmatpush.msra.mxu0 %v1680
        %2090 = vmatpush.msra.mxu0 %v1672
        %2091 = vmatpush.msra.mxu0 %v1664
        %2092 = vmatpush.msra.mxu0 %v1656
        %2093 = vmatmul.f32.gmra.mxu0 %v1517
        %v2094 = vpop.f32.mrf.mxu0
        %v2095 = vadd.f32 %v2075, %v2094
        %2096 = vdwg.mxu0
        %s2097 = scalar_lea.vmem [#allocation5], 32
        %v2098 = vld [vmem:[%s2097] sm:$0xff]
        %v2099 = vld [vmem:[%s2097 + $0x8] sm:$0xff]
        %v2100 = vld [vmem:[%s2097 + $0x10] sm:$0xff]
        %v2101 = vld [vmem:[%s2097 + $0x18] sm:$0xff]
        %v2102 = vadd.f32 %v2098, %v1815
        %v2103 = vadd.f32 %v2099, %v1855
        %v2104 = vadd.f32 %v2100, %v1895
        %v2105 = vadd.f32 %v2101, %v1935
        %s2106 = scalar_lea.vmem [#allocation6], 64
        %v2107 = vld [vmem:[%s2106] sm:$0xff]
        %v2108 = vld [vmem:[%s2106 + $0x8] sm:$0xff]
        %v2109 = vld [vmem:[%s2106 + $0x10] sm:$0xff]
        %v2110 = vld [vmem:[%s2106 + $0x18] sm:$0xff]
        %v2111 = vadd.f32 %v2107, %v1975
        %v2112 = vadd.f32 %v2108, %v2015
        %v2113 = vadd.f32 %v2109, %v2055
        %v2114 = vadd.f32 %v2110, %v2095
        %v2115 = vxor.u32 %v2102, 2147483648
        %v2116 = vmul.f32 %v2115, 1.442695
        %v2117 = vpow.pop %v2116
        %v2118 = vadd.f32 %v2117, 1.0
        %v2119 = vrcp.pop %v2118
        %v2120 = vmul.f32 %v2118, %v2119
        %v2121 = vsub.f32 1.0, %v2120
        %v2122 = vmul.f32 %v2119, %v2121
        %v2123 = vadd.f32 %v2119, %v2122
        %vm2124 = vweird.f32 %v2118
        %vm2125 = vweird.f32 %v2119
        %vm2126 = vmor %vm2124, %vm2125
        %v2127 = vsel %vm2126, %v2119, %v2123
        %v2128 = vand.u32 2147483647, %v2118
        %vm2129 = vcmp.eq.f32.partialorder %v2128, 8.507059e+37
        %v2130 = vand.u32 %v2118, 2147483648
        %v2131 = vor.u32 1.1754944e-38, %v2130
        %v2132 = vsel %vm2129, %v2131, %v2127
        %v2133 = vmul.f32 1.0, %v2132
        %v2134 = vxor.u32 %v2103, 2147483648
        %v2135 = vmul.f32 %v2134, 1.442695
        %v2136 = vpow.pop %v2135
        %v2137 = vadd.f32 %v2136, 1.0
        %v2138 = vrcp.pop %v2137
        %v2139 = vmul.f32 %v2137, %v2138
        %v2140 = vsub.f32 1.0, %v2139
        %v2141 = vmul.f32 %v2138, %v2140
        %v2142 = vadd.f32 %v2138, %v2141
        %vm2143 = vweird.f32 %v2137
        %vm2144 = vweird.f32 %v2138
        %vm2145 = vmor %vm2143, %vm2144
        %v2146 = vsel %vm2145, %v2138, %v2142
        %v2147 = vand.u32 2147483647, %v2137
        %vm2148 = vcmp.eq.f32.partialorder %v2147, 8.507059e+37
        %v2149 = vand.u32 %v2137, 2147483648
        %v2150 = vor.u32 1.1754944e-38, %v2149
        %v2151 = vsel %vm2148, %v2150, %v2146
        %v2152 = vmul.f32 1.0, %v2151
        %v2153 = vtanh.pop %v2104
        %v2154 = vxor.u32 %v2105, 2147483648
        %v2155 = vmul.f32 %v2154, 1.442695
        %v2156 = vpow.pop %v2155
        %v2157 = vadd.f32 %v2156, 1.0
        %v2158 = vrcp.pop %v2157
        %v2159 = vmul.f32 %v2157, %v2158
        %v2160 = vsub.f32 1.0, %v2159
        %v2161 = vmul.f32 %v2158, %v2160
        %v2162 = vadd.f32 %v2158, %v2161
        %vm2163 = vweird.f32 %v2157
        %vm2164 = vweird.f32 %v2158
        %vm2165 = vmor %vm2163, %vm2164
        %v2166 = vsel %vm2165, %v2158, %v2162
        %v2167 = vand.u32 2147483647, %v2157
        %vm2168 = vcmp.eq.f32.partialorder %v2167, 8.507059e+37
        %v2169 = vand.u32 %v2157, 2147483648
        %v2170 = vor.u32 1.1754944e-38, %v2169
        %v2171 = vsel %vm2168, %v2170, %v2166
        %v2172 = vmul.f32 1.0, %v2171
        %v2173 = vmul.f32 %v2152, %v1452
        %v2174 = vmul.f32 %v2133, %v2153
        %v2175 = vadd.f32 %v2173, %v2174
        %v2176 = vtanh.pop %v2175
        %v2177 = vmul.f32 %v2172, %v2176
        %v2178 = vxor.u32 %v2111, 2147483648
        %v2179 = vmul.f32 %v2178, 1.442695
        %v2180 = vpow.pop %v2179
        %v2181 = vadd.f32 %v2180, 1.0
        %v2182 = vrcp.pop %v2181
        %v2183 = vmul.f32 %v2181, %v2182
        %v2184 = vsub.f32 1.0, %v2183
        %v2185 = vmul.f32 %v2182, %v2184
        %v2186 = vadd.f32 %v2182, %v2185
        %vm2187 = vweird.f32 %v2181
        %vm2188 = vweird.f32 %v2182
        %vm2189 = vmor %vm2187, %vm2188
        %v2190 = vsel %vm2189, %v2182, %v2186
        %v2191 = vand.u32 2147483647, %v2181
        %vm2192 = vcmp.eq.f32.partialorder %v2191, 8.507059e+37
        %v2193 = vand.u32 %v2181, 2147483648
        %v2194 = vor.u32 1.1754944e-38, %v2193
        %v2195 = vsel %vm2192, %v2194, %v2190
        %v2196 = vmul.f32 1.0, %v2195
        %v2197 = vxor.u32 %v2112, 2147483648
        %v2198 = vmul.f32 %v2197, 1.442695
        %v2199 = vpow.pop %v2198
        %v2200 = vadd.f32 %v2199, 1.0
        %v2201 = vrcp.pop %v2200
        %v2202 = vmul.f32 %v2200, %v2201
        %v2203 = vsub.f32 1.0, %v2202
        %v2204 = vmul.f32 %v2201, %v2203
        %v2205 = vadd.f32 %v2201, %v2204
        %vm2206 = vweird.f32 %v2200
        %vm2207 = vweird.f32 %v2201
        %vm2208 = vmor %vm2206, %vm2207
        %v2209 = vsel %vm2208, %v2201, %v2205
        %v2210 = vand.u32 2147483647, %v2200
        %vm2211 = vcmp.eq.f32.partialorder %v2210, 8.507059e+37
        %v2212 = vand.u32 %v2200, 2147483648
        %v2213 = vor.u32 1.1754944e-38, %v2212
        %v2214 = vsel %vm2211, %v2213, %v2209
        %v2215 = vmul.f32 1.0, %v2214
        %v2216 = vtanh.pop %v2113
        %v2217 = vxor.u32 %v2114, 2147483648
        %v2218 = vmul.f32 %v2217, 1.442695
        %v2219 = vpow.pop %v2218
        %v2220 = vadd.f32 %v2219, 1.0
        %v2221 = vrcp.pop %v2220
        %v2222 = vmul.f32 %v2220, %v2221
        %v2223 = vsub.f32 1.0, %v2222
        %v2224 = vmul.f32 %v2221, %v2223
        %v2225 = vadd.f32 %v2221, %v2224
        %vm2226 = vweird.f32 %v2220
        %vm2227 = vweird.f32 %v2221
        %vm2228 = vmor %vm2226, %vm2227
        %v2229 = vsel %vm2228, %v2221, %v2225
        %v2230 = vand.u32 2147483647, %v2220
        %vm2231 = vcmp.eq.f32.partialorder %v2230, 8.507059e+37
        %v2232 = vand.u32 %v2220, 2147483648
        %v2233 = vor.u32 1.1754944e-38, %v2232
        %v2234 = vsel %vm2231, %v2233, %v2229
        %v2235 = vmul.f32 1.0, %v2234
        %v2236 = vmul.f32 %v2215, %v1515
        %v2237 = vmul.f32 %v2196, %v2216
        %v2238 = vadd.f32 %v2236, %v2237
        %v2239 = vtanh.pop %v2238
        %v2240 = vmul.f32 %v2235, %v2239
        %s2241 = scalar_lea.vmem %s440, 8 [#allocation18]
        %2242 = vst [vmem:[%s2241] sm:$0xff] %v2177
        %s2243 = scalar_lea.vmem %s447, 16 [#allocation19]
        %2244 = vst [vmem:[%s2243] sm:$0xff] %v2240
        %v2245 = vld [vmem:[#allocation15] sm:$0xff]
        %v2246 = vld [vmem:[#allocation15 + $0x8] sm:$0xff]
        %v2247 = vld [vmem:[#allocation15 + $0x10] sm:$0xff]
        %v2248 = vld [vmem:[#allocation15 + $0x18] sm:$0xff]
        %v2249 = vld [vmem:[#allocation15 + $0x20] sm:$0xff]
        %v2250 = vld [vmem:[#allocation15 + $0x28] sm:$0xff]
        %v2251 = vld [vmem:[#allocation15 + $0x30] sm:$0xff]
        %v2252 = vld [vmem:[#allocation15 + $0x38] sm:$0xff]
        %v2253 = vld [vmem:[#allocation15 + $0x40] sm:$0xff]
        %v2254 = vld [vmem:[#allocation15 + $0x48] sm:$0xff]
        %v2255 = vld [vmem:[#allocation15 + $0x50] sm:$0xff]
        %v2256 = vld [vmem:[#allocation15 + $0x58] sm:$0xff]
        %v2257 = vld [vmem:[#allocation15 + $0x60] sm:$0xff]
        %v2258 = vld [vmem:[#allocation15 + $0x68] sm:$0xff]
        %v2259 = vld [vmem:[#allocation15 + $0x70] sm:$0xff]
        %v2260 = vld [vmem:[#allocation15 + $0x78] sm:$0xff]
        %v2261 = vld [vmem:[#allocation15 + $0x80] sm:$0xff]
        %v2262 = vld [vmem:[#allocation15 + $0x88] sm:$0xff]
        %v2263 = vld [vmem:[#allocation15 + $0x90] sm:$0xff]
        %v2264 = vld [vmem:[#allocation15 + $0x98] sm:$0xff]
        %v2265 = vld [vmem:[#allocation15 + $0xa0] sm:$0xff]
        %v2266 = vld [vmem:[#allocation15 + $0xa8] sm:$0xff]
        %v2267 = vld [vmem:[#allocation15 + $0xb0] sm:$0xff]
        %v2268 = vld [vmem:[#allocation15 + $0xb8] sm:$0xff]
        %v2269 = vld [vmem:[#allocation15 + $0xc0] sm:$0xff]
        %v2270 = vld [vmem:[#allocation15 + $0xc8] sm:$0xff]
        %v2271 = vld [vmem:[#allocation15 + $0xd0] sm:$0xff]
        %v2272 = vld [vmem:[#allocation15 + $0xd8] sm:$0xff]
        %v2273 = vld [vmem:[#allocation15 + $0xe0] sm:$0xff]
        %v2274 = vld [vmem:[#allocation15 + $0xe8] sm:$0xff]
        %v2275 = vld [vmem:[#allocation15 + $0xf0] sm:$0xff]
        %v2276 = vld [vmem:[#allocation15 + $0xf8] sm:$0xff]
        %v2277 = vld [vmem:[#allocation15 + $0x100] sm:$0xff]
        %v2278 = vld [vmem:[#allocation15 + $0x108] sm:$0xff]
        %v2279 = vld [vmem:[#allocation15 + $0x110] sm:$0xff]
        %v2280 = vld [vmem:[#allocation15 + $0x118] sm:$0xff]
        %v2281 = vld [vmem:[#allocation15 + $0x120] sm:$0xff]
        %v2282 = vld [vmem:[#allocation15 + $0x128] sm:$0xff]
        %v2283 = vld [vmem:[#allocation15 + $0x130] sm:$0xff]
        %v2284 = vld [vmem:[#allocation15 + $0x138] sm:$0xff]
        %v2285 = vld [vmem:[#allocation15 + $0x140] sm:$0xff]
        %v2286 = vld [vmem:[#allocation15 + $0x148] sm:$0xff]
        %v2287 = vld [vmem:[#allocation15 + $0x150] sm:$0xff]
        %v2288 = vld [vmem:[#allocation15 + $0x158] sm:$0xff]
        %v2289 = vld [vmem:[#allocation15 + $0x160] sm:$0xff]
        %v2290 = vld [vmem:[#allocation15 + $0x168] sm:$0xff]
        %v2291 = vld [vmem:[#allocation15 + $0x170] sm:$0xff]
        %v2292 = vld [vmem:[#allocation15 + $0x178] sm:$0xff]
        %v2293 = vld [vmem:[#allocation15 + $0x180] sm:$0xff]
        %v2294 = vld [vmem:[#allocation15 + $0x188] sm:$0xff]
        %v2295 = vld [vmem:[#allocation15 + $0x190] sm:$0xff]
        %v2296 = vld [vmem:[#allocation15 + $0x198] sm:$0xff]
        %v2297 = vld [vmem:[#allocation15 + $0x1a0] sm:$0xff]
        %v2298 = vld [vmem:[#allocation15 + $0x1a8] sm:$0xff]
        %v2299 = vld [vmem:[#allocation15 + $0x1b0] sm:$0xff]
        %v2300 = vld [vmem:[#allocation15 + $0x1b8] sm:$0xff]
        %v2301 = vld [vmem:[#allocation15 + $0x1c0] sm:$0xff]
        %v2302 = vld [vmem:[#allocation15 + $0x1c8] sm:$0xff]
        %v2303 = vld [vmem:[#allocation15 + $0x1d0] sm:$0xff]
        %v2304 = vld [vmem:[#allocation15 + $0x1d8] sm:$0xff]
        %v2305 = vld [vmem:[#allocation15 + $0x1e0] sm:$0xff]
        %v2306 = vld [vmem:[#allocation15 + $0x1e8] sm:$0xff]
        %v2307 = vld [vmem:[#allocation15 + $0x1f0] sm:$0xff]
        %v2308 = vld [vmem:[#allocation15 + $0x1f8] sm:$0xff]
        %v2309 = vld [vmem:[#allocation15 + $0x200] sm:$0xff]
        %v2310 = vld [vmem:[#allocation15 + $0x208] sm:$0xff]
        %v2311 = vld [vmem:[#allocation15 + $0x210] sm:$0xff]
        %v2312 = vld [vmem:[#allocation15 + $0x218] sm:$0xff]
        %v2313 = vld [vmem:[#allocation15 + $0x220] sm:$0xff]
        %v2314 = vld [vmem:[#allocation15 + $0x228] sm:$0xff]
        %v2315 = vld [vmem:[#allocation15 + $0x230] sm:$0xff]
        %v2316 = vld [vmem:[#allocation15 + $0x238] sm:$0xff]
        %v2317 = vld [vmem:[#allocation15 + $0x240] sm:$0xff]
        %v2318 = vld [vmem:[#allocation15 + $0x248] sm:$0xff]
        %v2319 = vld [vmem:[#allocation15 + $0x250] sm:$0xff]
        %v2320 = vld [vmem:[#allocation15 + $0x258] sm:$0xff]
        %v2321 = vld [vmem:[#allocation15 + $0x260] sm:$0xff]
        %v2322 = vld [vmem:[#allocation15 + $0x268] sm:$0xff]
        %v2323 = vld [vmem:[#allocation15 + $0x270] sm:$0xff]
        %v2324 = vld [vmem:[#allocation15 + $0x278] sm:$0xff]
        %v2325 = vld [vmem:[#allocation15 + $0x280] sm:$0xff]
        %v2326 = vld [vmem:[#allocation15 + $0x288] sm:$0xff]
        %v2327 = vld [vmem:[#allocation15 + $0x290] sm:$0xff]
        %v2328 = vld [vmem:[#allocation15 + $0x298] sm:$0xff]
        %v2329 = vld [vmem:[#allocation15 + $0x2a0] sm:$0xff]
        %v2330 = vld [vmem:[#allocation15 + $0x2a8] sm:$0xff]
        %v2331 = vld [vmem:[#allocation15 + $0x2b0] sm:$0xff]
        %v2332 = vld [vmem:[#allocation15 + $0x2b8] sm:$0xff]
        %v2333 = vld [vmem:[#allocation15 + $0x2c0] sm:$0xff]
        %v2334 = vld [vmem:[#allocation15 + $0x2c8] sm:$0xff]
        %v2335 = vld [vmem:[#allocation15 + $0x2d0] sm:$0xff]
        %v2336 = vld [vmem:[#allocation15 + $0x2d8] sm:$0xff]
        %v2337 = vld [vmem:[#allocation15 + $0x2e0] sm:$0xff]
        %v2338 = vld [vmem:[#allocation15 + $0x2e8] sm:$0xff]
        %v2339 = vld [vmem:[#allocation15 + $0x2f0] sm:$0xff]
        %v2340 = vld [vmem:[#allocation15 + $0x2f8] sm:$0xff]
        %v2341 = vld [vmem:[#allocation15 + $0x300] sm:$0xff]
        %v2342 = vld [vmem:[#allocation15 + $0x308] sm:$0xff]
        %v2343 = vld [vmem:[#allocation15 + $0x310] sm:$0xff]
        %v2344 = vld [vmem:[#allocation15 + $0x318] sm:$0xff]
        %v2345 = vld [vmem:[#allocation15 + $0x320] sm:$0xff]
        %v2346 = vld [vmem:[#allocation15 + $0x328] sm:$0xff]
        %v2347 = vld [vmem:[#allocation15 + $0x330] sm:$0xff]
        %v2348 = vld [vmem:[#allocation15 + $0x338] sm:$0xff]
        %v2349 = vld [vmem:[#allocation15 + $0x340] sm:$0xff]
        %v2350 = vld [vmem:[#allocation15 + $0x348] sm:$0xff]
        %v2351 = vld [vmem:[#allocation15 + $0x350] sm:$0xff]
        %v2352 = vld [vmem:[#allocation15 + $0x358] sm:$0xff]
        %v2353 = vld [vmem:[#allocation15 + $0x360] sm:$0xff]
        %v2354 = vld [vmem:[#allocation15 + $0x368] sm:$0xff]
        %v2355 = vld [vmem:[#allocation15 + $0x370] sm:$0xff]
        %v2356 = vld [vmem:[#allocation15 + $0x378] sm:$0xff]
        %v2357 = vld [vmem:[#allocation15 + $0x380] sm:$0xff]
        %v2358 = vld [vmem:[#allocation15 + $0x388] sm:$0xff]
        %v2359 = vld [vmem:[#allocation15 + $0x390] sm:$0xff]
        %v2360 = vld [vmem:[#allocation15 + $0x398] sm:$0xff]
        %v2361 = vld [vmem:[#allocation15 + $0x3a0] sm:$0xff]
        %v2362 = vld [vmem:[#allocation15 + $0x3a8] sm:$0xff]
        %v2363 = vld [vmem:[#allocation15 + $0x3b0] sm:$0xff]
        %v2364 = vld [vmem:[#allocation15 + $0x3b8] sm:$0xff]
        %v2365 = vld [vmem:[#allocation15 + $0x3c0] sm:$0xff]
        %v2366 = vld [vmem:[#allocation15 + $0x3c8] sm:$0xff]
        %v2367 = vld [vmem:[#allocation15 + $0x3d0] sm:$0xff]
        %v2368 = vld [vmem:[#allocation15 + $0x3d8] sm:$0xff]
        %v2369 = vld [vmem:[#allocation15 + $0x3e0] sm:$0xff]
        %v2370 = vld [vmem:[#allocation15 + $0x3e8] sm:$0xff]
        %v2371 = vld [vmem:[#allocation15 + $0x3f0] sm:$0xff]
        %v2372 = vld [vmem:[#allocation15 + $0x3f8] sm:$0xff]
        %v2373 = vld [vmem:[#allocation15 + $0x400] sm:$0xff]
        %v2374 = vld [vmem:[#allocation15 + $0x408] sm:$0xff]
        %v2375 = vld [vmem:[#allocation15 + $0x410] sm:$0xff]
        %v2376 = vld [vmem:[#allocation15 + $0x418] sm:$0xff]
        %v2377 = vld [vmem:[#allocation15 + $0x420] sm:$0xff]
        %v2378 = vld [vmem:[#allocation15 + $0x428] sm:$0xff]
        %v2379 = vld [vmem:[#allocation15 + $0x430] sm:$0xff]
        %v2380 = vld [vmem:[#allocation15 + $0x438] sm:$0xff]
        %v2381 = vld [vmem:[#allocation15 + $0x440] sm:$0xff]
        %v2382 = vld [vmem:[#allocation15 + $0x448] sm:$0xff]
        %v2383 = vld [vmem:[#allocation15 + $0x450] sm:$0xff]
        %v2384 = vld [vmem:[#allocation15 + $0x458] sm:$0xff]
        %v2385 = vld [vmem:[#allocation15 + $0x460] sm:$0xff]
        %v2386 = vld [vmem:[#allocation15 + $0x468] sm:$0xff]
        %v2387 = vld [vmem:[#allocation15 + $0x470] sm:$0xff]
        %v2388 = vld [vmem:[#allocation15 + $0x478] sm:$0xff]
        %v2389 = vld [vmem:[#allocation15 + $0x480] sm:$0xff]
        %v2390 = vld [vmem:[#allocation15 + $0x488] sm:$0xff]
        %v2391 = vld [vmem:[#allocation15 + $0x490] sm:$0xff]
        %v2392 = vld [vmem:[#allocation15 + $0x498] sm:$0xff]
        %v2393 = vld [vmem:[#allocation15 + $0x4a0] sm:$0xff]
        %v2394 = vld [vmem:[#allocation15 + $0x4a8] sm:$0xff]
        %v2395 = vld [vmem:[#allocation15 + $0x4b0] sm:$0xff]
        %v2396 = vld [vmem:[#allocation15 + $0x4b8] sm:$0xff]
        %v2397 = vld [vmem:[#allocation15 + $0x4c0] sm:$0xff]
        %v2398 = vld [vmem:[#allocation15 + $0x4c8] sm:$0xff]
        %v2399 = vld [vmem:[#allocation15 + $0x4d0] sm:$0xff]
        %v2400 = vld [vmem:[#allocation15 + $0x4d8] sm:$0xff]
        %v2401 = vld [vmem:[#allocation15 + $0x4e0] sm:$0xff]
        %v2402 = vld [vmem:[#allocation15 + $0x4e8] sm:$0xff]
        %v2403 = vld [vmem:[#allocation15 + $0x4f0] sm:$0xff]
        %v2404 = vld [vmem:[#allocation15 + $0x4f8] sm:$0xff]
        %v2405 = vld [vmem:[#allocation15 + $0x500] sm:$0xff]
        %v2406 = vld [vmem:[#allocation15 + $0x508] sm:$0xff]
        %v2407 = vld [vmem:[#allocation15 + $0x510] sm:$0xff]
        %v2408 = vld [vmem:[#allocation15 + $0x518] sm:$0xff]
        %v2409 = vld [vmem:[#allocation15 + $0x520] sm:$0xff]
        %v2410 = vld [vmem:[#allocation15 + $0x528] sm:$0xff]
        %v2411 = vld [vmem:[#allocation15 + $0x530] sm:$0xff]
        %v2412 = vld [vmem:[#allocation15 + $0x538] sm:$0xff]
        %v2413 = vld [vmem:[#allocation15 + $0x540] sm:$0xff]
        %v2414 = vld [vmem:[#allocation15 + $0x548] sm:$0xff]
        %v2415 = vld [vmem:[#allocation15 + $0x550] sm:$0xff]
        %v2416 = vld [vmem:[#allocation15 + $0x558] sm:$0xff]
        %v2417 = vld [vmem:[#allocation15 + $0x560] sm:$0xff]
        %v2418 = vld [vmem:[#allocation15 + $0x568] sm:$0xff]
        %v2419 = vld [vmem:[#allocation15 + $0x570] sm:$0xff]
        %v2420 = vld [vmem:[#allocation15 + $0x578] sm:$0xff]
        %v2421 = vld [vmem:[#allocation15 + $0x580] sm:$0xff]
        %v2422 = vld [vmem:[#allocation15 + $0x588] sm:$0xff]
        %v2423 = vld [vmem:[#allocation15 + $0x590] sm:$0xff]
        %v2424 = vld [vmem:[#allocation15 + $0x598] sm:$0xff]
        %v2425 = vld [vmem:[#allocation15 + $0x5a0] sm:$0xff]
        %v2426 = vld [vmem:[#allocation15 + $0x5a8] sm:$0xff]
        %v2427 = vld [vmem:[#allocation15 + $0x5b0] sm:$0xff]
        %v2428 = vld [vmem:[#allocation15 + $0x5b8] sm:$0xff]
        %v2429 = vld [vmem:[#allocation15 + $0x5c0] sm:$0xff]
        %v2430 = vld [vmem:[#allocation15 + $0x5c8] sm:$0xff]
        %v2431 = vld [vmem:[#allocation15 + $0x5d0] sm:$0xff]
        %v2432 = vld [vmem:[#allocation15 + $0x5d8] sm:$0xff]
        %v2433 = vld [vmem:[#allocation15 + $0x5e0] sm:$0xff]
        %v2434 = vld [vmem:[#allocation15 + $0x5e8] sm:$0xff]
        %v2435 = vld [vmem:[#allocation15 + $0x5f0] sm:$0xff]
        %v2436 = vld [vmem:[#allocation15 + $0x5f8] sm:$0xff]
        %v2437 = vld [vmem:[#allocation15 + $0x600] sm:$0xff]
        %v2438 = vld [vmem:[#allocation15 + $0x608] sm:$0xff]
        %v2439 = vld [vmem:[#allocation15 + $0x610] sm:$0xff]
        %v2440 = vld [vmem:[#allocation15 + $0x618] sm:$0xff]
        %v2441 = vld [vmem:[#allocation15 + $0x620] sm:$0xff]
        %v2442 = vld [vmem:[#allocation15 + $0x628] sm:$0xff]
        %v2443 = vld [vmem:[#allocation15 + $0x630] sm:$0xff]
        %v2444 = vld [vmem:[#allocation15 + $0x638] sm:$0xff]
        %v2445 = vld [vmem:[#allocation15 + $0x640] sm:$0xff]
        %v2446 = vld [vmem:[#allocation15 + $0x648] sm:$0xff]
        %v2447 = vld [vmem:[#allocation15 + $0x650] sm:$0xff]
        %v2448 = vld [vmem:[#allocation15 + $0x658] sm:$0xff]
        %v2449 = vld [vmem:[#allocation15 + $0x660] sm:$0xff]
        %v2450 = vld [vmem:[#allocation15 + $0x668] sm:$0xff]
        %v2451 = vld [vmem:[#allocation15 + $0x670] sm:$0xff]
        %v2452 = vld [vmem:[#allocation15 + $0x678] sm:$0xff]
        %v2453 = vld [vmem:[#allocation15 + $0x680] sm:$0xff]
        %v2454 = vld [vmem:[#allocation15 + $0x688] sm:$0xff]
        %v2455 = vld [vmem:[#allocation15 + $0x690] sm:$0xff]
        %v2456 = vld [vmem:[#allocation15 + $0x698] sm:$0xff]
        %v2457 = vld [vmem:[#allocation15 + $0x6a0] sm:$0xff]
        %v2458 = vld [vmem:[#allocation15 + $0x6a8] sm:$0xff]
        %v2459 = vld [vmem:[#allocation15 + $0x6b0] sm:$0xff]
        %v2460 = vld [vmem:[#allocation15 + $0x6b8] sm:$0xff]
        %v2461 = vld [vmem:[#allocation15 + $0x6c0] sm:$0xff]
        %v2462 = vld [vmem:[#allocation15 + $0x6c8] sm:$0xff]
        %v2463 = vld [vmem:[#allocation15 + $0x6d0] sm:$0xff]
        %v2464 = vld [vmem:[#allocation15 + $0x6d8] sm:$0xff]
        %v2465 = vld [vmem:[#allocation15 + $0x6e0] sm:$0xff]
        %v2466 = vld [vmem:[#allocation15 + $0x6e8] sm:$0xff]
        %v2467 = vld [vmem:[#allocation15 + $0x6f0] sm:$0xff]
        %v2468 = vld [vmem:[#allocation15 + $0x6f8] sm:$0xff]
        %v2469 = vld [vmem:[#allocation15 + $0x700] sm:$0xff]
        %v2470 = vld [vmem:[#allocation15 + $0x708] sm:$0xff]
        %v2471 = vld [vmem:[#allocation15 + $0x710] sm:$0xff]
        %v2472 = vld [vmem:[#allocation15 + $0x718] sm:$0xff]
        %v2473 = vld [vmem:[#allocation15 + $0x720] sm:$0xff]
        %v2474 = vld [vmem:[#allocation15 + $0x728] sm:$0xff]
        %v2475 = vld [vmem:[#allocation15 + $0x730] sm:$0xff]
        %v2476 = vld [vmem:[#allocation15 + $0x738] sm:$0xff]
        %v2477 = vld [vmem:[#allocation15 + $0x740] sm:$0xff]
        %v2478 = vld [vmem:[#allocation15 + $0x748] sm:$0xff]
        %v2479 = vld [vmem:[#allocation15 + $0x750] sm:$0xff]
        %v2480 = vld [vmem:[#allocation15 + $0x758] sm:$0xff]
        %v2481 = vld [vmem:[#allocation15 + $0x760] sm:$0xff]
        %v2482 = vld [vmem:[#allocation15 + $0x768] sm:$0xff]
        %v2483 = vld [vmem:[#allocation15 + $0x770] sm:$0xff]
        %v2484 = vld [vmem:[#allocation15 + $0x778] sm:$0xff]
        %v2485 = vld [vmem:[#allocation15 + $0x780] sm:$0xff]
        %v2486 = vld [vmem:[#allocation15 + $0x788] sm:$0xff]
        %v2487 = vld [vmem:[#allocation15 + $0x790] sm:$0xff]
        %v2488 = vld [vmem:[#allocation15 + $0x798] sm:$0xff]
        %v2489 = vld [vmem:[#allocation15 + $0x7a0] sm:$0xff]
        %v2490 = vld [vmem:[#allocation15 + $0x7a8] sm:$0xff]
        %v2491 = vld [vmem:[#allocation15 + $0x7b0] sm:$0xff]
        %v2492 = vld [vmem:[#allocation15 + $0x7b8] sm:$0xff]
        %v2493 = vld [vmem:[#allocation15 + $0x7c0] sm:$0xff]
        %v2494 = vld [vmem:[#allocation15 + $0x7c8] sm:$0xff]
        %v2495 = vld [vmem:[#allocation15 + $0x7d0] sm:$0xff]
        %v2496 = vld [vmem:[#allocation15 + $0x7d8] sm:$0xff]
        %v2497 = vld [vmem:[#allocation15 + $0x7e0] sm:$0xff]
        %v2498 = vld [vmem:[#allocation15 + $0x7e8] sm:$0xff]
        %v2499 = vld [vmem:[#allocation15 + $0x7f0] sm:$0xff]
        %v2500 = vld [vmem:[#allocation15 + $0x7f8] sm:$0xff]
        %2501 = vmatpush.msra.mxu0 %v2365
        %2502 = vmatpush.msra.mxu0 %v2357
        %2503 = vmatpush.msra.mxu0 %v2349
        %2504 = vmatpush.msra.mxu0 %v2341
        %2505 = vmatpush.msra.mxu0 %v2333
        %2506 = vmatpush.msra.mxu0 %v2325
        %2507 = vmatpush.msra.mxu0 %v2317
        %2508 = vmatpush.msra.mxu0 %v2309
        %2509 = vmatpush.msra.mxu0 %v2301
        %2510 = vmatpush.msra.mxu0 %v2293
        %2511 = vmatpush.msra.mxu0 %v2285
        %2512 = vmatpush.msra.mxu0 %v2277
        %2513 = vmatpush.msra.mxu0 %v2269
        %2514 = vmatpush.msra.mxu0 %v2261
        %2515 = vmatpush.msra.mxu0 %v2253
        %2516 = vmatpush.msra.mxu0 %v2245
        %2517 = vmatmul.f32.gmra.mxu0 %v2177
        %v2518 = vpop.f32.mrf.mxu0
        %v2519 = vadd.f32 0.0, %v2518
        %2520 = vdwg.mxu0
        %2521 = vmatpush.msra.mxu0 %v2493
        %2522 = vmatpush.msra.mxu0 %v2485
        %2523 = vmatpush.msra.mxu0 %v2477
        %2524 = vmatpush.msra.mxu0 %v2469
        %2525 = vmatpush.msra.mxu0 %v2461
        %2526 = vmatpush.msra.mxu0 %v2453
        %2527 = vmatpush.msra.mxu0 %v2445
        %2528 = vmatpush.msra.mxu0 %v2437
        %2529 = vmatpush.msra.mxu0 %v2429
        %2530 = vmatpush.msra.mxu0 %v2421
        %2531 = vmatpush.msra.mxu0 %v2413
        %2532 = vmatpush.msra.mxu0 %v2405
        %2533 = vmatpush.msra.mxu0 %v2397
        %2534 = vmatpush.msra.mxu0 %v2389
        %2535 = vmatpush.msra.mxu0 %v2381
        %2536 = vmatpush.msra.mxu0 %v2373
        %2537 = vmatmul.f32.gmra.mxu0 %v2240
        %v2538 = vpop.f32.mrf.mxu0
        %v2539 = vadd.f32 %v2519, %v2538
        %2540 = vdwg.mxu0
        %2541 = vmatpush.msra.mxu0 %v2366
        %2542 = vmatpush.msra.mxu0 %v2358
        %2543 = vmatpush.msra.mxu0 %v2350
        %2544 = vmatpush.msra.mxu0 %v2342
        %2545 = vmatpush.msra.mxu0 %v2334
        %2546 = vmatpush.msra.mxu0 %v2326
        %2547 = vmatpush.msra.mxu0 %v2318
        %2548 = vmatpush.msra.mxu0 %v2310
        %2549 = vmatpush.msra.mxu0 %v2302
        %2550 = vmatpush.msra.mxu0 %v2294
        %2551 = vmatpush.msra.mxu0 %v2286
        %2552 = vmatpush.msra.mxu0 %v2278
        %2553 = vmatpush.msra.mxu0 %v2270
        %2554 = vmatpush.msra.mxu0 %v2262
        %2555 = vmatpush.msra.mxu0 %v2254
        %2556 = vmatpush.msra.mxu0 %v2246
        %2557 = vmatmul.f32.gmra.mxu0 %v2177
        %v2558 = vpop.f32.mrf.mxu0
        %v2559 = vadd.f32 0.0, %v2558
        %2560 = vdwg.mxu0
        %2561 = vmatpush.msra.mxu0 %v2494
        %2562 = vmatpush.msra.mxu0 %v2486
        %2563 = vmatpush.msra.mxu0 %v2478
        %2564 = vmatpush.msra.mxu0 %v2470
        %2565 = vmatpush.msra.mxu0 %v2462
        %2566 = vmatpush.msra.mxu0 %v2454
        %2567 = vmatpush.msra.mxu0 %v2446
        %2568 = vmatpush.msra.mxu0 %v2438
        %2569 = vmatpush.msra.mxu0 %v2430
        %2570 = vmatpush.msra.mxu0 %v2422
        %2571 = vmatpush.msra.mxu0 %v2414
        %2572 = vmatpush.msra.mxu0 %v2406
        %2573 = vmatpush.msra.mxu0 %v2398
        %2574 = vmatpush.msra.mxu0 %v2390
        %2575 = vmatpush.msra.mxu0 %v2382
        %2576 = vmatpush.msra.mxu0 %v2374
        %2577 = vmatmul.f32.gmra.mxu0 %v2240
        %v2578 = vpop.f32.mrf.mxu0
        %v2579 = vadd.f32 %v2559, %v2578
        %2580 = vdwg.mxu0
        %2581 = vmatpush.msra.mxu0 %v2367
        %2582 = vmatpush.msra.mxu0 %v2359
        %2583 = vmatpush.msra.mxu0 %v2351
        %2584 = vmatpush.msra.mxu0 %v2343
        %2585 = vmatpush.msra.mxu0 %v2335
        %2586 = vmatpush.msra.mxu0 %v2327
        %2587 = vmatpush.msra.mxu0 %v2319
        %2588 = vmatpush.msra.mxu0 %v2311
        %2589 = vmatpush.msra.mxu0 %v2303
        %2590 = vmatpush.msra.mxu0 %v2295
        %2591 = vmatpush.msra.mxu0 %v2287
        %2592 = vmatpush.msra.mxu0 %v2279
        %2593 = vmatpush.msra.mxu0 %v2271
        %2594 = vmatpush.msra.mxu0 %v2263
        %2595 = vmatpush.msra.mxu0 %v2255
        %2596 = vmatpush.msra.mxu0 %v2247
        %2597 = vmatmul.f32.gmra.mxu0 %v2177
        %v2598 = vpop.f32.mrf.mxu0
        %v2599 = vadd.f32 0.0, %v2598
        %2600 = vdwg.mxu0
        %2601 = vmatpush.msra.mxu0 %v2495
        %2602 = vmatpush.msra.mxu0 %v2487
        %2603 = vmatpush.msra.mxu0 %v2479
        %2604 = vmatpush.msra.mxu0 %v2471
        %2605 = vmatpush.msra.mxu0 %v2463
        %2606 = vmatpush.msra.mxu0 %v2455
        %2607 = vmatpush.msra.mxu0 %v2447
        %2608 = vmatpush.msra.mxu0 %v2439
        %2609 = vmatpush.msra.mxu0 %v2431
        %2610 = vmatpush.msra.mxu0 %v2423
        %2611 = vmatpush.msra.mxu0 %v2415
        %2612 = vmatpush.msra.mxu0 %v2407
        %2613 = vmatpush.msra.mxu0 %v2399
        %2614 = vmatpush.msra.mxu0 %v2391
        %2615 = vmatpush.msra.mxu0 %v2383
        %2616 = vmatpush.msra.mxu0 %v2375
        %2617 = vmatmul.f32.gmra.mxu0 %v2240
        %v2618 = vpop.f32.mrf.mxu0
        %v2619 = vadd.f32 %v2599, %v2618
        %2620 = vdwg.mxu0
        %2621 = vmatpush.msra.mxu0 %v2368
        %2622 = vmatpush.msra.mxu0 %v2360
        %2623 = vmatpush.msra.mxu0 %v2352
        %2624 = vmatpush.msra.mxu0 %v2344
        %2625 = vmatpush.msra.mxu0 %v2336
        %2626 = vmatpush.msra.mxu0 %v2328
        %2627 = vmatpush.msra.mxu0 %v2320
        %2628 = vmatpush.msra.mxu0 %v2312
        %2629 = vmatpush.msra.mxu0 %v2304
        %2630 = vmatpush.msra.mxu0 %v2296
        %2631 = vmatpush.msra.mxu0 %v2288
        %2632 = vmatpush.msra.mxu0 %v2280
        %2633 = vmatpush.msra.mxu0 %v2272
        %2634 = vmatpush.msra.mxu0 %v2264
        %2635 = vmatpush.msra.mxu0 %v2256
        %2636 = vmatpush.msra.mxu0 %v2248
        %2637 = vmatmul.f32.gmra.mxu0 %v2177
        %v2638 = vpop.f32.mrf.mxu0
        %v2639 = vadd.f32 0.0, %v2638
        %2640 = vdwg.mxu0
        %2641 = vmatpush.msra.mxu0 %v2496
        %2642 = vmatpush.msra.mxu0 %v2488
        %2643 = vmatpush.msra.mxu0 %v2480
        %2644 = vmatpush.msra.mxu0 %v2472
        %2645 = vmatpush.msra.mxu0 %v2464
        %2646 = vmatpush.msra.mxu0 %v2456
        %2647 = vmatpush.msra.mxu0 %v2448
        %2648 = vmatpush.msra.mxu0 %v2440
        %2649 = vmatpush.msra.mxu0 %v2432
        %2650 = vmatpush.msra.mxu0 %v2424
        %2651 = vmatpush.msra.mxu0 %v2416
        %2652 = vmatpush.msra.mxu0 %v2408
        %2653 = vmatpush.msra.mxu0 %v2400
        %2654 = vmatpush.msra.mxu0 %v2392
        %2655 = vmatpush.msra.mxu0 %v2384
        %2656 = vmatpush.msra.mxu0 %v2376
        %2657 = vmatmul.f32.gmra.mxu0 %v2240
        %v2658 = vpop.f32.mrf.mxu0
        %v2659 = vadd.f32 %v2639, %v2658
        %2660 = vdwg.mxu0
        %2661 = vmatpush.msra.mxu0 %v2369
        %2662 = vmatpush.msra.mxu0 %v2361
        %2663 = vmatpush.msra.mxu0 %v2353
        %2664 = vmatpush.msra.mxu0 %v2345
        %2665 = vmatpush.msra.mxu0 %v2337
        %2666 = vmatpush.msra.mxu0 %v2329
        %2667 = vmatpush.msra.mxu0 %v2321
        %2668 = vmatpush.msra.mxu0 %v2313
        %2669 = vmatpush.msra.mxu0 %v2305
        %2670 = vmatpush.msra.mxu0 %v2297
        %2671 = vmatpush.msra.mxu0 %v2289
        %2672 = vmatpush.msra.mxu0 %v2281
        %2673 = vmatpush.msra.mxu0 %v2273
        %2674 = vmatpush.msra.mxu0 %v2265
        %2675 = vmatpush.msra.mxu0 %v2257
        %2676 = vmatpush.msra.mxu0 %v2249
        %2677 = vmatmul.f32.gmra.mxu0 %v2177
        %v2678 = vpop.f32.mrf.mxu0
        %v2679 = vadd.f32 0.0, %v2678
        %2680 = vdwg.mxu0
        %2681 = vmatpush.msra.mxu0 %v2497
        %2682 = vmatpush.msra.mxu0 %v2489
        %2683 = vmatpush.msra.mxu0 %v2481
        %2684 = vmatpush.msra.mxu0 %v2473
        %2685 = vmatpush.msra.mxu0 %v2465
        %2686 = vmatpush.msra.mxu0 %v2457
        %2687 = vmatpush.msra.mxu0 %v2449
        %2688 = vmatpush.msra.mxu0 %v2441
        %2689 = vmatpush.msra.mxu0 %v2433
        %2690 = vmatpush.msra.mxu0 %v2425
        %2691 = vmatpush.msra.mxu0 %v2417
        %2692 = vmatpush.msra.mxu0 %v2409
        %2693 = vmatpush.msra.mxu0 %v2401
        %2694 = vmatpush.msra.mxu0 %v2393
        %2695 = vmatpush.msra.mxu0 %v2385
        %2696 = vmatpush.msra.mxu0 %v2377
        %2697 = vmatmul.f32.gmra.mxu0 %v2240
        %v2698 = vpop.f32.mrf.mxu0
        %v2699 = vadd.f32 %v2679, %v2698
        %2700 = vdwg.mxu0
        %2701 = vmatpush.msra.mxu0 %v2370
        %2702 = vmatpush.msra.mxu0 %v2362
        %2703 = vmatpush.msra.mxu0 %v2354
        %2704 = vmatpush.msra.mxu0 %v2346
        %2705 = vmatpush.msra.mxu0 %v2338
        %2706 = vmatpush.msra.mxu0 %v2330
        %2707 = vmatpush.msra.mxu0 %v2322
        %2708 = vmatpush.msra.mxu0 %v2314
        %2709 = vmatpush.msra.mxu0 %v2306
        %2710 = vmatpush.msra.mxu0 %v2298
        %2711 = vmatpush.msra.mxu0 %v2290
        %2712 = vmatpush.msra.mxu0 %v2282
        %2713 = vmatpush.msra.mxu0 %v2274
        %2714 = vmatpush.msra.mxu0 %v2266
        %2715 = vmatpush.msra.mxu0 %v2258
        %2716 = vmatpush.msra.mxu0 %v2250
        %2717 = vmatmul.f32.gmra.mxu0 %v2177
        %v2718 = vpop.f32.mrf.mxu0
        %v2719 = vadd.f32 0.0, %v2718
        %2720 = vdwg.mxu0
        %2721 = vmatpush.msra.mxu0 %v2498
        %2722 = vmatpush.msra.mxu0 %v2490
        %2723 = vmatpush.msra.mxu0 %v2482
        %2724 = vmatpush.msra.mxu0 %v2474
        %2725 = vmatpush.msra.mxu0 %v2466
        %2726 = vmatpush.msra.mxu0 %v2458
        %2727 = vmatpush.msra.mxu0 %v2450
        %2728 = vmatpush.msra.mxu0 %v2442
        %2729 = vmatpush.msra.mxu0 %v2434
        %2730 = vmatpush.msra.mxu0 %v2426
        %2731 = vmatpush.msra.mxu0 %v2418
        %2732 = vmatpush.msra.mxu0 %v2410
        %2733 = vmatpush.msra.mxu0 %v2402
        %2734 = vmatpush.msra.mxu0 %v2394
        %2735 = vmatpush.msra.mxu0 %v2386
        %2736 = vmatpush.msra.mxu0 %v2378
        %2737 = vmatmul.f32.gmra.mxu0 %v2240
        %v2738 = vpop.f32.mrf.mxu0
        %v2739 = vadd.f32 %v2719, %v2738
        %2740 = vdwg.mxu0
        %2741 = vmatpush.msra.mxu0 %v2371
        %2742 = vmatpush.msra.mxu0 %v2363
        %2743 = vmatpush.msra.mxu0 %v2355
        %2744 = vmatpush.msra.mxu0 %v2347
        %2745 = vmatpush.msra.mxu0 %v2339
        %2746 = vmatpush.msra.mxu0 %v2331
        %2747 = vmatpush.msra.mxu0 %v2323
        %2748 = vmatpush.msra.mxu0 %v2315
        %2749 = vmatpush.msra.mxu0 %v2307
        %2750 = vmatpush.msra.mxu0 %v2299
        %2751 = vmatpush.msra.mxu0 %v2291
        %2752 = vmatpush.msra.mxu0 %v2283
        %2753 = vmatpush.msra.mxu0 %v2275
        %2754 = vmatpush.msra.mxu0 %v2267
        %2755 = vmatpush.msra.mxu0 %v2259
        %2756 = vmatpush.msra.mxu0 %v2251
        %2757 = vmatmul.f32.gmra.mxu0 %v2177
        %v2758 = vpop.f32.mrf.mxu0
        %v2759 = vadd.f32 0.0, %v2758
        %2760 = vdwg.mxu0
        %2761 = vmatpush.msra.mxu0 %v2499
        %2762 = vmatpush.msra.mxu0 %v2491
        %2763 = vmatpush.msra.mxu0 %v2483
        %2764 = vmatpush.msra.mxu0 %v2475
        %2765 = vmatpush.msra.mxu0 %v2467
        %2766 = vmatpush.msra.mxu0 %v2459
        %2767 = vmatpush.msra.mxu0 %v2451
        %2768 = vmatpush.msra.mxu0 %v2443
        %2769 = vmatpush.msra.mxu0 %v2435
        %2770 = vmatpush.msra.mxu0 %v2427
        %2771 = vmatpush.msra.mxu0 %v2419
        %2772 = vmatpush.msra.mxu0 %v2411
        %2773 = vmatpush.msra.mxu0 %v2403
        %2774 = vmatpush.msra.mxu0 %v2395
        %2775 = vmatpush.msra.mxu0 %v2387
        %2776 = vmatpush.msra.mxu0 %v2379
        %2777 = vmatmul.f32.gmra.mxu0 %v2240
        %v2778 = vpop.f32.mrf.mxu0
        %v2779 = vadd.f32 %v2759, %v2778
        %2780 = vdwg.mxu0
        %2781 = vmatpush.msra.mxu0 %v2372
        %2782 = vmatpush.msra.mxu0 %v2364
        %2783 = vmatpush.msra.mxu0 %v2356
        %2784 = vmatpush.msra.mxu0 %v2348
        %2785 = vmatpush.msra.mxu0 %v2340
        %2786 = vmatpush.msra.mxu0 %v2332
        %2787 = vmatpush.msra.mxu0 %v2324
        %2788 = vmatpush.msra.mxu0 %v2316
        %2789 = vmatpush.msra.mxu0 %v2308
        %2790 = vmatpush.msra.mxu0 %v2300
        %2791 = vmatpush.msra.mxu0 %v2292
        %2792 = vmatpush.msra.mxu0 %v2284
        %2793 = vmatpush.msra.mxu0 %v2276
        %2794 = vmatpush.msra.mxu0 %v2268
        %2795 = vmatpush.msra.mxu0 %v2260
        %2796 = vmatpush.msra.mxu0 %v2252
        %2797 = vmatmul.f32.gmra.mxu0 %v2177
        %v2798 = vpop.f32.mrf.mxu0
        %v2799 = vadd.f32 0.0, %v2798
        %2800 = vdwg.mxu0
        %2801 = vmatpush.msra.mxu0 %v2500
        %2802 = vmatpush.msra.mxu0 %v2492
        %2803 = vmatpush.msra.mxu0 %v2484
        %2804 = vmatpush.msra.mxu0 %v2476
        %2805 = vmatpush.msra.mxu0 %v2468
        %2806 = vmatpush.msra.mxu0 %v2460
        %2807 = vmatpush.msra.mxu0 %v2452
        %2808 = vmatpush.msra.mxu0 %v2444
        %2809 = vmatpush.msra.mxu0 %v2436
        %2810 = vmatpush.msra.mxu0 %v2428
        %2811 = vmatpush.msra.mxu0 %v2420
        %2812 = vmatpush.msra.mxu0 %v2412
        %2813 = vmatpush.msra.mxu0 %v2404
        %2814 = vmatpush.msra.mxu0 %v2396
        %2815 = vmatpush.msra.mxu0 %v2388
        %2816 = vmatpush.msra.mxu0 %v2380
        %2817 = vmatmul.f32.gmra.mxu0 %v2240
        %v2818 = vpop.f32.mrf.mxu0
        %v2819 = vadd.f32 %v2799, %v2818
        %2820 = vdwg.mxu0
        %s2821 = scalar_lea.vmem [#allocation5], 64
        %v2822 = vld [vmem:[%s2821] sm:$0xff]
        %v2823 = vld [vmem:[%s2821 + $0x8] sm:$0xff]
        %v2824 = vld [vmem:[%s2821 + $0x10] sm:$0xff]
        %v2825 = vld [vmem:[%s2821 + $0x18] sm:$0xff]
        %v2826 = vadd.f32 %v2822, %v2539
        %v2827 = vadd.f32 %v2823, %v2579
        %v2828 = vadd.f32 %v2824, %v2619
        %v2829 = vadd.f32 %v2825, %v2659
        %s2830 = scalar_lea.vmem [#allocation6], 32
        %v2831 = vld [vmem:[%s2830] sm:$0xff]
        %v2832 = vld [vmem:[%s2830 + $0x8] sm:$0xff]
        %v2833 = vld [vmem:[%s2830 + $0x10] sm:$0xff]
        %v2834 = vld [vmem:[%s2830 + $0x18] sm:$0xff]
        %v2835 = vadd.f32 %v2831, %v2699
        %v2836 = vadd.f32 %v2832, %v2739
        %v2837 = vadd.f32 %v2833, %v2779
        %v2838 = vadd.f32 %v2834, %v2819
        %v2839 = vxor.u32 %v2826, 2147483648
        %v2840 = vmul.f32 %v2839, 1.442695
        %v2841 = vpow.pop %v2840
        %v2842 = vadd.f32 %v2841, 1.0
        %v2843 = vrcp.pop %v2842
        %v2844 = vmul.f32 %v2842, %v2843
        %v2845 = vsub.f32 1.0, %v2844
        %v2846 = vmul.f32 %v2843, %v2845
        %v2847 = vadd.f32 %v2843, %v2846
        %vm2848 = vweird.f32 %v2842
        %vm2849 = vweird.f32 %v2843
        %vm2850 = vmor %vm2848, %vm2849
        %v2851 = vsel %vm2850, %v2843, %v2847
        %v2852 = vand.u32 2147483647, %v2842
        %vm2853 = vcmp.eq.f32.partialorder %v2852, 8.507059e+37
        %v2854 = vand.u32 %v2842, 2147483648
        %v2855 = vor.u32 1.1754944e-38, %v2854
        %v2856 = vsel %vm2853, %v2855, %v2851
        %v2857 = vmul.f32 1.0, %v2856
        %v2858 = vxor.u32 %v2827, 2147483648
        %v2859 = vmul.f32 %v2858, 1.442695
        %v2860 = vpow.pop %v2859
        %v2861 = vadd.f32 %v2860, 1.0
        %v2862 = vrcp.pop %v2861
        %v2863 = vmul.f32 %v2861, %v2862
        %v2864 = vsub.f32 1.0, %v2863
        %v2865 = vmul.f32 %v2862, %v2864
        %v2866 = vadd.f32 %v2862, %v2865
        %vm2867 = vweird.f32 %v2861
        %vm2868 = vweird.f32 %v2862
        %vm2869 = vmor %vm2867, %vm2868
        %v2870 = vsel %vm2869, %v2862, %v2866
        %v2871 = vand.u32 2147483647, %v2861
        %vm2872 = vcmp.eq.f32.partialorder %v2871, 8.507059e+37
        %v2873 = vand.u32 %v2861, 2147483648
        %v2874 = vor.u32 1.1754944e-38, %v2873
        %v2875 = vsel %vm2872, %v2874, %v2870
        %v2876 = vmul.f32 1.0, %v2875
        %v2877 = vtanh.pop %v2828
        %v2878 = vxor.u32 %v2829, 2147483648
        %v2879 = vmul.f32 %v2878, 1.442695
        %v2880 = vpow.pop %v2879
        %v2881 = vadd.f32 %v2880, 1.0
        %v2882 = vrcp.pop %v2881
        %v2883 = vmul.f32 %v2881, %v2882
        %v2884 = vsub.f32 1.0, %v2883
        %v2885 = vmul.f32 %v2882, %v2884
        %v2886 = vadd.f32 %v2882, %v2885
        %vm2887 = vweird.f32 %v2881
        %vm2888 = vweird.f32 %v2882
        %vm2889 = vmor %vm2887, %vm2888
        %v2890 = vsel %vm2889, %v2882, %v2886
        %v2891 = vand.u32 2147483647, %v2881
        %vm2892 = vcmp.eq.f32.partialorder %v2891, 8.507059e+37
        %v2893 = vand.u32 %v2881, 2147483648
        %v2894 = vor.u32 1.1754944e-38, %v2893
        %v2895 = vsel %vm2892, %v2894, %v2890
        %v2896 = vmul.f32 1.0, %v2895
        %v2897 = vmul.f32 %v2876, %v2175
        %v2898 = vmul.f32 %v2857, %v2877
        %v2899 = vadd.f32 %v2897, %v2898
        %v2900 = vtanh.pop %v2899
        %v2901 = vmul.f32 %v2896, %v2900
        %v2902 = vxor.u32 %v2835, 2147483648
        %v2903 = vmul.f32 %v2902, 1.442695
        %v2904 = vpow.pop %v2903
        %v2905 = vadd.f32 %v2904, 1.0
        %v2906 = vrcp.pop %v2905
        %v2907 = vmul.f32 %v2905, %v2906
        %v2908 = vsub.f32 1.0, %v2907
        %v2909 = vmul.f32 %v2906, %v2908
        %v2910 = vadd.f32 %v2906, %v2909
        %vm2911 = vweird.f32 %v2905
        %vm2912 = vweird.f32 %v2906
        %vm2913 = vmor %vm2911, %vm2912
        %v2914 = vsel %vm2913, %v2906, %v2910
        %v2915 = vand.u32 2147483647, %v2905
        %vm2916 = vcmp.eq.f32.partialorder %v2915, 8.507059e+37
        %v2917 = vand.u32 %v2905, 2147483648
        %v2918 = vor.u32 1.1754944e-38, %v2917
        %v2919 = vsel %vm2916, %v2918, %v2914
        %v2920 = vmul.f32 1.0, %v2919
        %v2921 = vxor.u32 %v2836, 2147483648
        %v2922 = vmul.f32 %v2921, 1.442695
        %v2923 = vpow.pop %v2922
        %v2924 = vadd.f32 %v2923, 1.0
        %v2925 = vrcp.pop %v2924
        %v2926 = vmul.f32 %v2924, %v2925
        %v2927 = vsub.f32 1.0, %v2926
        %v2928 = vmul.f32 %v2925, %v2927
        %v2929 = vadd.f32 %v2925, %v2928
        %vm2930 = vweird.f32 %v2924
        %vm2931 = vweird.f32 %v2925
        %vm2932 = vmor %vm2930, %vm2931
        %v2933 = vsel %vm2932, %v2925, %v2929
        %v2934 = vand.u32 2147483647, %v2924
        %vm2935 = vcmp.eq.f32.partialorder %v2934, 8.507059e+37
        %v2936 = vand.u32 %v2924, 2147483648
        %v2937 = vor.u32 1.1754944e-38, %v2936
        %v2938 = vsel %vm2935, %v2937, %v2933
        %v2939 = vmul.f32 1.0, %v2938
        %v2940 = vtanh.pop %v2837
        %v2941 = vxor.u32 %v2838, 2147483648
        %v2942 = vmul.f32 %v2941, 1.442695
        %v2943 = vpow.pop %v2942
        %v2944 = vadd.f32 %v2943, 1.0
        %v2945 = vrcp.pop %v2944
        %v2946 = vmul.f32 %v2944, %v2945
        %v2947 = vsub.f32 1.0, %v2946
        %v2948 = vmul.f32 %v2945, %v2947
        %v2949 = vadd.f32 %v2945, %v2948
        %vm2950 = vweird.f32 %v2944
        %vm2951 = vweird.f32 %v2945
        %vm2952 = vmor %vm2950, %vm2951
        %v2953 = vsel %vm2952, %v2945, %v2949
        %v2954 = vand.u32 2147483647, %v2944
        %vm2955 = vcmp.eq.f32.partialorder %v2954, 8.507059e+37
        %v2956 = vand.u32 %v2944, 2147483648
        %v2957 = vor.u32 1.1754944e-38, %v2956
        %v2958 = vsel %vm2955, %v2957, %v2953
        %v2959 = vmul.f32 1.0, %v2958
        %v2960 = vmul.f32 %v2939, %v2238
        %v2961 = vmul.f32 %v2920, %v2940
        %v2962 = vadd.f32 %v2960, %v2961
        %v2963 = vtanh.pop %v2962
        %v2964 = vmul.f32 %v2959, %v2963
        %s2965 = scalar_lea.vmem %s440, 16 [#allocation18]
        %2966 = vst [vmem:[%s2965] sm:$0xff] %v2901
        %s2967 = scalar_lea.vmem %s447, 8 [#allocation19]
        %2968 = vst [vmem:[%s2967] sm:$0xff] %v2964
        %v2969 = vld [vmem:[#allocation15] sm:$0xff]
        %v2970 = vld [vmem:[#allocation15 + $0x8] sm:$0xff]
        %v2971 = vld [vmem:[#allocation15 + $0x10] sm:$0xff]
        %v2972 = vld [vmem:[#allocation15 + $0x18] sm:$0xff]
        %v2973 = vld [vmem:[#allocation15 + $0x20] sm:$0xff]
        %v2974 = vld [vmem:[#allocation15 + $0x28] sm:$0xff]
        %v2975 = vld [vmem:[#allocation15 + $0x30] sm:$0xff]
        %v2976 = vld [vmem:[#allocation15 + $0x38] sm:$0xff]
        %v2977 = vld [vmem:[#allocation15 + $0x40] sm:$0xff]
        %v2978 = vld [vmem:[#allocation15 + $0x48] sm:$0xff]
        %v2979 = vld [vmem:[#allocation15 + $0x50] sm:$0xff]
        %v2980 = vld [vmem:[#allocation15 + $0x58] sm:$0xff]
        %v2981 = vld [vmem:[#allocation15 + $0x60] sm:$0xff]
        %v2982 = vld [vmem:[#allocation15 + $0x68] sm:$0xff]
        %v2983 = vld [vmem:[#allocation15 + $0x70] sm:$0xff]
        %v2984 = vld [vmem:[#allocation15 + $0x78] sm:$0xff]
        %v2985 = vld [vmem:[#allocation15 + $0x80] sm:$0xff]
        %v2986 = vld [vmem:[#allocation15 + $0x88] sm:$0xff]
        %v2987 = vld [vmem:[#allocation15 + $0x90] sm:$0xff]
        %v2988 = vld [vmem:[#allocation15 + $0x98] sm:$0xff]
        %v2989 = vld [vmem:[#allocation15 + $0xa0] sm:$0xff]
        %v2990 = vld [vmem:[#allocation15 + $0xa8] sm:$0xff]
        %v2991 = vld [vmem:[#allocation15 + $0xb0] sm:$0xff]
        %v2992 = vld [vmem:[#allocation15 + $0xb8] sm:$0xff]
        %v2993 = vld [vmem:[#allocation15 + $0xc0] sm:$0xff]
        %v2994 = vld [vmem:[#allocation15 + $0xc8] sm:$0xff]
        %v2995 = vld [vmem:[#allocation15 + $0xd0] sm:$0xff]
        %v2996 = vld [vmem:[#allocation15 + $0xd8] sm:$0xff]
        %v2997 = vld [vmem:[#allocation15 + $0xe0] sm:$0xff]
        %v2998 = vld [vmem:[#allocation15 + $0xe8] sm:$0xff]
        %v2999 = vld [vmem:[#allocation15 + $0xf0] sm:$0xff]
        %v3000 = vld [vmem:[#allocation15 + $0xf8] sm:$0xff]
        %v3001 = vld [vmem:[#allocation15 + $0x100] sm:$0xff]
        %v3002 = vld [vmem:[#allocation15 + $0x108] sm:$0xff]
        %v3003 = vld [vmem:[#allocation15 + $0x110] sm:$0xff]
        %v3004 = vld [vmem:[#allocation15 + $0x118] sm:$0xff]
        %v3005 = vld [vmem:[#allocation15 + $0x120] sm:$0xff]
        %v3006 = vld [vmem:[#allocation15 + $0x128] sm:$0xff]
        %v3007 = vld [vmem:[#allocation15 + $0x130] sm:$0xff]
        %v3008 = vld [vmem:[#allocation15 + $0x138] sm:$0xff]
        %v3009 = vld [vmem:[#allocation15 + $0x140] sm:$0xff]
        %v3010 = vld [vmem:[#allocation15 + $0x148] sm:$0xff]
        %v3011 = vld [vmem:[#allocation15 + $0x150] sm:$0xff]
        %v3012 = vld [vmem:[#allocation15 + $0x158] sm:$0xff]
        %v3013 = vld [vmem:[#allocation15 + $0x160] sm:$0xff]
        %v3014 = vld [vmem:[#allocation15 + $0x168] sm:$0xff]
        %v3015 = vld [vmem:[#allocation15 + $0x170] sm:$0xff]
        %v3016 = vld [vmem:[#allocation15 + $0x178] sm:$0xff]
        %v3017 = vld [vmem:[#allocation15 + $0x180] sm:$0xff]
        %v3018 = vld [vmem:[#allocation15 + $0x188] sm:$0xff]
        %v3019 = vld [vmem:[#allocation15 + $0x190] sm:$0xff]
        %v3020 = vld [vmem:[#allocation15 + $0x198] sm:$0xff]
        %v3021 = vld [vmem:[#allocation15 + $0x1a0] sm:$0xff]
        %v3022 = vld [vmem:[#allocation15 + $0x1a8] sm:$0xff]
        %v3023 = vld [vmem:[#allocation15 + $0x1b0] sm:$0xff]
        %v3024 = vld [vmem:[#allocation15 + $0x1b8] sm:$0xff]
        %v3025 = vld [vmem:[#allocation15 + $0x1c0] sm:$0xff]
        %v3026 = vld [vmem:[#allocation15 + $0x1c8] sm:$0xff]
        %v3027 = vld [vmem:[#allocation15 + $0x1d0] sm:$0xff]
        %v3028 = vld [vmem:[#allocation15 + $0x1d8] sm:$0xff]
        %v3029 = vld [vmem:[#allocation15 + $0x1e0] sm:$0xff]
        %v3030 = vld [vmem:[#allocation15 + $0x1e8] sm:$0xff]
        %v3031 = vld [vmem:[#allocation15 + $0x1f0] sm:$0xff]
        %v3032 = vld [vmem:[#allocation15 + $0x1f8] sm:$0xff]
        %v3033 = vld [vmem:[#allocation15 + $0x200] sm:$0xff]
        %v3034 = vld [vmem:[#allocation15 + $0x208] sm:$0xff]
        %v3035 = vld [vmem:[#allocation15 + $0x210] sm:$0xff]
        %v3036 = vld [vmem:[#allocation15 + $0x218] sm:$0xff]
        %v3037 = vld [vmem:[#allocation15 + $0x220] sm:$0xff]
        %v3038 = vld [vmem:[#allocation15 + $0x228] sm:$0xff]
        %v3039 = vld [vmem:[#allocation15 + $0x230] sm:$0xff]
        %v3040 = vld [vmem:[#allocation15 + $0x238] sm:$0xff]
        %v3041 = vld [vmem:[#allocation15 + $0x240] sm:$0xff]
        %v3042 = vld [vmem:[#allocation15 + $0x248] sm:$0xff]
        %v3043 = vld [vmem:[#allocation15 + $0x250] sm:$0xff]
        %v3044 = vld [vmem:[#allocation15 + $0x258] sm:$0xff]
        %v3045 = vld [vmem:[#allocation15 + $0x260] sm:$0xff]
        %v3046 = vld [vmem:[#allocation15 + $0x268] sm:$0xff]
        %v3047 = vld [vmem:[#allocation15 + $0x270] sm:$0xff]
        %v3048 = vld [vmem:[#allocation15 + $0x278] sm:$0xff]
        %v3049 = vld [vmem:[#allocation15 + $0x280] sm:$0xff]
        %v3050 = vld [vmem:[#allocation15 + $0x288] sm:$0xff]
        %v3051 = vld [vmem:[#allocation15 + $0x290] sm:$0xff]
        %v3052 = vld [vmem:[#allocation15 + $0x298] sm:$0xff]
        %v3053 = vld [vmem:[#allocation15 + $0x2a0] sm:$0xff]
        %v3054 = vld [vmem:[#allocation15 + $0x2a8] sm:$0xff]
        %v3055 = vld [vmem:[#allocation15 + $0x2b0] sm:$0xff]
        %v3056 = vld [vmem:[#allocation15 + $0x2b8] sm:$0xff]
        %v3057 = vld [vmem:[#allocation15 + $0x2c0] sm:$0xff]
        %v3058 = vld [vmem:[#allocation15 + $0x2c8] sm:$0xff]
        %v3059 = vld [vmem:[#allocation15 + $0x2d0] sm:$0xff]
        %v3060 = vld [vmem:[#allocation15 + $0x2d8] sm:$0xff]
        %v3061 = vld [vmem:[#allocation15 + $0x2e0] sm:$0xff]
        %v3062 = vld [vmem:[#allocation15 + $0x2e8] sm:$0xff]
        %v3063 = vld [vmem:[#allocation15 + $0x2f0] sm:$0xff]
        %v3064 = vld [vmem:[#allocation15 + $0x2f8] sm:$0xff]
        %v3065 = vld [vmem:[#allocation15 + $0x300] sm:$0xff]
        %v3066 = vld [vmem:[#allocation15 + $0x308] sm:$0xff]
        %v3067 = vld [vmem:[#allocation15 + $0x310] sm:$0xff]
        %v3068 = vld [vmem:[#allocation15 + $0x318] sm:$0xff]
        %v3069 = vld [vmem:[#allocation15 + $0x320] sm:$0xff]
        %v3070 = vld [vmem:[#allocation15 + $0x328] sm:$0xff]
        %v3071 = vld [vmem:[#allocation15 + $0x330] sm:$0xff]
        %v3072 = vld [vmem:[#allocation15 + $0x338] sm:$0xff]
        %v3073 = vld [vmem:[#allocation15 + $0x340] sm:$0xff]
        %v3074 = vld [vmem:[#allocation15 + $0x348] sm:$0xff]
        %v3075 = vld [vmem:[#allocation15 + $0x350] sm:$0xff]
        %v3076 = vld [vmem:[#allocation15 + $0x358] sm:$0xff]
        %v3077 = vld [vmem:[#allocation15 + $0x360] sm:$0xff]
        %v3078 = vld [vmem:[#allocation15 + $0x368] sm:$0xff]
        %v3079 = vld [vmem:[#allocation15 + $0x370] sm:$0xff]
        %v3080 = vld [vmem:[#allocation15 + $0x378] sm:$0xff]
        %v3081 = vld [vmem:[#allocation15 + $0x380] sm:$0xff]
        %v3082 = vld [vmem:[#allocation15 + $0x388] sm:$0xff]
        %v3083 = vld [vmem:[#allocation15 + $0x390] sm:$0xff]
        %v3084 = vld [vmem:[#allocation15 + $0x398] sm:$0xff]
        %v3085 = vld [vmem:[#allocation15 + $0x3a0] sm:$0xff]
        %v3086 = vld [vmem:[#allocation15 + $0x3a8] sm:$0xff]
        %v3087 = vld [vmem:[#allocation15 + $0x3b0] sm:$0xff]
        %v3088 = vld [vmem:[#allocation15 + $0x3b8] sm:$0xff]
        %v3089 = vld [vmem:[#allocation15 + $0x3c0] sm:$0xff]
        %v3090 = vld [vmem:[#allocation15 + $0x3c8] sm:$0xff]
        %v3091 = vld [vmem:[#allocation15 + $0x3d0] sm:$0xff]
        %v3092 = vld [vmem:[#allocation15 + $0x3d8] sm:$0xff]
        %v3093 = vld [vmem:[#allocation15 + $0x3e0] sm:$0xff]
        %v3094 = vld [vmem:[#allocation15 + $0x3e8] sm:$0xff]
        %v3095 = vld [vmem:[#allocation15 + $0x3f0] sm:$0xff]
        %v3096 = vld [vmem:[#allocation15 + $0x3f8] sm:$0xff]
        %v3097 = vld [vmem:[#allocation15 + $0x400] sm:$0xff]
        %v3098 = vld [vmem:[#allocation15 + $0x408] sm:$0xff]
        %v3099 = vld [vmem:[#allocation15 + $0x410] sm:$0xff]
        %v3100 = vld [vmem:[#allocation15 + $0x418] sm:$0xff]
        %v3101 = vld [vmem:[#allocation15 + $0x420] sm:$0xff]
        %v3102 = vld [vmem:[#allocation15 + $0x428] sm:$0xff]
        %v3103 = vld [vmem:[#allocation15 + $0x430] sm:$0xff]
        %v3104 = vld [vmem:[#allocation15 + $0x438] sm:$0xff]
        %v3105 = vld [vmem:[#allocation15 + $0x440] sm:$0xff]
        %v3106 = vld [vmem:[#allocation15 + $0x448] sm:$0xff]
        %v3107 = vld [vmem:[#allocation15 + $0x450] sm:$0xff]
        %v3108 = vld [vmem:[#allocation15 + $0x458] sm:$0xff]
        %v3109 = vld [vmem:[#allocation15 + $0x460] sm:$0xff]
        %v3110 = vld [vmem:[#allocation15 + $0x468] sm:$0xff]
        %v3111 = vld [vmem:[#allocation15 + $0x470] sm:$0xff]
        %v3112 = vld [vmem:[#allocation15 + $0x478] sm:$0xff]
        %v3113 = vld [vmem:[#allocation15 + $0x480] sm:$0xff]
        %v3114 = vld [vmem:[#allocation15 + $0x488] sm:$0xff]
        %v3115 = vld [vmem:[#allocation15 + $0x490] sm:$0xff]
        %v3116 = vld [vmem:[#allocation15 + $0x498] sm:$0xff]
        %v3117 = vld [vmem:[#allocation15 + $0x4a0] sm:$0xff]
        %v3118 = vld [vmem:[#allocation15 + $0x4a8] sm:$0xff]
        %v3119 = vld [vmem:[#allocation15 + $0x4b0] sm:$0xff]
        %v3120 = vld [vmem:[#allocation15 + $0x4b8] sm:$0xff]
        %v3121 = vld [vmem:[#allocation15 + $0x4c0] sm:$0xff]
        %v3122 = vld [vmem:[#allocation15 + $0x4c8] sm:$0xff]
        %v3123 = vld [vmem:[#allocation15 + $0x4d0] sm:$0xff]
        %v3124 = vld [vmem:[#allocation15 + $0x4d8] sm:$0xff]
        %v3125 = vld [vmem:[#allocation15 + $0x4e0] sm:$0xff]
        %v3126 = vld [vmem:[#allocation15 + $0x4e8] sm:$0xff]
        %v3127 = vld [vmem:[#allocation15 + $0x4f0] sm:$0xff]
        %v3128 = vld [vmem:[#allocation15 + $0x4f8] sm:$0xff]
        %v3129 = vld [vmem:[#allocation15 + $0x500] sm:$0xff]
        %v3130 = vld [vmem:[#allocation15 + $0x508] sm:$0xff]
        %v3131 = vld [vmem:[#allocation15 + $0x510] sm:$0xff]
        %v3132 = vld [vmem:[#allocation15 + $0x518] sm:$0xff]
        %v3133 = vld [vmem:[#allocation15 + $0x520] sm:$0xff]
        %v3134 = vld [vmem:[#allocation15 + $0x528] sm:$0xff]
        %v3135 = vld [vmem:[#allocation15 + $0x530] sm:$0xff]
        %v3136 = vld [vmem:[#allocation15 + $0x538] sm:$0xff]
        %v3137 = vld [vmem:[#allocation15 + $0x540] sm:$0xff]
        %v3138 = vld [vmem:[#allocation15 + $0x548] sm:$0xff]
        %v3139 = vld [vmem:[#allocation15 + $0x550] sm:$0xff]
        %v3140 = vld [vmem:[#allocation15 + $0x558] sm:$0xff]
        %v3141 = vld [vmem:[#allocation15 + $0x560] sm:$0xff]
        %v3142 = vld [vmem:[#allocation15 + $0x568] sm:$0xff]
        %v3143 = vld [vmem:[#allocation15 + $0x570] sm:$0xff]
        %v3144 = vld [vmem:[#allocation15 + $0x578] sm:$0xff]
        %v3145 = vld [vmem:[#allocation15 + $0x580] sm:$0xff]
        %v3146 = vld [vmem:[#allocation15 + $0x588] sm:$0xff]
        %v3147 = vld [vmem:[#allocation15 + $0x590] sm:$0xff]
        %v3148 = vld [vmem:[#allocation15 + $0x598] sm:$0xff]
        %v3149 = vld [vmem:[#allocation15 + $0x5a0] sm:$0xff]
        %v3150 = vld [vmem:[#allocation15 + $0x5a8] sm:$0xff]
        %v3151 = vld [vmem:[#allocation15 + $0x5b0] sm:$0xff]
        %v3152 = vld [vmem:[#allocation15 + $0x5b8] sm:$0xff]
        %v3153 = vld [vmem:[#allocation15 + $0x5c0] sm:$0xff]
        %v3154 = vld [vmem:[#allocation15 + $0x5c8] sm:$0xff]
        %v3155 = vld [vmem:[#allocation15 + $0x5d0] sm:$0xff]
        %v3156 = vld [vmem:[#allocation15 + $0x5d8] sm:$0xff]
        %v3157 = vld [vmem:[#allocation15 + $0x5e0] sm:$0xff]
        %v3158 = vld [vmem:[#allocation15 + $0x5e8] sm:$0xff]
        %v3159 = vld [vmem:[#allocation15 + $0x5f0] sm:$0xff]
        %v3160 = vld [vmem:[#allocation15 + $0x5f8] sm:$0xff]
        %v3161 = vld [vmem:[#allocation15 + $0x600] sm:$0xff]
        %v3162 = vld [vmem:[#allocation15 + $0x608] sm:$0xff]
        %v3163 = vld [vmem:[#allocation15 + $0x610] sm:$0xff]
        %v3164 = vld [vmem:[#allocation15 + $0x618] sm:$0xff]
        %v3165 = vld [vmem:[#allocation15 + $0x620] sm:$0xff]
        %v3166 = vld [vmem:[#allocation15 + $0x628] sm:$0xff]
        %v3167 = vld [vmem:[#allocation15 + $0x630] sm:$0xff]
        %v3168 = vld [vmem:[#allocation15 + $0x638] sm:$0xff]
        %v3169 = vld [vmem:[#allocation15 + $0x640] sm:$0xff]
        %v3170 = vld [vmem:[#allocation15 + $0x648] sm:$0xff]
        %v3171 = vld [vmem:[#allocation15 + $0x650] sm:$0xff]
        %v3172 = vld [vmem:[#allocation15 + $0x658] sm:$0xff]
        %v3173 = vld [vmem:[#allocation15 + $0x660] sm:$0xff]
        %v3174 = vld [vmem:[#allocation15 + $0x668] sm:$0xff]
        %v3175 = vld [vmem:[#allocation15 + $0x670] sm:$0xff]
        %v3176 = vld [vmem:[#allocation15 + $0x678] sm:$0xff]
        %v3177 = vld [vmem:[#allocation15 + $0x680] sm:$0xff]
        %v3178 = vld [vmem:[#allocation15 + $0x688] sm:$0xff]
        %v3179 = vld [vmem:[#allocation15 + $0x690] sm:$0xff]
        %v3180 = vld [vmem:[#allocation15 + $0x698] sm:$0xff]
        %v3181 = vld [vmem:[#allocation15 + $0x6a0] sm:$0xff]
        %v3182 = vld [vmem:[#allocation15 + $0x6a8] sm:$0xff]
        %v3183 = vld [vmem:[#allocation15 + $0x6b0] sm:$0xff]
        %v3184 = vld [vmem:[#allocation15 + $0x6b8] sm:$0xff]
        %v3185 = vld [vmem:[#allocation15 + $0x6c0] sm:$0xff]
        %v3186 = vld [vmem:[#allocation15 + $0x6c8] sm:$0xff]
        %v3187 = vld [vmem:[#allocation15 + $0x6d0] sm:$0xff]
        %v3188 = vld [vmem:[#allocation15 + $0x6d8] sm:$0xff]
        %v3189 = vld [vmem:[#allocation15 + $0x6e0] sm:$0xff]
        %v3190 = vld [vmem:[#allocation15 + $0x6e8] sm:$0xff]
        %v3191 = vld [vmem:[#allocation15 + $0x6f0] sm:$0xff]
        %v3192 = vld [vmem:[#allocation15 + $0x6f8] sm:$0xff]
        %v3193 = vld [vmem:[#allocation15 + $0x700] sm:$0xff]
        %v3194 = vld [vmem:[#allocation15 + $0x708] sm:$0xff]
        %v3195 = vld [vmem:[#allocation15 + $0x710] sm:$0xff]
        %v3196 = vld [vmem:[#allocation15 + $0x718] sm:$0xff]
        %v3197 = vld [vmem:[#allocation15 + $0x720] sm:$0xff]
        %v3198 = vld [vmem:[#allocation15 + $0x728] sm:$0xff]
        %v3199 = vld [vmem:[#allocation15 + $0x730] sm:$0xff]
        %v3200 = vld [vmem:[#allocation15 + $0x738] sm:$0xff]
        %v3201 = vld [vmem:[#allocation15 + $0x740] sm:$0xff]
        %v3202 = vld [vmem:[#allocation15 + $0x748] sm:$0xff]
        %v3203 = vld [vmem:[#allocation15 + $0x750] sm:$0xff]
        %v3204 = vld [vmem:[#allocation15 + $0x758] sm:$0xff]
        %v3205 = vld [vmem:[#allocation15 + $0x760] sm:$0xff]
        %v3206 = vld [vmem:[#allocation15 + $0x768] sm:$0xff]
        %v3207 = vld [vmem:[#allocation15 + $0x770] sm:$0xff]
        %v3208 = vld [vmem:[#allocation15 + $0x778] sm:$0xff]
        %v3209 = vld [vmem:[#allocation15 + $0x780] sm:$0xff]
        %v3210 = vld [vmem:[#allocation15 + $0x788] sm:$0xff]
        %v3211 = vld [vmem:[#allocation15 + $0x790] sm:$0xff]
        %v3212 = vld [vmem:[#allocation15 + $0x798] sm:$0xff]
        %v3213 = vld [vmem:[#allocation15 + $0x7a0] sm:$0xff]
        %v3214 = vld [vmem:[#allocation15 + $0x7a8] sm:$0xff]
        %v3215 = vld [vmem:[#allocation15 + $0x7b0] sm:$0xff]
        %v3216 = vld [vmem:[#allocation15 + $0x7b8] sm:$0xff]
        %v3217 = vld [vmem:[#allocation15 + $0x7c0] sm:$0xff]
        %v3218 = vld [vmem:[#allocation15 + $0x7c8] sm:$0xff]
        %v3219 = vld [vmem:[#allocation15 + $0x7d0] sm:$0xff]
        %v3220 = vld [vmem:[#allocation15 + $0x7d8] sm:$0xff]
        %v3221 = vld [vmem:[#allocation15 + $0x7e0] sm:$0xff]
        %v3222 = vld [vmem:[#allocation15 + $0x7e8] sm:$0xff]
        %v3223 = vld [vmem:[#allocation15 + $0x7f0] sm:$0xff]
        %v3224 = vld [vmem:[#allocation15 + $0x7f8] sm:$0xff]
        %3225 = vmatpush.msra.mxu0 %v3089
        %3226 = vmatpush.msra.mxu0 %v3081
        %3227 = vmatpush.msra.mxu0 %v3073
        %3228 = vmatpush.msra.mxu0 %v3065
        %3229 = vmatpush.msra.mxu0 %v3057
        %3230 = vmatpush.msra.mxu0 %v3049
        %3231 = vmatpush.msra.mxu0 %v3041
        %3232 = vmatpush.msra.mxu0 %v3033
        %3233 = vmatpush.msra.mxu0 %v3025
        %3234 = vmatpush.msra.mxu0 %v3017
        %3235 = vmatpush.msra.mxu0 %v3009
        %3236 = vmatpush.msra.mxu0 %v3001
        %3237 = vmatpush.msra.mxu0 %v2993
        %3238 = vmatpush.msra.mxu0 %v2985
        %3239 = vmatpush.msra.mxu0 %v2977
        %3240 = vmatpush.msra.mxu0 %v2969
        %3241 = vmatmul.f32.gmra.mxu0 %v2901
        %v3242 = vpop.f32.mrf.mxu0
        %v3243 = vadd.f32 0.0, %v3242
        %3244 = vdwg.mxu0
        %3245 = vmatpush.msra.mxu0 %v3217
        %3246 = vmatpush.msra.mxu0 %v3209
        %3247 = vmatpush.msra.mxu0 %v3201
        %3248 = vmatpush.msra.mxu0 %v3193
        %3249 = vmatpush.msra.mxu0 %v3185
        %3250 = vmatpush.msra.mxu0 %v3177
        %3251 = vmatpush.msra.mxu0 %v3169
        %3252 = vmatpush.msra.mxu0 %v3161
        %3253 = vmatpush.msra.mxu0 %v3153
        %3254 = vmatpush.msra.mxu0 %v3145
        %3255 = vmatpush.msra.mxu0 %v3137
        %3256 = vmatpush.msra.mxu0 %v3129
        %3257 = vmatpush.msra.mxu0 %v3121
        %3258 = vmatpush.msra.mxu0 %v3113
        %3259 = vmatpush.msra.mxu0 %v3105
        %3260 = vmatpush.msra.mxu0 %v3097
        %3261 = vmatmul.f32.gmra.mxu0 %v2964
        %v3262 = vpop.f32.mrf.mxu0
        %v3263 = vadd.f32 %v3243, %v3262
        %3264 = vdwg.mxu0
        %3265 = vmatpush.msra.mxu0 %v3090
        %3266 = vmatpush.msra.mxu0 %v3082
        %3267 = vmatpush.msra.mxu0 %v3074
        %3268 = vmatpush.msra.mxu0 %v3066
        %3269 = vmatpush.msra.mxu0 %v3058
        %3270 = vmatpush.msra.mxu0 %v3050
        %3271 = vmatpush.msra.mxu0 %v3042
        %3272 = vmatpush.msra.mxu0 %v3034
        %3273 = vmatpush.msra.mxu0 %v3026
        %3274 = vmatpush.msra.mxu0 %v3018
        %3275 = vmatpush.msra.mxu0 %v3010
        %3276 = vmatpush.msra.mxu0 %v3002
        %3277 = vmatpush.msra.mxu0 %v2994
        %3278 = vmatpush.msra.mxu0 %v2986
        %3279 = vmatpush.msra.mxu0 %v2978
        %3280 = vmatpush.msra.mxu0 %v2970
        %3281 = vmatmul.f32.gmra.mxu0 %v2901
        %v3282 = vpop.f32.mrf.mxu0
        %v3283 = vadd.f32 0.0, %v3282
        %3284 = vdwg.mxu0
        %3285 = vmatpush.msra.mxu0 %v3218
        %3286 = vmatpush.msra.mxu0 %v3210
        %3287 = vmatpush.msra.mxu0 %v3202
        %3288 = vmatpush.msra.mxu0 %v3194
        %3289 = vmatpush.msra.mxu0 %v3186
        %3290 = vmatpush.msra.mxu0 %v3178
        %3291 = vmatpush.msra.mxu0 %v3170
        %3292 = vmatpush.msra.mxu0 %v3162
        %3293 = vmatpush.msra.mxu0 %v3154
        %3294 = vmatpush.msra.mxu0 %v3146
        %3295 = vmatpush.msra.mxu0 %v3138
        %3296 = vmatpush.msra.mxu0 %v3130
        %3297 = vmatpush.msra.mxu0 %v3122
        %3298 = vmatpush.msra.mxu0 %v3114
        %3299 = vmatpush.msra.mxu0 %v3106
        %3300 = vmatpush.msra.mxu0 %v3098
        %3301 = vmatmul.f32.gmra.mxu0 %v2964
        %v3302 = vpop.f32.mrf.mxu0
        %v3303 = vadd.f32 %v3283, %v3302
        %3304 = vdwg.mxu0
        %3305 = vmatpush.msra.mxu0 %v3091
        %3306 = vmatpush.msra.mxu0 %v3083
        %3307 = vmatpush.msra.mxu0 %v3075
        %3308 = vmatpush.msra.mxu0 %v3067
        %3309 = vmatpush.msra.mxu0 %v3059
        %3310 = vmatpush.msra.mxu0 %v3051
        %3311 = vmatpush.msra.mxu0 %v3043
        %3312 = vmatpush.msra.mxu0 %v3035
        %3313 = vmatpush.msra.mxu0 %v3027
        %3314 = vmatpush.msra.mxu0 %v3019
        %3315 = vmatpush.msra.mxu0 %v3011
        %3316 = vmatpush.msra.mxu0 %v3003
        %3317 = vmatpush.msra.mxu0 %v2995
        %3318 = vmatpush.msra.mxu0 %v2987
        %3319 = vmatpush.msra.mxu0 %v2979
        %3320 = vmatpush.msra.mxu0 %v2971
        %3321 = vmatmul.f32.gmra.mxu0 %v2901
        %v3322 = vpop.f32.mrf.mxu0
        %v3323 = vadd.f32 0.0, %v3322
        %3324 = vdwg.mxu0
        %3325 = vmatpush.msra.mxu0 %v3219
        %3326 = vmatpush.msra.mxu0 %v3211
        %3327 = vmatpush.msra.mxu0 %v3203
        %3328 = vmatpush.msra.mxu0 %v3195
        %3329 = vmatpush.msra.mxu0 %v3187
        %3330 = vmatpush.msra.mxu0 %v3179
        %3331 = vmatpush.msra.mxu0 %v3171
        %3332 = vmatpush.msra.mxu0 %v3163
        %3333 = vmatpush.msra.mxu0 %v3155
        %3334 = vmatpush.msra.mxu0 %v3147
        %3335 = vmatpush.msra.mxu0 %v3139
        %3336 = vmatpush.msra.mxu0 %v3131
        %3337 = vmatpush.msra.mxu0 %v3123
        %3338 = vmatpush.msra.mxu0 %v3115
        %3339 = vmatpush.msra.mxu0 %v3107
        %3340 = vmatpush.msra.mxu0 %v3099
        %3341 = vmatmul.f32.gmra.mxu0 %v2964
        %v3342 = vpop.f32.mrf.mxu0
        %v3343 = vadd.f32 %v3323, %v3342
        %3344 = vdwg.mxu0
        %3345 = vmatpush.msra.mxu0 %v3092
        %3346 = vmatpush.msra.mxu0 %v3084
        %3347 = vmatpush.msra.mxu0 %v3076
        %3348 = vmatpush.msra.mxu0 %v3068
        %3349 = vmatpush.msra.mxu0 %v3060
        %3350 = vmatpush.msra.mxu0 %v3052
        %3351 = vmatpush.msra.mxu0 %v3044
        %3352 = vmatpush.msra.mxu0 %v3036
        %3353 = vmatpush.msra.mxu0 %v3028
        %3354 = vmatpush.msra.mxu0 %v3020
        %3355 = vmatpush.msra.mxu0 %v3012
        %3356 = vmatpush.msra.mxu0 %v3004
        %3357 = vmatpush.msra.mxu0 %v2996
        %3358 = vmatpush.msra.mxu0 %v2988
        %3359 = vmatpush.msra.mxu0 %v2980
        %3360 = vmatpush.msra.mxu0 %v2972
        %3361 = vmatmul.f32.gmra.mxu0 %v2901
        %v3362 = vpop.f32.mrf.mxu0
        %v3363 = vadd.f32 0.0, %v3362
        %3364 = vdwg.mxu0
        %3365 = vmatpush.msra.mxu0 %v3220
        %3366 = vmatpush.msra.mxu0 %v3212
        %3367 = vmatpush.msra.mxu0 %v3204
        %3368 = vmatpush.msra.mxu0 %v3196
        %3369 = vmatpush.msra.mxu0 %v3188
        %3370 = vmatpush.msra.mxu0 %v3180
        %3371 = vmatpush.msra.mxu0 %v3172
        %3372 = vmatpush.msra.mxu0 %v3164
        %3373 = vmatpush.msra.mxu0 %v3156
        %3374 = vmatpush.msra.mxu0 %v3148
        %3375 = vmatpush.msra.mxu0 %v3140
        %3376 = vmatpush.msra.mxu0 %v3132
        %3377 = vmatpush.msra.mxu0 %v3124
        %3378 = vmatpush.msra.mxu0 %v3116
        %3379 = vmatpush.msra.mxu0 %v3108
        %3380 = vmatpush.msra.mxu0 %v3100
        %3381 = vmatmul.f32.gmra.mxu0 %v2964
        %v3382 = vpop.f32.mrf.mxu0
        %v3383 = vadd.f32 %v3363, %v3382
        %3384 = vdwg.mxu0
        %3385 = vmatpush.msra.mxu0 %v3093
        %3386 = vmatpush.msra.mxu0 %v3085
        %3387 = vmatpush.msra.mxu0 %v3077
        %3388 = vmatpush.msra.mxu0 %v3069
        %3389 = vmatpush.msra.mxu0 %v3061
        %3390 = vmatpush.msra.mxu0 %v3053
        %3391 = vmatpush.msra.mxu0 %v3045
        %3392 = vmatpush.msra.mxu0 %v3037
        %3393 = vmatpush.msra.mxu0 %v3029
        %3394 = vmatpush.msra.mxu0 %v3021
        %3395 = vmatpush.msra.mxu0 %v3013
        %3396 = vmatpush.msra.mxu0 %v3005
        %3397 = vmatpush.msra.mxu0 %v2997
        %3398 = vmatpush.msra.mxu0 %v2989
        %3399 = vmatpush.msra.mxu0 %v2981
        %3400 = vmatpush.msra.mxu0 %v2973
        %3401 = vmatmul.f32.gmra.mxu0 %v2901
        %v3402 = vpop.f32.mrf.mxu0
        %v3403 = vadd.f32 0.0, %v3402
        %3404 = vdwg.mxu0
        %3405 = vmatpush.msra.mxu0 %v3221
        %3406 = vmatpush.msra.mxu0 %v3213
        %3407 = vmatpush.msra.mxu0 %v3205
        %3408 = vmatpush.msra.mxu0 %v3197
        %3409 = vmatpush.msra.mxu0 %v3189
        %3410 = vmatpush.msra.mxu0 %v3181
        %3411 = vmatpush.msra.mxu0 %v3173
        %3412 = vmatpush.msra.mxu0 %v3165
        %3413 = vmatpush.msra.mxu0 %v3157
        %3414 = vmatpush.msra.mxu0 %v3149
        %3415 = vmatpush.msra.mxu0 %v3141
        %3416 = vmatpush.msra.mxu0 %v3133
        %3417 = vmatpush.msra.mxu0 %v3125
        %3418 = vmatpush.msra.mxu0 %v3117
        %3419 = vmatpush.msra.mxu0 %v3109
        %3420 = vmatpush.msra.mxu0 %v3101
        %3421 = vmatmul.f32.gmra.mxu0 %v2964
        %v3422 = vpop.f32.mrf.mxu0
        %v3423 = vadd.f32 %v3403, %v3422
        %3424 = vdwg.mxu0
        %3425 = vmatpush.msra.mxu0 %v3094
        %3426 = vmatpush.msra.mxu0 %v3086
        %3427 = vmatpush.msra.mxu0 %v3078
        %3428 = vmatpush.msra.mxu0 %v3070
        %3429 = vmatpush.msra.mxu0 %v3062
        %3430 = vmatpush.msra.mxu0 %v3054
        %3431 = vmatpush.msra.mxu0 %v3046
        %3432 = vmatpush.msra.mxu0 %v3038
        %3433 = vmatpush.msra.mxu0 %v3030
        %3434 = vmatpush.msra.mxu0 %v3022
        %3435 = vmatpush.msra.mxu0 %v3014
        %3436 = vmatpush.msra.mxu0 %v3006
        %3437 = vmatpush.msra.mxu0 %v2998
        %3438 = vmatpush.msra.mxu0 %v2990
        %3439 = vmatpush.msra.mxu0 %v2982
        %3440 = vmatpush.msra.mxu0 %v2974
        %3441 = vmatmul.f32.gmra.mxu0 %v2901
        %v3442 = vpop.f32.mrf.mxu0
        %v3443 = vadd.f32 0.0, %v3442
        %3444 = vdwg.mxu0
        %3445 = vmatpush.msra.mxu0 %v3222
        %3446 = vmatpush.msra.mxu0 %v3214
        %3447 = vmatpush.msra.mxu0 %v3206
        %3448 = vmatpush.msra.mxu0 %v3198
        %3449 = vmatpush.msra.mxu0 %v3190
        %3450 = vmatpush.msra.mxu0 %v3182
        %3451 = vmatpush.msra.mxu0 %v3174
        %3452 = vmatpush.msra.mxu0 %v3166
        %3453 = vmatpush.msra.mxu0 %v3158
        %3454 = vmatpush.msra.mxu0 %v3150
        %3455 = vmatpush.msra.mxu0 %v3142
        %3456 = vmatpush.msra.mxu0 %v3134
        %3457 = vmatpush.msra.mxu0 %v3126
        %3458 = vmatpush.msra.mxu0 %v3118
        %3459 = vmatpush.msra.mxu0 %v3110
        %3460 = vmatpush.msra.mxu0 %v3102
        %3461 = vmatmul.f32.gmra.mxu0 %v2964
        %v3462 = vpop.f32.mrf.mxu0
        %v3463 = vadd.f32 %v3443, %v3462
        %3464 = vdwg.mxu0
        %3465 = vmatpush.msra.mxu0 %v3095
        %3466 = vmatpush.msra.mxu0 %v3087
        %3467 = vmatpush.msra.mxu0 %v3079
        %3468 = vmatpush.msra.mxu0 %v3071
        %3469 = vmatpush.msra.mxu0 %v3063
        %3470 = vmatpush.msra.mxu0 %v3055
        %3471 = vmatpush.msra.mxu0 %v3047
        %3472 = vmatpush.msra.mxu0 %v3039
        %3473 = vmatpush.msra.mxu0 %v3031
        %3474 = vmatpush.msra.mxu0 %v3023
        %3475 = vmatpush.msra.mxu0 %v3015
        %3476 = vmatpush.msra.mxu0 %v3007
        %3477 = vmatpush.msra.mxu0 %v2999
        %3478 = vmatpush.msra.mxu0 %v2991
        %3479 = vmatpush.msra.mxu0 %v2983
        %3480 = vmatpush.msra.mxu0 %v2975
        %3481 = vmatmul.f32.gmra.mxu0 %v2901
        %v3482 = vpop.f32.mrf.mxu0
        %v3483 = vadd.f32 0.0, %v3482
        %3484 = vdwg.mxu0
        %3485 = vmatpush.msra.mxu0 %v3223
        %3486 = vmatpush.msra.mxu0 %v3215
        %3487 = vmatpush.msra.mxu0 %v3207
        %3488 = vmatpush.msra.mxu0 %v3199
        %3489 = vmatpush.msra.mxu0 %v3191
        %3490 = vmatpush.msra.mxu0 %v3183
        %3491 = vmatpush.msra.mxu0 %v3175
        %3492 = vmatpush.msra.mxu0 %v3167
        %3493 = vmatpush.msra.mxu0 %v3159
        %3494 = vmatpush.msra.mxu0 %v3151
        %3495 = vmatpush.msra.mxu0 %v3143
        %3496 = vmatpush.msra.mxu0 %v3135
        %3497 = vmatpush.msra.mxu0 %v3127
        %3498 = vmatpush.msra.mxu0 %v3119
        %3499 = vmatpush.msra.mxu0 %v3111
        %3500 = vmatpush.msra.mxu0 %v3103
        %3501 = vmatmul.f32.gmra.mxu0 %v2964
        %v3502 = vpop.f32.mrf.mxu0
        %v3503 = vadd.f32 %v3483, %v3502
        %3504 = vdwg.mxu0
        %3505 = vmatpush.msra.mxu0 %v3096
        %3506 = vmatpush.msra.mxu0 %v3088
        %3507 = vmatpush.msra.mxu0 %v3080
        %3508 = vmatpush.msra.mxu0 %v3072
        %3509 = vmatpush.msra.mxu0 %v3064
        %3510 = vmatpush.msra.mxu0 %v3056
        %3511 = vmatpush.msra.mxu0 %v3048
        %3512 = vmatpush.msra.mxu0 %v3040
        %3513 = vmatpush.msra.mxu0 %v3032
        %3514 = vmatpush.msra.mxu0 %v3024
        %3515 = vmatpush.msra.mxu0 %v3016
        %3516 = vmatpush.msra.mxu0 %v3008
        %3517 = vmatpush.msra.mxu0 %v3000
        %3518 = vmatpush.msra.mxu0 %v2992
        %3519 = vmatpush.msra.mxu0 %v2984
        %3520 = vmatpush.msra.mxu0 %v2976
        %3521 = vmatmul.f32.gmra.mxu0 %v2901
        %v3522 = vpop.f32.mrf.mxu0
        %v3523 = vadd.f32 0.0, %v3522
        %3524 = vdwg.mxu0
        %3525 = vmatpush.msra.mxu0 %v3224
        %3526 = vmatpush.msra.mxu0 %v3216
        %3527 = vmatpush.msra.mxu0 %v3208
        %3528 = vmatpush.msra.mxu0 %v3200
        %3529 = vmatpush.msra.mxu0 %v3192
        %3530 = vmatpush.msra.mxu0 %v3184
        %3531 = vmatpush.msra.mxu0 %v3176
        %3532 = vmatpush.msra.mxu0 %v3168
        %3533 = vmatpush.msra.mxu0 %v3160
        %3534 = vmatpush.msra.mxu0 %v3152
        %3535 = vmatpush.msra.mxu0 %v3144
        %3536 = vmatpush.msra.mxu0 %v3136
        %3537 = vmatpush.msra.mxu0 %v3128
        %3538 = vmatpush.msra.mxu0 %v3120
        %3539 = vmatpush.msra.mxu0 %v3112
        %3540 = vmatpush.msra.mxu0 %v3104
        %3541 = vmatmul.f32.gmra.mxu0 %v2964
        %v3542 = vpop.f32.mrf.mxu0
        %v3543 = vadd.f32 %v3523, %v3542
        %3544 = vdwg.mxu0
        %s3545 = scalar_lea.vmem [#allocation5], 96
        %v3546 = vld [vmem:[%s3545] sm:$0xff]
        %v3547 = vld [vmem:[%s3545 + $0x8] sm:$0xff]
        %v3548 = vld [vmem:[%s3545 + $0x10] sm:$0xff]
        %v3549 = vld [vmem:[%s3545 + $0x18] sm:$0xff]
        %v3550 = vadd.f32 %v3546, %v3263
        %v3551 = vadd.f32 %v3547, %v3303
        %v3552 = vadd.f32 %v3548, %v3343
        %v3553 = vadd.f32 %v3549, %v3383
        %v3554 = vld [vmem:[#allocation6] sm:$0xff]
        %v3555 = vld [vmem:[#allocation6 + $0x8] sm:$0xff]
        %v3556 = vld [vmem:[#allocation6 + $0x10] sm:$0xff]
        %v3557 = vld [vmem:[#allocation6 + $0x18] sm:$0xff]
        %v3558 = vadd.f32 %v3554, %v3423
        %v3559 = vadd.f32 %v3555, %v3463
        %v3560 = vadd.f32 %v3556, %v3503
        %v3561 = vadd.f32 %v3557, %v3543
        %v3562 = vxor.u32 %v3550, 2147483648
        %v3563 = vmul.f32 %v3562, 1.442695
        %v3564 = vpow.pop %v3563
        %v3565 = vadd.f32 %v3564, 1.0
        %v3566 = vrcp.pop %v3565
        %v3567 = vmul.f32 %v3565, %v3566
        %v3568 = vsub.f32 1.0, %v3567
        %v3569 = vmul.f32 %v3566, %v3568
        %v3570 = vadd.f32 %v3566, %v3569
        %vm3571 = vweird.f32 %v3565
        %vm3572 = vweird.f32 %v3566
        %vm3573 = vmor %vm3571, %vm3572
        %v3574 = vsel %vm3573, %v3566, %v3570
        %v3575 = vand.u32 2147483647, %v3565
        %vm3576 = vcmp.eq.f32.partialorder %v3575, 8.507059e+37
        %v3577 = vand.u32 %v3565, 2147483648
        %v3578 = vor.u32 1.1754944e-38, %v3577
        %v3579 = vsel %vm3576, %v3578, %v3574
        %v3580 = vmul.f32 1.0, %v3579
        %v3581 = vxor.u32 %v3551, 2147483648
        %v3582 = vmul.f32 %v3581, 1.442695
        %v3583 = vpow.pop %v3582
        %v3584 = vadd.f32 %v3583, 1.0
        %v3585 = vrcp.pop %v3584
        %v3586 = vmul.f32 %v3584, %v3585
        %v3587 = vsub.f32 1.0, %v3586
        %v3588 = vmul.f32 %v3585, %v3587
        %v3589 = vadd.f32 %v3585, %v3588
        %vm3590 = vweird.f32 %v3584
        %vm3591 = vweird.f32 %v3585
        %vm3592 = vmor %vm3590, %vm3591
        %v3593 = vsel %vm3592, %v3585, %v3589
        %v3594 = vand.u32 2147483647, %v3584
        %vm3595 = vcmp.eq.f32.partialorder %v3594, 8.507059e+37
        %v3596 = vand.u32 %v3584, 2147483648
        %v3597 = vor.u32 1.1754944e-38, %v3596
        %v3598 = vsel %vm3595, %v3597, %v3593
        %v3599 = vmul.f32 1.0, %v3598
        %v3600 = vtanh.pop %v3552
        %v3601 = vxor.u32 %v3553, 2147483648
        %v3602 = vmul.f32 %v3601, 1.442695
        %v3603 = vpow.pop %v3602
        %v3604 = vadd.f32 %v3603, 1.0
        %v3605 = vrcp.pop %v3604
        %v3606 = vmul.f32 %v3604, %v3605
        %v3607 = vsub.f32 1.0, %v3606
        %v3608 = vmul.f32 %v3605, %v3607
        %v3609 = vadd.f32 %v3605, %v3608
        %vm3610 = vweird.f32 %v3604
        %vm3611 = vweird.f32 %v3605
        %vm3612 = vmor %vm3610, %vm3611
        %v3613 = vsel %vm3612, %v3605, %v3609
        %v3614 = vand.u32 2147483647, %v3604
        %vm3615 = vcmp.eq.f32.partialorder %v3614, 8.507059e+37
        %v3616 = vand.u32 %v3604, 2147483648
        %v3617 = vor.u32 1.1754944e-38, %v3616
        %v3618 = vsel %vm3615, %v3617, %v3613
        %v3619 = vmul.f32 1.0, %v3618
        %v3620 = vmul.f32 %v3599, %v2899
        %v3621 = vmul.f32 %v3580, %v3600
        %v3622 = vadd.f32 %v3620, %v3621
        %v3623 = vtanh.pop %v3622
        %v3624 = vmul.f32 %v3619, %v3623
        %v3625 = vxor.u32 %v3558, 2147483648
        %v3626 = vmul.f32 %v3625, 1.442695
        %v3627 = vpow.pop %v3626
        %v3628 = vadd.f32 %v3627, 1.0
        %v3629 = vrcp.pop %v3628
        %v3630 = vmul.f32 %v3628, %v3629
        %v3631 = vsub.f32 1.0, %v3630
        %v3632 = vmul.f32 %v3629, %v3631
        %v3633 = vadd.f32 %v3629, %v3632
        %vm3634 = vweird.f32 %v3628
        %vm3635 = vweird.f32 %v3629
        %vm3636 = vmor %vm3634, %vm3635
        %v3637 = vsel %vm3636, %v3629, %v3633
        %v3638 = vand.u32 2147483647, %v3628
        %vm3639 = vcmp.eq.f32.partialorder %v3638, 8.507059e+37
        %v3640 = vand.u32 %v3628, 2147483648
        %v3641 = vor.u32 1.1754944e-38, %v3640
        %v3642 = vsel %vm3639, %v3641, %v3637
        %v3643 = vmul.f32 1.0, %v3642
        %v3644 = vxor.u32 %v3559, 2147483648
        %v3645 = vmul.f32 %v3644, 1.442695
        %v3646 = vpow.pop %v3645
        %v3647 = vadd.f32 %v3646, 1.0
        %v3648 = vrcp.pop %v3647
        %v3649 = vmul.f32 %v3647, %v3648
        %v3650 = vsub.f32 1.0, %v3649
        %v3651 = vmul.f32 %v3648, %v3650
        %v3652 = vadd.f32 %v3648, %v3651
        %vm3653 = vweird.f32 %v3647
        %vm3654 = vweird.f32 %v3648
        %vm3655 = vmor %vm3653, %vm3654
        %v3656 = vsel %vm3655, %v3648, %v3652
        %v3657 = vand.u32 2147483647, %v3647
        %vm3658 = vcmp.eq.f32.partialorder %v3657, 8.507059e+37
        %v3659 = vand.u32 %v3647, 2147483648
        %v3660 = vor.u32 1.1754944e-38, %v3659
        %v3661 = vsel %vm3658, %v3660, %v3656
        %v3662 = vmul.f32 1.0, %v3661
        %v3663 = vtanh.pop %v3560
        %v3664 = vxor.u32 %v3561, 2147483648
        %v3665 = vmul.f32 %v3664, 1.442695
        %v3666 = vpow.pop %v3665
        %v3667 = vadd.f32 %v3666, 1.0
        %v3668 = vrcp.pop %v3667
        %v3669 = vmul.f32 %v3667, %v3668
        %v3670 = vsub.f32 1.0, %v3669
        %v3671 = vmul.f32 %v3668, %v3670
        %v3672 = vadd.f32 %v3668, %v3671
        %vm3673 = vweird.f32 %v3667
        %vm3674 = vweird.f32 %v3668
        %vm3675 = vmor %vm3673, %vm3674
        %v3676 = vsel %vm3675, %v3668, %v3672
        %v3677 = vand.u32 2147483647, %v3667
        %vm3678 = vcmp.eq.f32.partialorder %v3677, 8.507059e+37
        %v3679 = vand.u32 %v3667, 2147483648
        %v3680 = vor.u32 1.1754944e-38, %v3679
        %v3681 = vsel %vm3678, %v3680, %v3676
        %v3682 = vmul.f32 1.0, %v3681
        %v3683 = vmul.f32 %v3662, %v2962
        %v3684 = vmul.f32 %v3643, %v3663
        %v3685 = vadd.f32 %v3683, %v3684
        %v3686 = vtanh.pop %v3685
        %v3687 = vmul.f32 %v3682, %v3686
        %s3688 = scalar_lea.vmem %s440, 24 [#allocation18]
        %3689 = vst [vmem:[%s3688] sm:$0xff] %v3624
        %3690 = vst [vmem:[%s447] sm:$0xff] %v3687
        %3691 = vst [vmem:[#allocation2] sm:$0xff] %v3624
        %3692 = vst [vmem:[#allocation2 + $0x8] sm:$0xff] %v3687
        %3693 = vst [vmem:[#allocation3] sm:$0xff] %v3622
        %3694 = vst [vmem:[#allocation4] sm:$0xff] %v3685
        %s3695 = sand.u32 %s201, 1
        %s3696 = scalar_lea.sflag [#allocation9], %s3695
        %s3697 = sand.u32 %s201, 1
        %s3698 = smul.addr %s3697, 32
        %s3699 = scalar_lea.vmem [#allocation18], %s3698
        %s3700 = sand.u32 %s229, 1
        %s3701 = scalar_lea.sflag [#allocation20], %s3700
        %s3702 = sand.u32 %s229, 1
        %s3703 = smul.addr %s3702, 32
        %s3704 = scalar_lea.vmem [#allocation19], %s3703
        // Predicated region
        $region77: #{tpu_custom_call.1} parent=47 // pred_check
          %p3705 = pneg %p211
        $region78: #{tpu_custom_call.1} parent=47 // pred_check_branch
          %3707 = sbr.rel (%p3705) target = $region80
        $region79: #{tpu_custom_call.1} parent=47 // pred_region
          %s3708 = smul.u32 4, %s34
          %3710 = vsyncadd %s3696, 0
          %s3711 = smul.addr %s3708, 8
          %s3712 = scalar_lea.hbm %s7, %s3711
          %s3713 = sshll.u32 %s3699, 4
          %s3714 = int_to_ptr.vmem [resolvable:$true] %s3713
          %s3715 = sshll.u32 %s3712, 4
          %s3716 = int_to_ptr.hbm [resolvable:$true] %s3715
          %3721 = dma.vmem_to_hbm [thread:$0]  %s3714, 512, %s3716, %s3696, 128, 128, 8
        $region80: #{tpu_custom_call.1} parent=47 // pred_fallthru
          _
        // Predicated region
        $region81: #{tpu_custom_call.1} parent=47 // pred_check
          %p3722 = pneg %p239
        $region82: #{tpu_custom_call.1} parent=47 // pred_check_branch
          %3724 = sbr.rel (%p3722) target = $region84
        $region83: #{tpu_custom_call.1} parent=47 // pred_region
          %s3725 = ssub.s32 1, %s34
          %s3726 = smul.u32 4, %s3725
          %3728 = vsyncadd %s3701, 0
          %s3729 = smul.addr %s3726, 8
          %s3730 = scalar_lea.hbm %s8, %s3729
          %s3731 = sshll.u32 %s3704, 4
          %s3732 = int_to_ptr.vmem [resolvable:$true] %s3731
          %s3733 = sshll.u32 %s3730, 4
          %s3734 = int_to_ptr.hbm [resolvable:$true] %s3733
          %3739 = dma.vmem_to_hbm [thread:$0]  %s3732, 512, %s3734, %s3701, 128, 128, 8
        $region84: #{tpu_custom_call.1} parent=47 // pred_fallthru
          _
      $region48: #{tpu_custom_call.1} parent=5 // pred_fallthru
        _
      %p3740 = scmp.le.s32.totalorder 2, %s29
      // Predicated region
      $region85: #{tpu_custom_call.1} parent=5 // pred_check
        %p3741 = pneg %p3740
      $region86: #{tpu_custom_call.1} parent=5 // pred_check_branch
        %3743 = sbr.rel (%p3741) target = $region88
      $region87: #{tpu_custom_call.1} parent=5 // pred_region
        %s3744 = ssub.s32 %s29, 2
        // Predicated region
        $region89: #{tpu_custom_call.1} parent=87 // pred_check
          %p3745 = pneg %p217
        $region90: #{tpu_custom_call.1} parent=87 // pred_check_branch
          %3747 = sbr.rel (%p3745) target = $region92
        $region91: #{tpu_custom_call.1} parent=87 // pred_region
          %s3748 = sand.u32 %s202, 1
          %s3749 = scalar_lea.sflag [#allocation9], %s3748
          %s3750 = sand.u32 %s202, 1
          %s3751 = smul.addr %s3750, 32
          %s3752 = scalar_lea.vmem [#allocation18], %s3751
          %3754 = dma.done %s3749, 512
        $region92: #{tpu_custom_call.1} parent=87 // pred_fallthru
          _
        // Predicated region
        $region93: #{tpu_custom_call.1} parent=87 // pred_check
          %p3755 = pneg %p245
        $region94: #{tpu_custom_call.1} parent=87 // pred_check_branch
          %3757 = sbr.rel (%p3755) target = $region96
        $region95: #{tpu_custom_call.1} parent=87 // pred_region
          %s3758 = sand.u32 %s230, 1
          %s3759 = scalar_lea.sflag [#allocation20], %s3758
          %s3760 = sand.u32 %s230, 1
          %s3761 = smul.addr %s3760, 32
          %s3762 = scalar_lea.vmem [#allocation19], %s3761
          %3764 = dma.done %s3759, 512
        $region96: #{tpu_custom_call.1} parent=87 // pred_fallthru
          _
      $region88: #{tpu_custom_call.1} parent=5 // pred_fallthru
        _
    $region6: #{tpu_custom_call.1} parent=1 // loop_footer
      %s33 = sadd.s32 1, %s29
    $region7: #{tpu_custom_call.1} parent=1 // loop_footer_branch
      %28 = sbr.rel target = $region3
    $region8: #{tpu_custom_call.1} parent=1 // loop_exit
      _
    %3765 = vsyncpa [#allocation8], 1
    %s3766 = scalar_lea.sflag [#allocation8], 1
    %3767 = vsyncpa %s3766, 1
    %3768 = vsyncpa [#allocation11], 1
    %s3769 = scalar_lea.sflag [#allocation11], 1
    %3770 = vsyncpa %s3769, 1
    %3771 = vsyncpa [#allocation14], 1
    %3772 = vsyncpa [#allocation17], 1
    %3773 = vsyncpa [#allocation9], 1
    %s3774 = scalar_lea.sflag [#allocation9], 1
    %3775 = vsyncpa %s3774, 1
    %3776 = vsyncpa [#allocation20], 1
    %s3777 = scalar_lea.sflag [#allocation20], 1
    %3778 = vsyncpa %s3777, 1

</llo_original>
